<compile_context>
chip_gen: v7x
topology: tpu7x:2x2x1
jax: 0.10.0
libtpu: 0.0.40
codegen_flags: <defaults>
</compile_context>

<pallas_src>
import functools

import jax
import jax.numpy as jnp
from jax.experimental import pallas as pl
from jax.experimental.pallas import tpu as pltpu


# ----------------------------------------------------------------------------
# Kernel: positional add + num_layers encoder layers + head, fully fused
# ----------------------------------------------------------------------------
def fused_transformer_kernel(
    x_ref, pos_ref,
    wqkv_ref, wo_ref, w1_ref, w2_ref, vecs_ref,
    wfc_ref, bfc_ref,
    o_ref,
    last_ref,
    *, B, T, num_heads, num_layers,
):
    BT, D = x_ref.shape
    F = w1_ref.shape[2]
    hd = D // num_heads

    # positional add once; activation carried as a fori_loop value (stays in
    # vregs/VMEM, no per-layer HBM traffic, no per-layer grid-step overhead).
    x0 = x_ref[...] + pos_ref[...]                                  # (BT, D) f32

    def layer_body(l, x):
        xb = x.astype(jnp.bfloat16)

        # packed per-layer vectors: one (8, W) f32 load instead of 8 tiny inputs.
        vecs = vecs_ref[l]
        bqkv = vecs[0:1, :3 * D]
        bo = vecs[1:2, :D]
        b1 = vecs[2:3, :F]
        b2 = vecs[3:4, :D]
        g1 = vecs[4:5, :D]
        be1 = vecs[5:6, :D]
        g2 = vecs[6:7, :D]
        be2 = vecs[7:8, :D]

        # fused QKV projection for the whole batch (M = B*T rows);
        # q-scale (1/sqrt(hd)) already folded into wqkv / bqkv.
        qkv = jnp.dot(xb, wqkv_ref[l], preferred_element_type=jnp.float32) + bqkv

        # multi-head self-attention, batched over B inside each einsum.
        # per-head context is accumulated straight through its (head-major) slice
        # of the output projection -> no lane concat of head outputs.
        attn = jnp.zeros((BT, D), jnp.float32)
        for h in range(num_heads):
            qh = qkv[:, h * hd:(h + 1) * hd].reshape(B, T, hd).astype(jnp.bfloat16)
            kh = qkv[:, D + h * hd:D + (h + 1) * hd].reshape(B, T, hd).astype(jnp.bfloat16)
            vh = qkv[:, 2 * D + h * hd:2 * D + (h + 1) * hd].reshape(B, T, hd).astype(jnp.bfloat16)
            s = jnp.einsum('bqd,bkd->bqk', qh, kh,
                           preferred_element_type=jnp.float32)       # (B, T, T) f32
            s = s - jnp.max(s, axis=-1, keepdims=True)
            p = jnp.exp(s)
            p = p * pl.reciprocal(jnp.sum(p, axis=-1, keepdims=True), approx=True)
            oh = jnp.einsum('bqk,bkd->bqd', p.astype(jnp.bfloat16), vh,
                            preferred_element_type=jnp.float32).reshape(BT, hd)
            attn = attn + jnp.dot(oh.astype(jnp.bfloat16),
                                  wo_ref[l * num_heads + h],
                                  preferred_element_type=jnp.float32)
        attn = attn + bo

        # residual + LayerNorm 1 (post-norm, f32 stats)
        y = x + attn
        mu = jnp.mean(y, axis=-1, keepdims=True)
        var = jnp.mean((y - mu) ** 2, axis=-1, keepdims=True)
        y = (y - mu) * jax.lax.rsqrt(var + 1e-5) * g1 + be1

        # feed-forward (ReLU)
        h1 = jnp.maximum(
            jnp.dot(y.astype(jnp.bfloat16), w1_ref[l],
                    preferred_element_type=jnp.float32) + b1, 0.0)
        ffn = jnp.dot(h1.astype(jnp.bfloat16), w2_ref[l],
                      preferred_element_type=jnp.float32) + b2

        # residual + LayerNorm 2
        z = y + ffn
        mu2 = jnp.mean(z, axis=-1, keepdims=True)
        var2 = jnp.mean((z - mu2) ** 2, axis=-1, keepdims=True)
        return (z - mu2) * jax.lax.rsqrt(var2 + 1e-5) * g2 + be2

    z = jax.lax.fori_loop(0, num_layers, layer_body, x0, unroll=True)

    # last timestep of every batch element -> dedicated (B, D) scratch
    # (static row copies; avoids the reshape(B,T,D)[:, -1, :] relayout).
    for b in range(B):
        last_ref[b:b + 1, :] = z[b * T + T - 1:b * T + T, :]

    logits = jnp.dot(last_ref[...].astype(jnp.bfloat16), wfc_ref[...],
                     preferred_element_type=jnp.float32) + bfc_ref[...]
    o_ref[...] = jax.nn.sigmoid(logits)


# ----------------------------------------------------------------------------
# Wrapper
# ----------------------------------------------------------------------------
def run_fused_transformer(x_flat, pos_flat, params, *, B, T, D, num_heads,
                          num_layers):
    BT = B * T
    L = num_layers
    H = num_heads
    hd = D // H
    F = params["w1"].shape[-1]
    W = params["vecs"].shape[-1]
    kernel = functools.partial(fused_transformer_kernel,
                               B=B, T=T, num_heads=num_heads,
                               num_layers=num_layers)
    in_specs = [
        pl.BlockSpec((BT, D), lambda i: (0, 0)),                # x (flattened)
        pl.BlockSpec((BT, D), lambda i: (0, 0)),                # positional embedding
        pl.BlockSpec((L, D, 3 * D), lambda i: (0, 0, 0)),       # wqkv   (L, D, 3D)
        pl.BlockSpec((L * H, hd, D), lambda i: (0, 0, 0)),      # wo, head-major
        pl.BlockSpec((L, D, F), lambda i: (0, 0, 0)),           # w1
        pl.BlockSpec((L, F, D), lambda i: (0, 0, 0)),           # w2
        pl.BlockSpec((L, 8, W), lambda i: (0, 0, 0)),           # packed bias/LN vecs
        pl.BlockSpec((D, D), lambda i: (0, 0)),                 # fc_out weight
        pl.BlockSpec((1, D), lambda i: (0, 0)),                 # fc_out bias
    ]
    return pl.pallas_call(
        kernel,
        out_shape=jax.ShapeDtypeStruct((B, D), jnp.float32),
        grid=(1,),
        in_specs=in_specs,
        out_specs=pl.BlockSpec((B, D), lambda i: (0, 0)),
        scratch_shapes=[pltpu.VMEM((B, D), jnp.float32)],        # last-timestep rows
        compiler_params=pltpu.CompilerParams(
            dimension_semantics=("arbitrary",)),
    )(x_flat, pos_flat,
      params["wqkv"], params["wo"], params["w1"], params["w2"], params["vecs"],
      params["wfc"], params["bfc"])


def transformer_model_forward(x_nchw, params, num_heads, num_layers):
    """x_nchw: (B, C, F, T) -> (B, C, F, 1), matching the PyTorch forward."""
    B, C, Fq, T = x_nchw.shape
    D = C * Fq
    # same layout as x.permute(0, 3, 1, 2).reshape(B, T, C*F), flattened to (B*T, D)
    x_flat = jnp.transpose(x_nchw, (0, 3, 1, 2)).reshape(B * T, D).astype(jnp.float32)
    pos_flat = jnp.broadcast_to(params["pos"][:, :T, :], (B, T, D)).reshape(B * T, D)
    head = run_fused_transformer(x_flat, pos_flat, params, B=B, T=T, D=D,
                                 num_heads=num_heads, num_layers=num_layers)  # (B, D)
    out = head.reshape(B, 1, C, Fq)
    return jnp.transpose(out, (0, 2, 3, 1))                                    # (B, C, F, 1)


# ----------------------------------------------------------------------------
# Deterministic parameter construction (weights pre-transposed for x @ W,
# stacked over layers, bf16 for MXU operands; small per-layer vectors packed
# into one (L, 8, W) f32 array; 1/sqrt(head_dim) folded into Q columns).
# ----------------------------------------------------------------------------
def make_params(key, freq_size, num_channels, seq_len, num_heads, num_layers,
                dim_feedforward):
    D = freq_size * num_channels
    H = num_heads
    hd = D // H
    F = dim_feedforward
    W = max(3 * D, F, D)
    q_scale = 1.0 / float(hd) ** 0.5
    keys = jax.random.split(key, 2 + num_layers)

    pos = 0.02 * jax.random.normal(keys[0], (1, seq_len, D), jnp.float32)
    wfc = 0.05 * jax.random.normal(keys[1], (D, D), jnp.float32)
    bfc = jnp.zeros((1, D), jnp.float32)

    qkv_scale = jnp.concatenate([jnp.full((D,), q_scale, jnp.float32),
                                 jnp.ones((2 * D,), jnp.float32)])
    pad = lambda v: jnp.pad(v, (0, W - v.shape[0]))

    wqkv_l, wo_l, w1_l, w2_l, vec_l = [], [], [], [], []
    for l in range(num_layers):
        k = jax.random.split(keys[2 + l], 8)
        wqkv = 0.05 * jax.random.normal(k[0], (D, 3 * D), jnp.float32) * qkv_scale[None, :]
        bqkv = 0.01 * jax.random.normal(k[1], (3 * D,), jnp.float32) * qkv_scale
        wo = 0.05 * jax.random.normal(k[2], (D, D), jnp.float32)
        bo = 0.01 * jax.random.normal(k[3], (D,), jnp.float32)
        w1 = 0.05 * jax.random.normal(k[4], (D, F), jnp.float32)
        b1 = 0.01 * jax.random.normal(k[5], (F,), jnp.float32)
        w2 = 0.05 * jax.random.normal(k[6], (F, D), jnp.float32)
        b2 = 0.01 * jax.random.normal(k[7], (D,), jnp.float32)
        g1 = jnp.ones((D,), jnp.float32)
        be1 = jnp.zeros((D,), jnp.float32)
        g2 = jnp.ones((D,), jnp.float32)
        be2 = jnp.zeros((D,), jnp.float32)

        wqkv_l.append(wqkv)
        wo_l.append(wo.reshape(H, hd, D))            # head-major output projection
        w1_l.append(w1)
        w2_l.append(w2)
        vec_l.append(jnp.stack([pad(bqkv), pad(bo), pad(b1), pad(b2),
                                pad(g1), pad(be1), pad(g2), pad(be2)], axis=0))

    params = {
        "pos": pos,
        "wfc": wfc.astype(jnp.bfloat16),
        "bfc": bfc,
        "wqkv": jnp.stack(wqkv_l, axis=0).astype(jnp.bfloat16),        # (L, D, 3D)
        "wo": jnp.concatenate(wo_l, axis=0).astype(jnp.bfloat16),      # (L*H, hd, D)
        "w1": jnp.stack(w1_l, axis=0).astype(jnp.bfloat16),            # (L, D, F)
        "w2": jnp.stack(w2_l, axis=0).astype(jnp.bfloat16),            # (L, F, D)
        "vecs": jnp.stack(vec_l, axis=0),                              # (L, 8, W) f32
    }
    return params


if __name__ == "__main__":
    # small shapes consistent with the module
    batch = 2
    num_channels = 4
    freq_size = 8            # d_model = freq_size * num_channels = 32
    time_steps = 8
    seq_len = 16
    num_heads = 4
    num_encoder_layers = 2
    dim_feedforward = 64

    key = jax.random.PRNGKey(0)
    k_in, k_par = jax.random.split(key)
    x = jax.random.normal(k_in, (batch, num_channels, freq_size, time_steps),
                          jnp.float32)
    params = make_params(k_par, freq_size, num_channels, seq_len, num_heads,
                         num_encoder_layers, dim_feedforward)

    out = transformer_model_forward(x, params, num_heads, num_encoder_layers)
    out = jax.block_until_ready(out)
    assert out.shape == (batch, num_channels, freq_size, 1)
    print("KERNEL_OK")
</pallas_src>

<mosaic_0001>
module attributes {stable_mosaic.version = 11 : i64} {
  func.func @fused_transformer_kernel(%arg0: i32, %arg1: memref<16x32xf32, #tpu.memory_space<vmem>>, %arg2: memref<16x32xf32, #tpu.memory_space<vmem>>, %arg3: memref<2x32x96xbf16, #tpu.memory_space<vmem>>, %arg4: memref<8x8x32xbf16, #tpu.memory_space<vmem>>, %arg5: memref<2x32x64xbf16, #tpu.memory_space<vmem>>, %arg6: memref<2x64x32xbf16, #tpu.memory_space<vmem>>, %arg7: memref<2x8x96xf32, #tpu.memory_space<vmem>>, %arg8: memref<32x32xbf16, #tpu.memory_space<vmem>>, %arg9: memref<1x32xf32, #tpu.memory_space<vmem>>, %arg10: memref<2x32xf32, #tpu.memory_space<vmem>>, %arg11: memref<2x32xf32, #tpu.memory_space<vmem>>) attributes {dimension_semantics = [#tpu.dimension_semantics<arbitrary>], iteration_bounds = array<i64: 1>, scalar_prefetch = 0 : i64, scratch_operands = 1 : i64, tpu.core_type = #tpu.core_type<tc>, window_params = [{pipeline_mode = #tpu.pipeline_mode<synchronous>, transform_indices = @transform_0, window_bounds = array<i64: 16, 32>}, {pipeline_mode = #tpu.pipeline_mode<synchronous>, transform_indices = @transform_1, window_bounds = array<i64: 16, 32>}, {pipeline_mode = #tpu.pipeline_mode<synchronous>, transform_indices = @transform_2, window_bounds = array<i64: 2, 32, 96>}, {pipeline_mode = #tpu.pipeline_mode<synchronous>, transform_indices = @transform_3, window_bounds = array<i64: 8, 8, 32>}, {pipeline_mode = #tpu.pipeline_mode<synchronous>, transform_indices = @transform_4, window_bounds = array<i64: 2, 32, 64>}, {pipeline_mode = #tpu.pipeline_mode<synchronous>, transform_indices = @transform_5, window_bounds = array<i64: 2, 64, 32>}, {pipeline_mode = #tpu.pipeline_mode<synchronous>, transform_indices = @transform_6, window_bounds = array<i64: 2, 8, 96>}, {pipeline_mode = #tpu.pipeline_mode<synchronous>, transform_indices = @transform_7, window_bounds = array<i64: 32, 32>}, {pipeline_mode = #tpu.pipeline_mode<synchronous>, transform_indices = @transform_8, window_bounds = array<i64: 1, 32>}, {pipeline_mode = #tpu.pipeline_mode<synchronous>, transform_indices = @transform_9, window_bounds = array<i64: 2, 32>}]} {
    %c0 = arith.constant 0 : index
    %c0_0 = arith.constant 0 : index
    %0 = vector.load %arg1[%c0, %c0_0] : memref<16x32xf32, #tpu.memory_space<vmem>>, vector<16x32xf32>
    %c0_1 = arith.constant 0 : index
    %c0_2 = arith.constant 0 : index
    %1 = vector.load %arg2[%c0_1, %c0_2] : memref<16x32xf32, #tpu.memory_space<vmem>>, vector<16x32xf32>
    %2 = arith.addf %0, %1 : vector<16x32xf32>
    %c0_i32 = arith.constant 0 : i32
    %3 = arith.truncf %2 : vector<16x32xf32> to vector<16x32xbf16>
    %4 = arith.index_cast %c0_i32 : i32 to index
    %c0_3 = arith.constant 0 : index
    %c0_4 = arith.constant 0 : index
    %5 = vector.load %arg7[%4, %c0_3, %c0_4] : memref<2x8x96xf32, #tpu.memory_space<vmem>>, vector<1x8x96xf32>
    %6 = vector.shape_cast %5 : vector<1x8x96xf32> to vector<8x96xf32>
    %7 = vector.extract_strided_slice %6 {offsets = [0, 0], sizes = [1, 96], strides = [1, 1]} : vector<8x96xf32> to vector<1x96xf32>
    %8 = vector.extract_strided_slice %6 {offsets = [1, 0], sizes = [1, 32], strides = [1, 1]} : vector<8x96xf32> to vector<1x32xf32>
    %9 = vector.extract_strided_slice %6 {offsets = [2, 0], sizes = [1, 64], strides = [1, 1]} : vector<8x96xf32> to vector<1x64xf32>
    %10 = vector.extract_strided_slice %6 {offsets = [3, 0], sizes = [1, 32], strides = [1, 1]} : vector<8x96xf32> to vector<1x32xf32>
    %11 = vector.extract_strided_slice %6 {offsets = [4, 0], sizes = [1, 32], strides = [1, 1]} : vector<8x96xf32> to vector<1x32xf32>
    %12 = vector.extract_strided_slice %6 {offsets = [5, 0], sizes = [1, 32], strides = [1, 1]} : vector<8x96xf32> to vector<1x32xf32>
    %13 = vector.extract_strided_slice %6 {offsets = [6, 0], sizes = [1, 32], strides = [1, 1]} : vector<8x96xf32> to vector<1x32xf32>
    %14 = vector.extract_strided_slice %6 {offsets = [7, 0], sizes = [1, 32], strides = [1, 1]} : vector<8x96xf32> to vector<1x32xf32>
    %15 = arith.index_cast %c0_i32 : i32 to index
    %c0_5 = arith.constant 0 : index
    %c0_6 = arith.constant 0 : index
    %16 = vector.load %arg3[%15, %c0_5, %c0_6] : memref<2x32x96xbf16, #tpu.memory_space<vmem>>, vector<1x32x96xbf16>
    %17 = vector.shape_cast %16 : vector<1x32x96xbf16> to vector<32x96xbf16>
    %cst = arith.constant dense<0.000000e+00> : vector<16x96xf32>
    %18 = tpu.matmul %3, %17, %cst {dimension_numbers = #tpu.dot_dimension_numbers<[1], [0], [0], [1], [0, 0, 1, 1], [], []>} : vector<16x32xbf16>, vector<32x96xbf16>, vector<16x96xf32> -> vector<16x96xf32>
    %19 = vector.broadcast %7 : vector<1x96xf32> to vector<16x96xf32>
    %20 = arith.addf %18, %19 : vector<16x96xf32>
    %cst_7 = arith.constant 0.000000e+00 : f32
    %21 = vector.broadcast %cst_7 : f32 to vector<16x32xf32>
    %22 = vector.extract_strided_slice %20 {offsets = [0, 0], sizes = [16, 8], strides = [1, 1]} : vector<16x96xf32> to vector<16x8xf32>
    %23 = vector.shape_cast %22 : vector<16x8xf32> to vector<2x8x8xf32>
    %24 = arith.truncf %23 : vector<2x8x8xf32> to vector<2x8x8xbf16>
    %25 = vector.extract_strided_slice %20 {offsets = [0, 32], sizes = [16, 8], strides = [1, 1]} : vector<16x96xf32> to vector<16x8xf32>
    %26 = vector.shape_cast %25 : vector<16x8xf32> to vector<2x8x8xf32>
    %27 = arith.truncf %26 : vector<2x8x8xf32> to vector<2x8x8xbf16>
    %28 = vector.extract_strided_slice %20 {offsets = [0, 64], sizes = [16, 8], strides = [1, 1]} : vector<16x96xf32> to vector<16x8xf32>
    %29 = vector.shape_cast %28 : vector<16x8xf32> to vector<2x8x8xf32>
    %30 = arith.truncf %29 : vector<2x8x8xf32> to vector<2x8x8xbf16>
    "tpu.trace_start"() <{level = 10 : i32, message = "bqd,bkd->bqk"}> : () -> ()
    %cst_8 = arith.constant dense<0.000000e+00> : vector<2x8x8xf32>
    %31 = tpu.matmul %24, %27, %cst_8 {dimension_numbers = #tpu.dot_dimension_numbers<[2], [2], [1], [1], [0, 0, 0, 1, 1, 1], [0], [0]>} : vector<2x8x8xbf16>, vector<2x8x8xbf16>, vector<2x8x8xf32> -> vector<2x8x8xf32>
    "tpu.trace_stop"() : () -> ()
    %cst_9 = arith.constant dense<0xFF800000> : vector<2x8xf32>
    %32 = vector.multi_reduction <maximumf>, %31, %cst_9 [2] : vector<2x8x8xf32> to vector<2x8xf32>
    %33 = vector.shape_cast %32 : vector<2x8xf32> to vector<2x8x1xf32>
    %34 = vector.broadcast %33 : vector<2x8x1xf32> to vector<2x8x8xf32>
    %35 = arith.subf %31, %34 : vector<2x8x8xf32>
    %36 = math.exp %35 : vector<2x8x8xf32>
    %cst_10 = arith.constant dense<0.000000e+00> : vector<2x8xf32>
    %37 = vector.multi_reduction <add>, %36, %cst_10 [2] : vector<2x8x8xf32> to vector<2x8xf32>
    %38 = vector.shape_cast %37 : vector<2x8xf32> to vector<2x8x1xf32>
    %39 = tpu.reciprocal %38 {approx = true} : vector<2x8x1xf32> -> vector<2x8x1xf32>
    %40 = vector.broadcast %39 : vector<2x8x1xf32> to vector<2x8x8xf32>
    %41 = arith.mulf %36, %40 : vector<2x8x8xf32>
    %42 = arith.truncf %41 : vector<2x8x8xf32> to vector<2x8x8xbf16>
    "tpu.trace_start"() <{level = 10 : i32, message = "bqk,bkd->bqd"}> : () -> ()
    %cst_11 = arith.constant dense<0.000000e+00> : vector<2x8x8xf32>
    %43 = tpu.matmul %42, %30, %cst_11 {dimension_numbers = #tpu.dot_dimension_numbers<[2], [1], [1], [2], [0, 0, 0, 1, 1, 2], [0], [0]>} : vector<2x8x8xbf16>, vector<2x8x8xbf16>, vector<2x8x8xf32> -> vector<2x8x8xf32>
    "tpu.trace_stop"() : () -> ()
    %44 = vector.shape_cast %43 : vector<2x8x8xf32> to vector<16x8xf32>
    %45 = arith.truncf %44 : vector<16x8xf32> to vector<16x8xbf16>
    %c4_i32 = arith.constant 4 : i32
    %46 = arith.muli %c0_i32, %c4_i32 : i32
    %c0_i32_12 = arith.constant 0 : i32
    %47 = arith.addi %46, %c0_i32_12 : i32
    %48 = arith.index_cast %47 : i32 to index
    %c0_13 = arith.constant 0 : index
    %c0_14 = arith.constant 0 : index
    %49 = vector.load %arg4[%48, %c0_13, %c0_14] : memref<8x8x32xbf16, #tpu.memory_space<vmem>>, vector<1x8x32xbf16>
    %50 = vector.shape_cast %49 : vector<1x8x32xbf16> to vector<8x32xbf16>
    %cst_15 = arith.constant dense<0.000000e+00> : vector<16x32xf32>
    %51 = tpu.matmul %45, %50, %cst_15 {dimension_numbers = #tpu.dot_dimension_numbers<[1], [0], [0], [1], [0, 0, 1, 1], [], []>} : vector<16x8xbf16>, vector<8x32xbf16>, vector<16x32xf32> -> vector<16x32xf32>
    %52 = arith.addf %21, %51 : vector<16x32xf32>
    %53 = vector.extract_strided_slice %20 {offsets = [0, 8], sizes = [16, 8], strides = [1, 1]} : vector<16x96xf32> to vector<16x8xf32>
    %54 = vector.shape_cast %53 : vector<16x8xf32> to vector<2x8x8xf32>
    %55 = arith.truncf %54 : vector<2x8x8xf32> to vector<2x8x8xbf16>
    %56 = vector.extract_strided_slice %20 {offsets = [0, 40], sizes = [16, 8], strides = [1, 1]} : vector<16x96xf32> to vector<16x8xf32>
    %57 = vector.shape_cast %56 : vector<16x8xf32> to vector<2x8x8xf32>
    %58 = arith.truncf %57 : vector<2x8x8xf32> to vector<2x8x8xbf16>
    %59 = vector.extract_strided_slice %20 {offsets = [0, 72], sizes = [16, 8], strides = [1, 1]} : vector<16x96xf32> to vector<16x8xf32>
    %60 = vector.shape_cast %59 : vector<16x8xf32> to vector<2x8x8xf32>
    %61 = arith.truncf %60 : vector<2x8x8xf32> to vector<2x8x8xbf16>
    "tpu.trace_start"() <{level = 10 : i32, message = "bqd,bkd->bqk"}> : () -> ()
    %cst_16 = arith.constant dense<0.000000e+00> : vector<2x8x8xf32>
    %62 = tpu.matmul %55, %58, %cst_16 {dimension_numbers = #tpu.dot_dimension_numbers<[2], [2], [1], [1], [0, 0, 0, 1, 1, 1], [0], [0]>} : vector<2x8x8xbf16>, vector<2x8x8xbf16>, vector<2x8x8xf32> -> vector<2x8x8xf32>
    "tpu.trace_stop"() : () -> ()
    %cst_17 = arith.constant dense<0xFF800000> : vector<2x8xf32>
    %63 = vector.multi_reduction <maximumf>, %62, %cst_17 [2] : vector<2x8x8xf32> to vector<2x8xf32>
    %64 = vector.shape_cast %63 : vector<2x8xf32> to vector<2x8x1xf32>
    %65 = vector.broadcast %64 : vector<2x8x1xf32> to vector<2x8x8xf32>
    %66 = arith.subf %62, %65 : vector<2x8x8xf32>
    %67 = math.exp %66 : vector<2x8x8xf32>
    %cst_18 = arith.constant dense<0.000000e+00> : vector<2x8xf32>
    %68 = vector.multi_reduction <add>, %67, %cst_18 [2] : vector<2x8x8xf32> to vector<2x8xf32>
    %69 = vector.shape_cast %68 : vector<2x8xf32> to vector<2x8x1xf32>
    %70 = tpu.reciprocal %69 {approx = true} : vector<2x8x1xf32> -> vector<2x8x1xf32>
    %71 = vector.broadcast %70 : vector<2x8x1xf32> to vector<2x8x8xf32>
    %72 = arith.mulf %67, %71 : vector<2x8x8xf32>
    %73 = arith.truncf %72 : vector<2x8x8xf32> to vector<2x8x8xbf16>
    "tpu.trace_start"() <{level = 10 : i32, message = "bqk,bkd->bqd"}> : () -> ()
    %cst_19 = arith.constant dense<0.000000e+00> : vector<2x8x8xf32>
    %74 = tpu.matmul %73, %61, %cst_19 {dimension_numbers = #tpu.dot_dimension_numbers<[2], [1], [1], [2], [0, 0, 0, 1, 1, 2], [0], [0]>} : vector<2x8x8xbf16>, vector<2x8x8xbf16>, vector<2x8x8xf32> -> vector<2x8x8xf32>
    "tpu.trace_stop"() : () -> ()
    %75 = vector.shape_cast %74 : vector<2x8x8xf32> to vector<16x8xf32>
    %76 = arith.truncf %75 : vector<16x8xf32> to vector<16x8xbf16>
    %c4_i32_20 = arith.constant 4 : i32
    %77 = arith.muli %c0_i32, %c4_i32_20 : i32
    %c1_i32 = arith.constant 1 : i32
    %78 = arith.addi %77, %c1_i32 : i32
    %79 = arith.index_cast %78 : i32 to index
    %c0_21 = arith.constant 0 : index
    %c0_22 = arith.constant 0 : index
    %80 = vector.load %arg4[%79, %c0_21, %c0_22] : memref<8x8x32xbf16, #tpu.memory_space<vmem>>, vector<1x8x32xbf16>
    %81 = vector.shape_cast %80 : vector<1x8x32xbf16> to vector<8x32xbf16>
    %cst_23 = arith.constant dense<0.000000e+00> : vector<16x32xf32>
    %82 = tpu.matmul %76, %81, %cst_23 {dimension_numbers = #tpu.dot_dimension_numbers<[1], [0], [0], [1], [0, 0, 1, 1], [], []>} : vector<16x8xbf16>, vector<8x32xbf16>, vector<16x32xf32> -> vector<16x32xf32>
    %83 = arith.addf %52, %82 : vector<16x32xf32>
    %84 = vector.extract_strided_slice %20 {offsets = [0, 16], sizes = [16, 8], strides = [1, 1]} : vector<16x96xf32> to vector<16x8xf32>
    %85 = vector.shape_cast %84 : vector<16x8xf32> to vector<2x8x8xf32>
    %86 = arith.truncf %85 : vector<2x8x8xf32> to vector<2x8x8xbf16>
    %87 = vector.extract_strided_slice %20 {offsets = [0, 48], sizes = [16, 8], strides = [1, 1]} : vector<16x96xf32> to vector<16x8xf32>
    %88 = vector.shape_cast %87 : vector<16x8xf32> to vector<2x8x8xf32>
    %89 = arith.truncf %88 : vector<2x8x8xf32> to vector<2x8x8xbf16>
    %90 = vector.extract_strided_slice %20 {offsets = [0, 80], sizes = [16, 8], strides = [1, 1]} : vector<16x96xf32> to vector<16x8xf32>
    %91 = vector.shape_cast %90 : vector<16x8xf32> to vector<2x8x8xf32>
    %92 = arith.truncf %91 : vector<2x8x8xf32> to vector<2x8x8xbf16>
    "tpu.trace_start"() <{level = 10 : i32, message = "bqd,bkd->bqk"}> : () -> ()
    %cst_24 = arith.constant dense<0.000000e+00> : vector<2x8x8xf32>
    %93 = tpu.matmul %86, %89, %cst_24 {dimension_numbers = #tpu.dot_dimension_numbers<[2], [2], [1], [1], [0, 0, 0, 1, 1, 1], [0], [0]>} : vector<2x8x8xbf16>, vector<2x8x8xbf16>, vector<2x8x8xf32> -> vector<2x8x8xf32>
    "tpu.trace_stop"() : () -> ()
    %cst_25 = arith.constant dense<0xFF800000> : vector<2x8xf32>
    %94 = vector.multi_reduction <maximumf>, %93, %cst_25 [2] : vector<2x8x8xf32> to vector<2x8xf32>
    %95 = vector.shape_cast %94 : vector<2x8xf32> to vector<2x8x1xf32>
    %96 = vector.broadcast %95 : vector<2x8x1xf32> to vector<2x8x8xf32>
    %97 = arith.subf %93, %96 : vector<2x8x8xf32>
    %98 = math.exp %97 : vector<2x8x8xf32>
    %cst_26 = arith.constant dense<0.000000e+00> : vector<2x8xf32>
    %99 = vector.multi_reduction <add>, %98, %cst_26 [2] : vector<2x8x8xf32> to vector<2x8xf32>
    %100 = vector.shape_cast %99 : vector<2x8xf32> to vector<2x8x1xf32>
    %101 = tpu.reciprocal %100 {approx = true} : vector<2x8x1xf32> -> vector<2x8x1xf32>
    %102 = vector.broadcast %101 : vector<2x8x1xf32> to vector<2x8x8xf32>
    %103 = arith.mulf %98, %102 : vector<2x8x8xf32>
    %104 = arith.truncf %103 : vector<2x8x8xf32> to vector<2x8x8xbf16>
    "tpu.trace_start"() <{level = 10 : i32, message = "bqk,bkd->bqd"}> : () -> ()
    %cst_27 = arith.constant dense<0.000000e+00> : vector<2x8x8xf32>
    %105 = tpu.matmul %104, %92, %cst_27 {dimension_numbers = #tpu.dot_dimension_numbers<[2], [1], [1], [2], [0, 0, 0, 1, 1, 2], [0], [0]>} : vector<2x8x8xbf16>, vector<2x8x8xbf16>, vector<2x8x8xf32> -> vector<2x8x8xf32>
    "tpu.trace_stop"() : () -> ()
    %106 = vector.shape_cast %105 : vector<2x8x8xf32> to vector<16x8xf32>
    %107 = arith.truncf %106 : vector<16x8xf32> to vector<16x8xbf16>
    %c4_i32_28 = arith.constant 4 : i32
    %108 = arith.muli %c0_i32, %c4_i32_28 : i32
    %c2_i32 = arith.constant 2 : i32
    %109 = arith.addi %108, %c2_i32 : i32
    %110 = arith.index_cast %109 : i32 to index
    %c0_29 = arith.constant 0 : index
    %c0_30 = arith.constant 0 : index
    %111 = vector.load %arg4[%110, %c0_29, %c0_30] : memref<8x8x32xbf16, #tpu.memory_space<vmem>>, vector<1x8x32xbf16>
    %112 = vector.shape_cast %111 : vector<1x8x32xbf16> to vector<8x32xbf16>
    %cst_31 = arith.constant dense<0.000000e+00> : vector<16x32xf32>
    %113 = tpu.matmul %107, %112, %cst_31 {dimension_numbers = #tpu.dot_dimension_numbers<[1], [0], [0], [1], [0, 0, 1, 1], [], []>} : vector<16x8xbf16>, vector<8x32xbf16>, vector<16x32xf32> -> vector<16x32xf32>
    %114 = arith.addf %83, %113 : vector<16x32xf32>
    %115 = vector.extract_strided_slice %20 {offsets = [0, 24], sizes = [16, 8], strides = [1, 1]} : vector<16x96xf32> to vector<16x8xf32>
    %116 = vector.shape_cast %115 : vector<16x8xf32> to vector<2x8x8xf32>
    %117 = arith.truncf %116 : vector<2x8x8xf32> to vector<2x8x8xbf16>
    %118 = vector.extract_strided_slice %20 {offsets = [0, 56], sizes = [16, 8], strides = [1, 1]} : vector<16x96xf32> to vector<16x8xf32>
    %119 = vector.shape_cast %118 : vector<16x8xf32> to vector<2x8x8xf32>
    %120 = arith.truncf %119 : vector<2x8x8xf32> to vector<2x8x8xbf16>
    %121 = vector.extract_strided_slice %20 {offsets = [0, 88], sizes = [16, 8], strides = [1, 1]} : vector<16x96xf32> to vector<16x8xf32>
    %122 = vector.shape_cast %121 : vector<16x8xf32> to vector<2x8x8xf32>
    %123 = arith.truncf %122 : vector<2x8x8xf32> to vector<2x8x8xbf16>
    "tpu.trace_start"() <{level = 10 : i32, message = "bqd,bkd->bqk"}> : () -> ()
    %cst_32 = arith.constant dense<0.000000e+00> : vector<2x8x8xf32>
    %124 = tpu.matmul %117, %120, %cst_32 {dimension_numbers = #tpu.dot_dimension_numbers<[2], [2], [1], [1], [0, 0, 0, 1, 1, 1], [0], [0]>} : vector<2x8x8xbf16>, vector<2x8x8xbf16>, vector<2x8x8xf32> -> vector<2x8x8xf32>
    "tpu.trace_stop"() : () -> ()
    %cst_33 = arith.constant dense<0xFF800000> : vector<2x8xf32>
    %125 = vector.multi_reduction <maximumf>, %124, %cst_33 [2] : vector<2x8x8xf32> to vector<2x8xf32>
    %126 = vector.shape_cast %125 : vector<2x8xf32> to vector<2x8x1xf32>
    %127 = vector.broadcast %126 : vector<2x8x1xf32> to vector<2x8x8xf32>
    %128 = arith.subf %124, %127 : vector<2x8x8xf32>
    %129 = math.exp %128 : vector<2x8x8xf32>
    %cst_34 = arith.constant dense<0.000000e+00> : vector<2x8xf32>
    %130 = vector.multi_reduction <add>, %129, %cst_34 [2] : vector<2x8x8xf32> to vector<2x8xf32>
    %131 = vector.shape_cast %130 : vector<2x8xf32> to vector<2x8x1xf32>
    %132 = tpu.reciprocal %131 {approx = true} : vector<2x8x1xf32> -> vector<2x8x1xf32>
    %133 = vector.broadcast %132 : vector<2x8x1xf32> to vector<2x8x8xf32>
    %134 = arith.mulf %129, %133 : vector<2x8x8xf32>
    %135 = arith.truncf %134 : vector<2x8x8xf32> to vector<2x8x8xbf16>
    "tpu.trace_start"() <{level = 10 : i32, message = "bqk,bkd->bqd"}> : () -> ()
    %cst_35 = arith.constant dense<0.000000e+00> : vector<2x8x8xf32>
    %136 = tpu.matmul %135, %123, %cst_35 {dimension_numbers = #tpu.dot_dimension_numbers<[2], [1], [1], [2], [0, 0, 0, 1, 1, 2], [0], [0]>} : vector<2x8x8xbf16>, vector<2x8x8xbf16>, vector<2x8x8xf32> -> vector<2x8x8xf32>
    "tpu.trace_stop"() : () -> ()
    %137 = vector.shape_cast %136 : vector<2x8x8xf32> to vector<16x8xf32>
    %138 = arith.truncf %137 : vector<16x8xf32> to vector<16x8xbf16>
    %c4_i32_36 = arith.constant 4 : i32
    %139 = arith.muli %c0_i32, %c4_i32_36 : i32
    %c3_i32 = arith.constant 3 : i32
    %140 = arith.addi %139, %c3_i32 : i32
    %141 = arith.index_cast %140 : i32 to index
    %c0_37 = arith.constant 0 : index
    %c0_38 = arith.constant 0 : index
    %142 = vector.load %arg4[%141, %c0_37, %c0_38] : memref<8x8x32xbf16, #tpu.memory_space<vmem>>, vector<1x8x32xbf16>
    %143 = vector.shape_cast %142 : vector<1x8x32xbf16> to vector<8x32xbf16>
    %cst_39 = arith.constant dense<0.000000e+00> : vector<16x32xf32>
    %144 = tpu.matmul %138, %143, %cst_39 {dimension_numbers = #tpu.dot_dimension_numbers<[1], [0], [0], [1], [0, 0, 1, 1], [], []>} : vector<16x8xbf16>, vector<8x32xbf16>, vector<16x32xf32> -> vector<16x32xf32>
    %145 = arith.addf %114, %144 : vector<16x32xf32>
    %146 = vector.broadcast %8 : vector<1x32xf32> to vector<16x32xf32>
    %147 = arith.addf %145, %146 : vector<16x32xf32>
    %148 = arith.addf %2, %147 : vector<16x32xf32>
    %cst_40 = arith.constant dense<0.000000e+00> : vector<16xf32>
    %149 = vector.multi_reduction <add>, %148, %cst_40 [1] : vector<16x32xf32> to vector<16xf32>
    %150 = vector.shape_cast %149 : vector<16xf32> to vector<16x1xf32>
    %cst_41 = arith.constant 3.200000e+01 : f32
    %151 = vector.broadcast %cst_41 : f32 to vector<16x1xf32>
    %152 = arith.divf %150, %151 : vector<16x1xf32>
    %153 = vector.broadcast %152 : vector<16x1xf32> to vector<16x32xf32>
    %154 = arith.subf %148, %153 : vector<16x32xf32>
    %155 = arith.mulf %154, %154 : vector<16x32xf32>
    %cst_42 = arith.constant dense<0.000000e+00> : vector<16xf32>
    %156 = vector.multi_reduction <add>, %155, %cst_42 [1] : vector<16x32xf32> to vector<16xf32>
    %157 = vector.shape_cast %156 : vector<16xf32> to vector<16x1xf32>
    %cst_43 = arith.constant 3.200000e+01 : f32
    %158 = vector.broadcast %cst_43 : f32 to vector<16x1xf32>
    %159 = arith.divf %157, %158 : vector<16x1xf32>
    %160 = vector.broadcast %152 : vector<16x1xf32> to vector<16x32xf32>
    %161 = arith.subf %148, %160 : vector<16x32xf32>
    %cst_44 = arith.constant 9.99999974E-6 : f32
    %162 = vector.broadcast %cst_44 : f32 to vector<16x1xf32>
    %163 = arith.addf %159, %162 : vector<16x1xf32>
    %164 = math.rsqrt %163 : vector<16x1xf32>
    %165 = vector.broadcast %164 : vector<16x1xf32> to vector<16x32xf32>
    %166 = arith.mulf %161, %165 : vector<16x32xf32>
    %167 = vector.broadcast %11 : vector<1x32xf32> to vector<16x32xf32>
    %168 = arith.mulf %166, %167 : vector<16x32xf32>
    %169 = vector.broadcast %12 : vector<1x32xf32> to vector<16x32xf32>
    %170 = arith.addf %168, %169 : vector<16x32xf32>
    %171 = arith.truncf %170 : vector<16x32xf32> to vector<16x32xbf16>
    %172 = arith.index_cast %c0_i32 : i32 to index
    %c0_45 = arith.constant 0 : index
    %c0_46 = arith.constant 0 : index
    %173 = vector.load %arg5[%172, %c0_45, %c0_46] : memref<2x32x64xbf16, #tpu.memory_space<vmem>>, vector<1x32x64xbf16>
    %174 = vector.shape_cast %173 : vector<1x32x64xbf16> to vector<32x64xbf16>
    %cst_47 = arith.constant dense<0.000000e+00> : vector<16x64xf32>
    %175 = tpu.matmul %171, %174, %cst_47 {dimension_numbers = #tpu.dot_dimension_numbers<[1], [0], [0], [1], [0, 0, 1, 1], [], []>} : vector<16x32xbf16>, vector<32x64xbf16>, vector<16x64xf32> -> vector<16x64xf32>
    %176 = vector.broadcast %9 : vector<1x64xf32> to vector<16x64xf32>
    %177 = arith.addf %175, %176 : vector<16x64xf32>
    %cst_48 = arith.constant 0.000000e+00 : f32
    %178 = vector.broadcast %cst_48 : f32 to vector<16x64xf32>
    %179 = arith.maximumf %177, %178 : vector<16x64xf32>
    %180 = arith.truncf %179 : vector<16x64xf32> to vector<16x64xbf16>
    %181 = arith.index_cast %c0_i32 : i32 to index
    %c0_49 = arith.constant 0 : index
    %c0_50 = arith.constant 0 : index
    %182 = vector.load %arg6[%181, %c0_49, %c0_50] : memref<2x64x32xbf16, #tpu.memory_space<vmem>>, vector<1x64x32xbf16>
    %183 = vector.shape_cast %182 : vector<1x64x32xbf16> to vector<64x32xbf16>
    %cst_51 = arith.constant dense<0.000000e+00> : vector<16x32xf32>
    %184 = tpu.matmul %180, %183, %cst_51 {dimension_numbers = #tpu.dot_dimension_numbers<[1], [0], [0], [1], [0, 0, 1, 1], [], []>} : vector<16x64xbf16>, vector<64x32xbf16>, vector<16x32xf32> -> vector<16x32xf32>
    %185 = vector.broadcast %10 : vector<1x32xf32> to vector<16x32xf32>
    %186 = arith.addf %184, %185 : vector<16x32xf32>
    %187 = arith.addf %170, %186 : vector<16x32xf32>
    %cst_52 = arith.constant dense<0.000000e+00> : vector<16xf32>
    %188 = vector.multi_reduction <add>, %187, %cst_52 [1] : vector<16x32xf32> to vector<16xf32>
    %189 = vector.shape_cast %188 : vector<16xf32> to vector<16x1xf32>
    %cst_53 = arith.constant 3.200000e+01 : f32
    %190 = vector.broadcast %cst_53 : f32 to vector<16x1xf32>
    %191 = arith.divf %189, %190 : vector<16x1xf32>
    %192 = vector.broadcast %191 : vector<16x1xf32> to vector<16x32xf32>
    %193 = arith.subf %187, %192 : vector<16x32xf32>
    %194 = arith.mulf %193, %193 : vector<16x32xf32>
    %cst_54 = arith.constant dense<0.000000e+00> : vector<16xf32>
    %195 = vector.multi_reduction <add>, %194, %cst_54 [1] : vector<16x32xf32> to vector<16xf32>
    %196 = vector.shape_cast %195 : vector<16xf32> to vector<16x1xf32>
    %cst_55 = arith.constant 3.200000e+01 : f32
    %197 = vector.broadcast %cst_55 : f32 to vector<16x1xf32>
    %198 = arith.divf %196, %197 : vector<16x1xf32>
    %199 = vector.broadcast %191 : vector<16x1xf32> to vector<16x32xf32>
    %200 = arith.subf %187, %199 : vector<16x32xf32>
    %cst_56 = arith.constant 9.99999974E-6 : f32
    %201 = vector.broadcast %cst_56 : f32 to vector<16x1xf32>
    %202 = arith.addf %198, %201 : vector<16x1xf32>
    %203 = math.rsqrt %202 : vector<16x1xf32>
    %204 = vector.broadcast %203 : vector<16x1xf32> to vector<16x32xf32>
    %205 = arith.mulf %200, %204 : vector<16x32xf32>
    %206 = vector.broadcast %13 : vector<1x32xf32> to vector<16x32xf32>
    %207 = arith.mulf %205, %206 : vector<16x32xf32>
    %208 = vector.broadcast %14 : vector<1x32xf32> to vector<16x32xf32>
    %209 = arith.addf %207, %208 : vector<16x32xf32>
    %c1_i32_57 = arith.constant 1 : i32
    %210 = arith.truncf %209 : vector<16x32xf32> to vector<16x32xbf16>
    %211 = arith.index_cast %c1_i32_57 : i32 to index
    %c0_58 = arith.constant 0 : index
    %c0_59 = arith.constant 0 : index
    %212 = vector.load %arg7[%211, %c0_58, %c0_59] : memref<2x8x96xf32, #tpu.memory_space<vmem>>, vector<1x8x96xf32>
    %213 = vector.shape_cast %212 : vector<1x8x96xf32> to vector<8x96xf32>
    %214 = vector.extract_strided_slice %213 {offsets = [0, 0], sizes = [1, 96], strides = [1, 1]} : vector<8x96xf32> to vector<1x96xf32>
    %215 = vector.extract_strided_slice %213 {offsets = [1, 0], sizes = [1, 32], strides = [1, 1]} : vector<8x96xf32> to vector<1x32xf32>
    %216 = vector.extract_strided_slice %213 {offsets = [2, 0], sizes = [1, 64], strides = [1, 1]} : vector<8x96xf32> to vector<1x64xf32>
    %217 = vector.extract_strided_slice %213 {offsets = [3, 0], sizes = [1, 32], strides = [1, 1]} : vector<8x96xf32> to vector<1x32xf32>
    %218 = vector.extract_strided_slice %213 {offsets = [4, 0], sizes = [1, 32], strides = [1, 1]} : vector<8x96xf32> to vector<1x32xf32>
    %219 = vector.extract_strided_slice %213 {offsets = [5, 0], sizes = [1, 32], strides = [1, 1]} : vector<8x96xf32> to vector<1x32xf32>
    %220 = vector.extract_strided_slice %213 {offsets = [6, 0], sizes = [1, 32], strides = [1, 1]} : vector<8x96xf32> to vector<1x32xf32>
    %221 = vector.extract_strided_slice %213 {offsets = [7, 0], sizes = [1, 32], strides = [1, 1]} : vector<8x96xf32> to vector<1x32xf32>
    %222 = arith.index_cast %c1_i32_57 : i32 to index
    %c0_60 = arith.constant 0 : index
    %c0_61 = arith.constant 0 : index
    %223 = vector.load %arg3[%222, %c0_60, %c0_61] : memref<2x32x96xbf16, #tpu.memory_space<vmem>>, vector<1x32x96xbf16>
    %224 = vector.shape_cast %223 : vector<1x32x96xbf16> to vector<32x96xbf16>
    %cst_62 = arith.constant dense<0.000000e+00> : vector<16x96xf32>
    %225 = tpu.matmul %210, %224, %cst_62 {dimension_numbers = #tpu.dot_dimension_numbers<[1], [0], [0], [1], [0, 0, 1, 1], [], []>} : vector<16x32xbf16>, vector<32x96xbf16>, vector<16x96xf32> -> vector<16x96xf32>
    %226 = vector.broadcast %214 : vector<1x96xf32> to vector<16x96xf32>
    %227 = arith.addf %225, %226 : vector<16x96xf32>
    %cst_63 = arith.constant 0.000000e+00 : f32
    %228 = vector.broadcast %cst_63 : f32 to vector<16x32xf32>
    %229 = vector.extract_strided_slice %227 {offsets = [0, 0], sizes = [16, 8], strides = [1, 1]} : vector<16x96xf32> to vector<16x8xf32>
    %230 = vector.shape_cast %229 : vector<16x8xf32> to vector<2x8x8xf32>
    %231 = arith.truncf %230 : vector<2x8x8xf32> to vector<2x8x8xbf16>
    %232 = vector.extract_strided_slice %227 {offsets = [0, 32], sizes = [16, 8], strides = [1, 1]} : vector<16x96xf32> to vector<16x8xf32>
    %233 = vector.shape_cast %232 : vector<16x8xf32> to vector<2x8x8xf32>
    %234 = arith.truncf %233 : vector<2x8x8xf32> to vector<2x8x8xbf16>
    %235 = vector.extract_strided_slice %227 {offsets = [0, 64], sizes = [16, 8], strides = [1, 1]} : vector<16x96xf32> to vector<16x8xf32>
    %236 = vector.shape_cast %235 : vector<16x8xf32> to vector<2x8x8xf32>
    %237 = arith.truncf %236 : vector<2x8x8xf32> to vector<2x8x8xbf16>
    "tpu.trace_start"() <{level = 10 : i32, message = "bqd,bkd->bqk"}> : () -> ()
    %cst_64 = arith.constant dense<0.000000e+00> : vector<2x8x8xf32>
    %238 = tpu.matmul %231, %234, %cst_64 {dimension_numbers = #tpu.dot_dimension_numbers<[2], [2], [1], [1], [0, 0, 0, 1, 1, 1], [0], [0]>} : vector<2x8x8xbf16>, vector<2x8x8xbf16>, vector<2x8x8xf32> -> vector<2x8x8xf32>
    "tpu.trace_stop"() : () -> ()
    %cst_65 = arith.constant dense<0xFF800000> : vector<2x8xf32>
    %239 = vector.multi_reduction <maximumf>, %238, %cst_65 [2] : vector<2x8x8xf32> to vector<2x8xf32>
    %240 = vector.shape_cast %239 : vector<2x8xf32> to vector<2x8x1xf32>
    %241 = vector.broadcast %240 : vector<2x8x1xf32> to vector<2x8x8xf32>
    %242 = arith.subf %238, %241 : vector<2x8x8xf32>
    %243 = math.exp %242 : vector<2x8x8xf32>
    %cst_66 = arith.constant dense<0.000000e+00> : vector<2x8xf32>
    %244 = vector.multi_reduction <add>, %243, %cst_66 [2] : vector<2x8x8xf32> to vector<2x8xf32>
    %245 = vector.shape_cast %244 : vector<2x8xf32> to vector<2x8x1xf32>
    %246 = tpu.reciprocal %245 {approx = true} : vector<2x8x1xf32> -> vector<2x8x1xf32>
    %247 = vector.broadcast %246 : vector<2x8x1xf32> to vector<2x8x8xf32>
    %248 = arith.mulf %243, %247 : vector<2x8x8xf32>
    %249 = arith.truncf %248 : vector<2x8x8xf32> to vector<2x8x8xbf16>
    "tpu.trace_start"() <{level = 10 : i32, message = "bqk,bkd->bqd"}> : () -> ()
    %cst_67 = arith.constant dense<0.000000e+00> : vector<2x8x8xf32>
    %250 = tpu.matmul %249, %237, %cst_67 {dimension_numbers = #tpu.dot_dimension_numbers<[2], [1], [1], [2], [0, 0, 0, 1, 1, 2], [0], [0]>} : vector<2x8x8xbf16>, vector<2x8x8xbf16>, vector<2x8x8xf32> -> vector<2x8x8xf32>
    "tpu.trace_stop"() : () -> ()
    %251 = vector.shape_cast %250 : vector<2x8x8xf32> to vector<16x8xf32>
    %252 = arith.truncf %251 : vector<16x8xf32> to vector<16x8xbf16>
    %c4_i32_68 = arith.constant 4 : i32
    %253 = arith.muli %c1_i32_57, %c4_i32_68 : i32
    %c0_i32_69 = arith.constant 0 : i32
    %254 = arith.addi %253, %c0_i32_69 : i32
    %255 = arith.index_cast %254 : i32 to index
    %c0_70 = arith.constant 0 : index
    %c0_71 = arith.constant 0 : index
    %256 = vector.load %arg4[%255, %c0_70, %c0_71] : memref<8x8x32xbf16, #tpu.memory_space<vmem>>, vector<1x8x32xbf16>
    %257 = vector.shape_cast %256 : vector<1x8x32xbf16> to vector<8x32xbf16>
    %cst_72 = arith.constant dense<0.000000e+00> : vector<16x32xf32>
    %258 = tpu.matmul %252, %257, %cst_72 {dimension_numbers = #tpu.dot_dimension_numbers<[1], [0], [0], [1], [0, 0, 1, 1], [], []>} : vector<16x8xbf16>, vector<8x32xbf16>, vector<16x32xf32> -> vector<16x32xf32>
    %259 = arith.addf %228, %258 : vector<16x32xf32>
    %260 = vector.extract_strided_slice %227 {offsets = [0, 8], sizes = [16, 8], strides = [1, 1]} : vector<16x96xf32> to vector<16x8xf32>
    %261 = vector.shape_cast %260 : vector<16x8xf32> to vector<2x8x8xf32>
    %262 = arith.truncf %261 : vector<2x8x8xf32> to vector<2x8x8xbf16>
    %263 = vector.extract_strided_slice %227 {offsets = [0, 40], sizes = [16, 8], strides = [1, 1]} : vector<16x96xf32> to vector<16x8xf32>
    %264 = vector.shape_cast %263 : vector<16x8xf32> to vector<2x8x8xf32>
    %265 = arith.truncf %264 : vector<2x8x8xf32> to vector<2x8x8xbf16>
    %266 = vector.extract_strided_slice %227 {offsets = [0, 72], sizes = [16, 8], strides = [1, 1]} : vector<16x96xf32> to vector<16x8xf32>
    %267 = vector.shape_cast %266 : vector<16x8xf32> to vector<2x8x8xf32>
    %268 = arith.truncf %267 : vector<2x8x8xf32> to vector<2x8x8xbf16>
    "tpu.trace_start"() <{level = 10 : i32, message = "bqd,bkd->bqk"}> : () -> ()
    %cst_73 = arith.constant dense<0.000000e+00> : vector<2x8x8xf32>
    %269 = tpu.matmul %262, %265, %cst_73 {dimension_numbers = #tpu.dot_dimension_numbers<[2], [2], [1], [1], [0, 0, 0, 1, 1, 1], [0], [0]>} : vector<2x8x8xbf16>, vector<2x8x8xbf16>, vector<2x8x8xf32> -> vector<2x8x8xf32>
    "tpu.trace_stop"() : () -> ()
    %cst_74 = arith.constant dense<0xFF800000> : vector<2x8xf32>
    %270 = vector.multi_reduction <maximumf>, %269, %cst_74 [2] : vector<2x8x8xf32> to vector<2x8xf32>
    %271 = vector.shape_cast %270 : vector<2x8xf32> to vector<2x8x1xf32>
    %272 = vector.broadcast %271 : vector<2x8x1xf32> to vector<2x8x8xf32>
    %273 = arith.subf %269, %272 : vector<2x8x8xf32>
    %274 = math.exp %273 : vector<2x8x8xf32>
    %cst_75 = arith.constant dense<0.000000e+00> : vector<2x8xf32>
    %275 = vector.multi_reduction <add>, %274, %cst_75 [2] : vector<2x8x8xf32> to vector<2x8xf32>
    %276 = vector.shape_cast %275 : vector<2x8xf32> to vector<2x8x1xf32>
    %277 = tpu.reciprocal %276 {approx = true} : vector<2x8x1xf32> -> vector<2x8x1xf32>
    %278 = vector.broadcast %277 : vector<2x8x1xf32> to vector<2x8x8xf32>
    %279 = arith.mulf %274, %278 : vector<2x8x8xf32>
    %280 = arith.truncf %279 : vector<2x8x8xf32> to vector<2x8x8xbf16>
    "tpu.trace_start"() <{level = 10 : i32, message = "bqk,bkd->bqd"}> : () -> ()
    %cst_76 = arith.constant dense<0.000000e+00> : vector<2x8x8xf32>
    %281 = tpu.matmul %280, %268, %cst_76 {dimension_numbers = #tpu.dot_dimension_numbers<[2], [1], [1], [2], [0, 0, 0, 1, 1, 2], [0], [0]>} : vector<2x8x8xbf16>, vector<2x8x8xbf16>, vector<2x8x8xf32> -> vector<2x8x8xf32>
    "tpu.trace_stop"() : () -> ()
    %282 = vector.shape_cast %281 : vector<2x8x8xf32> to vector<16x8xf32>
    %283 = arith.truncf %282 : vector<16x8xf32> to vector<16x8xbf16>
    %c4_i32_77 = arith.constant 4 : i32
    %284 = arith.muli %c1_i32_57, %c4_i32_77 : i32
    %c1_i32_78 = arith.constant 1 : i32
    %285 = arith.addi %284, %c1_i32_78 : i32
    %286 = arith.index_cast %285 : i32 to index
    %c0_79 = arith.constant 0 : index
    %c0_80 = arith.constant 0 : index
    %287 = vector.load %arg4[%286, %c0_79, %c0_80] : memref<8x8x32xbf16, #tpu.memory_space<vmem>>, vector<1x8x32xbf16>
    %288 = vector.shape_cast %287 : vector<1x8x32xbf16> to vector<8x32xbf16>
    %cst_81 = arith.constant dense<0.000000e+00> : vector<16x32xf32>
    %289 = tpu.matmul %283, %288, %cst_81 {dimension_numbers = #tpu.dot_dimension_numbers<[1], [0], [0], [1], [0, 0, 1, 1], [], []>} : vector<16x8xbf16>, vector<8x32xbf16>, vector<16x32xf32> -> vector<16x32xf32>
    %290 = arith.addf %259, %289 : vector<16x32xf32>
    %291 = vector.extract_strided_slice %227 {offsets = [0, 16], sizes = [16, 8], strides = [1, 1]} : vector<16x96xf32> to vector<16x8xf32>
    %292 = vector.shape_cast %291 : vector<16x8xf32> to vector<2x8x8xf32>
    %293 = arith.truncf %292 : vector<2x8x8xf32> to vector<2x8x8xbf16>
    %294 = vector.extract_strided_slice %227 {offsets = [0, 48], sizes = [16, 8], strides = [1, 1]} : vector<16x96xf32> to vector<16x8xf32>
    %295 = vector.shape_cast %294 : vector<16x8xf32> to vector<2x8x8xf32>
    %296 = arith.truncf %295 : vector<2x8x8xf32> to vector<2x8x8xbf16>
    %297 = vector.extract_strided_slice %227 {offsets = [0, 80], sizes = [16, 8], strides = [1, 1]} : vector<16x96xf32> to vector<16x8xf32>
    %298 = vector.shape_cast %297 : vector<16x8xf32> to vector<2x8x8xf32>
    %299 = arith.truncf %298 : vector<2x8x8xf32> to vector<2x8x8xbf16>
    "tpu.trace_start"() <{level = 10 : i32, message = "bqd,bkd->bqk"}> : () -> ()
    %cst_82 = arith.constant dense<0.000000e+00> : vector<2x8x8xf32>
    %300 = tpu.matmul %293, %296, %cst_82 {dimension_numbers = #tpu.dot_dimension_numbers<[2], [2], [1], [1], [0, 0, 0, 1, 1, 1], [0], [0]>} : vector<2x8x8xbf16>, vector<2x8x8xbf16>, vector<2x8x8xf32> -> vector<2x8x8xf32>
    "tpu.trace_stop"() : () -> ()
    %cst_83 = arith.constant dense<0xFF800000> : vector<2x8xf32>
    %301 = vector.multi_reduction <maximumf>, %300, %cst_83 [2] : vector<2x8x8xf32> to vector<2x8xf32>
    %302 = vector.shape_cast %301 : vector<2x8xf32> to vector<2x8x1xf32>
    %303 = vector.broadcast %302 : vector<2x8x1xf32> to vector<2x8x8xf32>
    %304 = arith.subf %300, %303 : vector<2x8x8xf32>
    %305 = math.exp %304 : vector<2x8x8xf32>
    %cst_84 = arith.constant dense<0.000000e+00> : vector<2x8xf32>
    %306 = vector.multi_reduction <add>, %305, %cst_84 [2] : vector<2x8x8xf32> to vector<2x8xf32>
    %307 = vector.shape_cast %306 : vector<2x8xf32> to vector<2x8x1xf32>
    %308 = tpu.reciprocal %307 {approx = true} : vector<2x8x1xf32> -> vector<2x8x1xf32>
    %309 = vector.broadcast %308 : vector<2x8x1xf32> to vector<2x8x8xf32>
    %310 = arith.mulf %305, %309 : vector<2x8x8xf32>
    %311 = arith.truncf %310 : vector<2x8x8xf32> to vector<2x8x8xbf16>
    "tpu.trace_start"() <{level = 10 : i32, message = "bqk,bkd->bqd"}> : () -> ()
    %cst_85 = arith.constant dense<0.000000e+00> : vector<2x8x8xf32>
    %312 = tpu.matmul %311, %299, %cst_85 {dimension_numbers = #tpu.dot_dimension_numbers<[2], [1], [1], [2], [0, 0, 0, 1, 1, 2], [0], [0]>} : vector<2x8x8xbf16>, vector<2x8x8xbf16>, vector<2x8x8xf32> -> vector<2x8x8xf32>
    "tpu.trace_stop"() : () -> ()
    %313 = vector.shape_cast %312 : vector<2x8x8xf32> to vector<16x8xf32>
    %314 = arith.truncf %313 : vector<16x8xf32> to vector<16x8xbf16>
    %c4_i32_86 = arith.constant 4 : i32
    %315 = arith.muli %c1_i32_57, %c4_i32_86 : i32
    %c2_i32_87 = arith.constant 2 : i32
    %316 = arith.addi %315, %c2_i32_87 : i32
    %317 = arith.index_cast %316 : i32 to index
    %c0_88 = arith.constant 0 : index
    %c0_89 = arith.constant 0 : index
    %318 = vector.load %arg4[%317, %c0_88, %c0_89] : memref<8x8x32xbf16, #tpu.memory_space<vmem>>, vector<1x8x32xbf16>
    %319 = vector.shape_cast %318 : vector<1x8x32xbf16> to vector<8x32xbf16>
    %cst_90 = arith.constant dense<0.000000e+00> : vector<16x32xf32>
    %320 = tpu.matmul %314, %319, %cst_90 {dimension_numbers = #tpu.dot_dimension_numbers<[1], [0], [0], [1], [0, 0, 1, 1], [], []>} : vector<16x8xbf16>, vector<8x32xbf16>, vector<16x32xf32> -> vector<16x32xf32>
    %321 = arith.addf %290, %320 : vector<16x32xf32>
    %322 = vector.extract_strided_slice %227 {offsets = [0, 24], sizes = [16, 8], strides = [1, 1]} : vector<16x96xf32> to vector<16x8xf32>
    %323 = vector.shape_cast %322 : vector<16x8xf32> to vector<2x8x8xf32>
    %324 = arith.truncf %323 : vector<2x8x8xf32> to vector<2x8x8xbf16>
    %325 = vector.extract_strided_slice %227 {offsets = [0, 56], sizes = [16, 8], strides = [1, 1]} : vector<16x96xf32> to vector<16x8xf32>
    %326 = vector.shape_cast %325 : vector<16x8xf32> to vector<2x8x8xf32>
    %327 = arith.truncf %326 : vector<2x8x8xf32> to vector<2x8x8xbf16>
    %328 = vector.extract_strided_slice %227 {offsets = [0, 88], sizes = [16, 8], strides = [1, 1]} : vector<16x96xf32> to vector<16x8xf32>
    %329 = vector.shape_cast %328 : vector<16x8xf32> to vector<2x8x8xf32>
    %330 = arith.truncf %329 : vector<2x8x8xf32> to vector<2x8x8xbf16>
    "tpu.trace_start"() <{level = 10 : i32, message = "bqd,bkd->bqk"}> : () -> ()
    %cst_91 = arith.constant dense<0.000000e+00> : vector<2x8x8xf32>
    %331 = tpu.matmul %324, %327, %cst_91 {dimension_numbers = #tpu.dot_dimension_numbers<[2], [2], [1], [1], [0, 0, 0, 1, 1, 1], [0], [0]>} : vector<2x8x8xbf16>, vector<2x8x8xbf16>, vector<2x8x8xf32> -> vector<2x8x8xf32>
    "tpu.trace_stop"() : () -> ()
    %cst_92 = arith.constant dense<0xFF800000> : vector<2x8xf32>
    %332 = vector.multi_reduction <maximumf>, %331, %cst_92 [2] : vector<2x8x8xf32> to vector<2x8xf32>
    %333 = vector.shape_cast %332 : vector<2x8xf32> to vector<2x8x1xf32>
    %334 = vector.broadcast %333 : vector<2x8x1xf32> to vector<2x8x8xf32>
    %335 = arith.subf %331, %334 : vector<2x8x8xf32>
    %336 = math.exp %335 : vector<2x8x8xf32>
    %cst_93 = arith.constant dense<0.000000e+00> : vector<2x8xf32>
    %337 = vector.multi_reduction <add>, %336, %cst_93 [2] : vector<2x8x8xf32> to vector<2x8xf32>
    %338 = vector.shape_cast %337 : vector<2x8xf32> to vector<2x8x1xf32>
    %339 = tpu.reciprocal %338 {approx = true} : vector<2x8x1xf32> -> vector<2x8x1xf32>
    %340 = vector.broadcast %339 : vector<2x8x1xf32> to vector<2x8x8xf32>
    %341 = arith.mulf %336, %340 : vector<2x8x8xf32>
    %342 = arith.truncf %341 : vector<2x8x8xf32> to vector<2x8x8xbf16>
    "tpu.trace_start"() <{level = 10 : i32, message = "bqk,bkd->bqd"}> : () -> ()
    %cst_94 = arith.constant dense<0.000000e+00> : vector<2x8x8xf32>
    %343 = tpu.matmul %342, %330, %cst_94 {dimension_numbers = #tpu.dot_dimension_numbers<[2], [1], [1], [2], [0, 0, 0, 1, 1, 2], [0], [0]>} : vector<2x8x8xbf16>, vector<2x8x8xbf16>, vector<2x8x8xf32> -> vector<2x8x8xf32>
    "tpu.trace_stop"() : () -> ()
    %344 = vector.shape_cast %343 : vector<2x8x8xf32> to vector<16x8xf32>
    %345 = arith.truncf %344 : vector<16x8xf32> to vector<16x8xbf16>
    %c4_i32_95 = arith.constant 4 : i32
    %346 = arith.muli %c1_i32_57, %c4_i32_95 : i32
    %c3_i32_96 = arith.constant 3 : i32
    %347 = arith.addi %346, %c3_i32_96 : i32
    %348 = arith.index_cast %347 : i32 to index
    %c0_97 = arith.constant 0 : index
    %c0_98 = arith.constant 0 : index
    %349 = vector.load %arg4[%348, %c0_97, %c0_98] : memref<8x8x32xbf16, #tpu.memory_space<vmem>>, vector<1x8x32xbf16>
    %350 = vector.shape_cast %349 : vector<1x8x32xbf16> to vector<8x32xbf16>
    %cst_99 = arith.constant dense<0.000000e+00> : vector<16x32xf32>
    %351 = tpu.matmul %345, %350, %cst_99 {dimension_numbers = #tpu.dot_dimension_numbers<[1], [0], [0], [1], [0, 0, 1, 1], [], []>} : vector<16x8xbf16>, vector<8x32xbf16>, vector<16x32xf32> -> vector<16x32xf32>
    %352 = arith.addf %321, %351 : vector<16x32xf32>
    %353 = vector.broadcast %215 : vector<1x32xf32> to vector<16x32xf32>
    %354 = arith.addf %352, %353 : vector<16x32xf32>
    %355 = arith.addf %209, %354 : vector<16x32xf32>
    %cst_100 = arith.constant dense<0.000000e+00> : vector<16xf32>
    %356 = vector.multi_reduction <add>, %355, %cst_100 [1] : vector<16x32xf32> to vector<16xf32>
    %357 = vector.shape_cast %356 : vector<16xf32> to vector<16x1xf32>
    %cst_101 = arith.constant 3.200000e+01 : f32
    %358 = vector.broadcast %cst_101 : f32 to vector<16x1xf32>
    %359 = arith.divf %357, %358 : vector<16x1xf32>
    %360 = vector.broadcast %359 : vector<16x1xf32> to vector<16x32xf32>
    %361 = arith.subf %355, %360 : vector<16x32xf32>
    %362 = arith.mulf %361, %361 : vector<16x32xf32>
    %cst_102 = arith.constant dense<0.000000e+00> : vector<16xf32>
    %363 = vector.multi_reduction <add>, %362, %cst_102 [1] : vector<16x32xf32> to vector<16xf32>
    %364 = vector.shape_cast %363 : vector<16xf32> to vector<16x1xf32>
    %cst_103 = arith.constant 3.200000e+01 : f32
    %365 = vector.broadcast %cst_103 : f32 to vector<16x1xf32>
    %366 = arith.divf %364, %365 : vector<16x1xf32>
    %367 = vector.broadcast %359 : vector<16x1xf32> to vector<16x32xf32>
    %368 = arith.subf %355, %367 : vector<16x32xf32>
    %cst_104 = arith.constant 9.99999974E-6 : f32
    %369 = vector.broadcast %cst_104 : f32 to vector<16x1xf32>
    %370 = arith.addf %366, %369 : vector<16x1xf32>
    %371 = math.rsqrt %370 : vector<16x1xf32>
    %372 = vector.broadcast %371 : vector<16x1xf32> to vector<16x32xf32>
    %373 = arith.mulf %368, %372 : vector<16x32xf32>
    %374 = vector.broadcast %218 : vector<1x32xf32> to vector<16x32xf32>
    %375 = arith.mulf %373, %374 : vector<16x32xf32>
    %376 = vector.broadcast %219 : vector<1x32xf32> to vector<16x32xf32>
    %377 = arith.addf %375, %376 : vector<16x32xf32>
    %378 = arith.truncf %377 : vector<16x32xf32> to vector<16x32xbf16>
    %379 = arith.index_cast %c1_i32_57 : i32 to index
    %c0_105 = arith.constant 0 : index
    %c0_106 = arith.constant 0 : index
    %380 = vector.load %arg5[%379, %c0_105, %c0_106] : memref<2x32x64xbf16, #tpu.memory_space<vmem>>, vector<1x32x64xbf16>
    %381 = vector.shape_cast %380 : vector<1x32x64xbf16> to vector<32x64xbf16>
    %cst_107 = arith.constant dense<0.000000e+00> : vector<16x64xf32>
    %382 = tpu.matmul %378, %381, %cst_107 {dimension_numbers = #tpu.dot_dimension_numbers<[1], [0], [0], [1], [0, 0, 1, 1], [], []>} : vector<16x32xbf16>, vector<32x64xbf16>, vector<16x64xf32> -> vector<16x64xf32>
    %383 = vector.broadcast %216 : vector<1x64xf32> to vector<16x64xf32>
    %384 = arith.addf %382, %383 : vector<16x64xf32>
    %cst_108 = arith.constant 0.000000e+00 : f32
    %385 = vector.broadcast %cst_108 : f32 to vector<16x64xf32>
    %386 = arith.maximumf %384, %385 : vector<16x64xf32>
    %387 = arith.truncf %386 : vector<16x64xf32> to vector<16x64xbf16>
    %388 = arith.index_cast %c1_i32_57 : i32 to index
    %c0_109 = arith.constant 0 : index
    %c0_110 = arith.constant 0 : index
    %389 = vector.load %arg6[%388, %c0_109, %c0_110] : memref<2x64x32xbf16, #tpu.memory_space<vmem>>, vector<1x64x32xbf16>
    %390 = vector.shape_cast %389 : vector<1x64x32xbf16> to vector<64x32xbf16>
    %cst_111 = arith.constant dense<0.000000e+00> : vector<16x32xf32>
    %391 = tpu.matmul %387, %390, %cst_111 {dimension_numbers = #tpu.dot_dimension_numbers<[1], [0], [0], [1], [0, 0, 1, 1], [], []>} : vector<16x64xbf16>, vector<64x32xbf16>, vector<16x32xf32> -> vector<16x32xf32>
    %392 = vector.broadcast %217 : vector<1x32xf32> to vector<16x32xf32>
    %393 = arith.addf %391, %392 : vector<16x32xf32>
    %394 = arith.addf %377, %393 : vector<16x32xf32>
    %cst_112 = arith.constant dense<0.000000e+00> : vector<16xf32>
    %395 = vector.multi_reduction <add>, %394, %cst_112 [1] : vector<16x32xf32> to vector<16xf32>
    %396 = vector.shape_cast %395 : vector<16xf32> to vector<16x1xf32>
    %cst_113 = arith.constant 3.200000e+01 : f32
    %397 = vector.broadcast %cst_113 : f32 to vector<16x1xf32>
    %398 = arith.divf %396, %397 : vector<16x1xf32>
    %399 = vector.broadcast %398 : vector<16x1xf32> to vector<16x32xf32>
    %400 = arith.subf %394, %399 : vector<16x32xf32>
    %401 = arith.mulf %400, %400 : vector<16x32xf32>
    %cst_114 = arith.constant dense<0.000000e+00> : vector<16xf32>
    %402 = vector.multi_reduction <add>, %401, %cst_114 [1] : vector<16x32xf32> to vector<16xf32>
    %403 = vector.shape_cast %402 : vector<16xf32> to vector<16x1xf32>
    %cst_115 = arith.constant 3.200000e+01 : f32
    %404 = vector.broadcast %cst_115 : f32 to vector<16x1xf32>
    %405 = arith.divf %403, %404 : vector<16x1xf32>
    %406 = vector.broadcast %398 : vector<16x1xf32> to vector<16x32xf32>
    %407 = arith.subf %394, %406 : vector<16x32xf32>
    %cst_116 = arith.constant 9.99999974E-6 : f32
    %408 = vector.broadcast %cst_116 : f32 to vector<16x1xf32>
    %409 = arith.addf %405, %408 : vector<16x1xf32>
    %410 = math.rsqrt %409 : vector<16x1xf32>
    %411 = vector.broadcast %410 : vector<16x1xf32> to vector<16x32xf32>
    %412 = arith.mulf %407, %411 : vector<16x32xf32>
    %413 = vector.broadcast %220 : vector<1x32xf32> to vector<16x32xf32>
    %414 = arith.mulf %412, %413 : vector<16x32xf32>
    %415 = vector.broadcast %221 : vector<1x32xf32> to vector<16x32xf32>
    %416 = arith.addf %414, %415 : vector<16x32xf32>
    %c2_i32_117 = arith.constant 2 : i32
    %417 = vector.extract_strided_slice %416 {offsets = [7, 0], sizes = [1, 32], strides = [1, 1]} : vector<16x32xf32> to vector<1x32xf32>
    %c0_118 = arith.constant 0 : index
    %c0_119 = arith.constant 0 : index
    %418 = vector.load %arg11[%c0_118, %c0_119] : memref<2x32xf32, #tpu.memory_space<vmem>>, vector<1x32xf32>
    tpu.vector_store %arg11[%c0_118, %c0_119], %417 {strides = array<i32>} : memref<2x32xf32, #tpu.memory_space<vmem>>, vector<1x32xf32>,
    %419 = vector.extract_strided_slice %416 {offsets = [15, 0], sizes = [1, 32], strides = [1, 1]} : vector<16x32xf32> to vector<1x32xf32>
    %c1 = arith.constant 1 : index
    %c0_120 = arith.constant 0 : index
    %420 = vector.load %arg11[%c1, %c0_120] : memref<2x32xf32, #tpu.memory_space<vmem>>, vector<1x32xf32>
    tpu.vector_store %arg11[%c1, %c0_120], %419 {strides = array<i32>} : memref<2x32xf32, #tpu.memory_space<vmem>>, vector<1x32xf32>,
    %c0_121 = arith.constant 0 : index
    %c0_122 = arith.constant 0 : index
    %421 = vector.load %arg11[%c0_121, %c0_122] : memref<2x32xf32, #tpu.memory_space<vmem>>, vector<2x32xf32>
    %422 = arith.truncf %421 : vector<2x32xf32> to vector<2x32xbf16>
    %c0_123 = arith.constant 0 : index
    %c0_124 = arith.constant 0 : index
    %423 = vector.load %arg8[%c0_123, %c0_124] : memref<32x32xbf16, #tpu.memory_space<vmem>>, vector<32x32xbf16>
    %cst_125 = arith.constant dense<0.000000e+00> : vector<2x32xf32>
    %424 = tpu.matmul %422, %423, %cst_125 {dimension_numbers = #tpu.dot_dimension_numbers<[1], [0], [0], [1], [0, 0, 1, 1], [], []>} : vector<2x32xbf16>, vector<32x32xbf16>, vector<2x32xf32> -> vector<2x32xf32>
    %c0_126 = arith.constant 0 : index
    %c0_127 = arith.constant 0 : index
    %425 = vector.load %arg9[%c0_126, %c0_127] : memref<1x32xf32, #tpu.memory_space<vmem>>, vector<1x32xf32>
    %426 = vector.broadcast %425 : vector<1x32xf32> to vector<2x32xf32>
    %427 = arith.addf %424, %426 : vector<2x32xf32>
    %428 = arith.negf %427 : vector<2x32xf32>
    %429 = math.exp %428 : vector<2x32xf32>
    %cst_128 = arith.constant 1.000000e+00 : f32
    %430 = vector.broadcast %cst_128 : f32 to vector<2x32xf32>
    %431 = arith.addf %430, %429 : vector<2x32xf32>
    %432 = arith.divf %430, %431 : vector<2x32xf32>
    %c0_129 = arith.constant 0 : index
    %c0_130 = arith.constant 0 : index
    %433 = vector.load %arg10[%c0_129, %c0_130] : memref<2x32xf32, #tpu.memory_space<vmem>>, vector<2x32xf32>
    tpu.vector_store %arg10[%c0_129, %c0_130], %432 {strides = array<i32>} : memref<2x32xf32, #tpu.memory_space<vmem>>, vector<2x32xf32>,
    return
  }
  func.func @transform_0(%arg0: i32) -> (i32, i32) {
    %c0_i32 = arith.constant 0 : i32
    %c0_i32_0 = arith.constant 0 : i32
    %c0_i32_1 = arith.constant 0 : i32
    return %c0_i32, %c0_i32_0 : i32, i32
  }
  func.func @transform_1(%arg0: i32) -> (i32, i32) {
    %c0_i32 = arith.constant 0 : i32
    %c0_i32_0 = arith.constant 0 : i32
    %c0_i32_1 = arith.constant 0 : i32
    return %c0_i32, %c0_i32_0 : i32, i32
  }
  func.func @transform_2(%arg0: i32) -> (i32, i32, i32) {
    %c0_i32 = arith.constant 0 : i32
    %c0_i32_0 = arith.constant 0 : i32
    %c0_i32_1 = arith.constant 0 : i32
    %c0_i32_2 = arith.constant 0 : i32
    return %c0_i32, %c0_i32_0, %c0_i32_1 : i32, i32, i32
  }
  func.func @transform_3(%arg0: i32) -> (i32, i32, i32) {
    %c0_i32 = arith.constant 0 : i32
    %c0_i32_0 = arith.constant 0 : i32
    %c0_i32_1 = arith.constant 0 : i32
    %c0_i32_2 = arith.constant 0 : i32
    return %c0_i32, %c0_i32_0, %c0_i32_1 : i32, i32, i32
  }
  func.func @transform_4(%arg0: i32) -> (i32, i32, i32) {
    %c0_i32 = arith.constant 0 : i32
    %c0_i32_0 = arith.constant 0 : i32
    %c0_i32_1 = arith.constant 0 : i32
    %c0_i32_2 = arith.constant 0 : i32
    return %c0_i32, %c0_i32_0, %c0_i32_1 : i32, i32, i32
  }
  func.func @transform_5(%arg0: i32) -> (i32, i32, i32) {
    %c0_i32 = arith.constant 0 : i32
    %c0_i32_0 = arith.constant 0 : i32
    %c0_i32_1 = arith.constant 0 : i32
    %c0_i32_2 = arith.constant 0 : i32
    return %c0_i32, %c0_i32_0, %c0_i32_1 : i32, i32, i32
  }
  func.func @transform_6(%arg0: i32) -> (i32, i32, i32) {
    %c0_i32 = arith.constant 0 : i32
    %c0_i32_0 = arith.constant 0 : i32
    %c0_i32_1 = arith.constant 0 : i32
    %c0_i32_2 = arith.constant 0 : i32
    return %c0_i32, %c0_i32_0, %c0_i32_1 : i32, i32, i32
  }
  func.func @transform_7(%arg0: i32) -> (i32, i32) {
    %c0_i32 = arith.constant 0 : i32
    %c0_i32_0 = arith.constant 0 : i32
    %c0_i32_1 = arith.constant 0 : i32
    return %c0_i32, %c0_i32_0 : i32, i32
  }
  func.func @transform_8(%arg0: i32) -> (i32, i32) {
    %c0_i32 = arith.constant 0 : i32
    %c0_i32_0 = arith.constant 0 : i32
    %c0_i32_1 = arith.constant 0 : i32
    return %c0_i32, %c0_i32_0 : i32, i32
  }
  func.func @transform_9(%arg0: i32) -> (i32, i32) {
    %c0_i32 = arith.constant 0 : i32
    %c0_i32_0 = arith.constant 0 : i32
    %c0_i32_1 = arith.constant 0 : i32
    return %c0_i32, %c0_i32_0 : i32, i32
  }
}

</mosaic_0001>

<llo_original>
// kernel: tpu_custom_call.1
$region0: #{tpu_custom_call.1}
  #allocation0 [shape = 'u32[]', space=smem, size = 0x4, offset = 0x4, fixed_abs, tag = 'smem constant byte address 0x4 - core index']
  #allocation1 [shape = 'u32[144,128]{1,0:T(1,128)}', space=vmem, size = 0x12000, scoped, tag = 'internal scratch']
  #allocation2 [shape = 'f32[2,32]{1,0:T(2,128)}', space=vmem, size = 0x400, scoped, tag = 'scratch operand']
  %s0 = inlined_call_operand.hbm [shape: f32[16,32], index: 0, kind: input, shape index: {}]
  %s1 = inlined_call_operand.hbm [shape: f32[16,32], index: 1, kind: input, shape index: {}]
  %s2 = inlined_call_operand.vmem [shape: bf16[2,32,96], index: 2, kind: input, shape index: {}]
  %s3 = inlined_call_operand.vmem [shape: bf16[8,8,32], index: 3, kind: input, shape index: {}]
  %s4 = inlined_call_operand.vmem [shape: bf16[2,32,64], index: 4, kind: input, shape index: {}]
  %s5 = inlined_call_operand.vmem [shape: bf16[2,64,32], index: 5, kind: input, shape index: {}]
  %s6 = inlined_call_operand.vmem [shape: f32[2,8,96], index: 6, kind: input, shape index: {}]
  %s7 = inlined_call_operand.hbm [shape: bf16[32,32], index: 7, kind: input, shape index: {}]
  %s8 = inlined_call_operand.vmem [shape: f32[1,32], index: 8, kind: input, shape index: {}]
  %s9 = inlined_call_operand.hbm [shape: f32[2,32], index: 9, kind: output, shape index: {}]
  %s10 = sld [smem:[#allocation0]]
  $region58: #{tpu_custom_call.1} parent=0
    _
  %s12 = ssub.s32 1, %s10
  %s13 = scalar_select 0, %s12, %s10
  $region1: #{tpu_custom_call.1} parent=0
    #allocation3 [shape = 'u8[8192]{0}', space=vmem, size = 0x2000, scoped, tag = 'input window, operand 0, single buffered']
    #allocation4 [shape = 's32[1]{0}', space=sflag, size = 0x4, scoped, tag = 'scoped memory for tpu_custom_call.1']
    #allocation5 [shape = 's32[1]{0}', space=sflag, size = 0x4, scoped, tag = 'scoped memory for tpu_custom_call.1']
    #allocation6 [shape = 'u8[8192]{0}', space=vmem, size = 0x2000, scoped, tag = 'input window, operand 1, single buffered']
    #allocation7 [shape = 's32[1]{0}', space=sflag, size = 0x4, scoped, tag = 'scoped memory for tpu_custom_call.1']
    #allocation8 [shape = 'u8[8192]{0}', space=vmem, size = 0x2000, scoped, tag = 'input window, operand 7, single buffered']
    #allocation9 [shape = 'u8[1024]{0}', space=vmem, size = 0x400, scoped, tag = 'output window, operand 0, single buffered']
    %14 = vsyncpa [#allocation4], 0
    %15 = vsyncpa [#allocation7], 0
    %16 = vsyncpa [#allocation5], 0
    // Predicated region
    $region2: #{tpu_custom_call.1} parent=1 // pred_check
      _
    $region3: #{tpu_custom_call.1} parent=1 // pred_check_branch
      %18 = sbr.rel (0) target = $region5
    $region4: #{tpu_custom_call.1} parent=1 // pred_region
      %s20 = ssub.s32 256, 256
      %21 = vsyncadd [#allocation4], %s20
      %s22 = sshll.u32 [#allocation3], 4
      %s23 = int_to_ptr.vmem [resolvable:$true] %s22
      %28 = dma.hbm_to_vmem [thread:$0]  %s0, 256, %s23, [#allocation4], 128, 128, 8
    $region5: #{tpu_custom_call.1} parent=1 // pred_fallthru
      _
    // Predicated region
    $region6: #{tpu_custom_call.1} parent=1 // pred_check
      _
    $region7: #{tpu_custom_call.1} parent=1 // pred_check_branch
      %30 = sbr.rel (0) target = $region9
    $region8: #{tpu_custom_call.1} parent=1 // pred_region
      %s32 = ssub.s32 256, 256
      %33 = vsyncadd [#allocation7], %s32
      %s34 = sshll.u32 [#allocation6], 4
      %s35 = int_to_ptr.vmem [resolvable:$true] %s34
      %40 = dma.hbm_to_vmem [thread:$0]  %s1, 256, %s35, [#allocation7], 128, 128, 8
    $region9: #{tpu_custom_call.1} parent=1 // pred_fallthru
      _
    // Predicated region
    $region10: #{tpu_custom_call.1} parent=1 // pred_check
      _
    $region11: #{tpu_custom_call.1} parent=1 // pred_check_branch
      %42 = sbr.rel (0) target = $region13
    $region12: #{tpu_custom_call.1} parent=1 // pred_region
      _
    $region13: #{tpu_custom_call.1} parent=1 // pred_fallthru
      _
    // Predicated region
    $region14: #{tpu_custom_call.1} parent=1 // pred_check
      _
    $region15: #{tpu_custom_call.1} parent=1 // pred_check_branch
      %44 = sbr.rel (0) target = $region17
    $region16: #{tpu_custom_call.1} parent=1 // pred_region
      _
    $region17: #{tpu_custom_call.1} parent=1 // pred_fallthru
      _
    // Predicated region
    $region18: #{tpu_custom_call.1} parent=1 // pred_check
      _
    $region19: #{tpu_custom_call.1} parent=1 // pred_check_branch
      %46 = sbr.rel (0) target = $region21
    $region20: #{tpu_custom_call.1} parent=1 // pred_region
      _
    $region21: #{tpu_custom_call.1} parent=1 // pred_fallthru
      _
    // Predicated region
    $region22: #{tpu_custom_call.1} parent=1 // pred_check
      _
    $region23: #{tpu_custom_call.1} parent=1 // pred_check_branch
      %48 = sbr.rel (0) target = $region25
    $region24: #{tpu_custom_call.1} parent=1 // pred_region
      _
    $region25: #{tpu_custom_call.1} parent=1 // pred_fallthru
      _
    // Predicated region
    $region26: #{tpu_custom_call.1} parent=1 // pred_check
      _
    $region27: #{tpu_custom_call.1} parent=1 // pred_check_branch
      %50 = sbr.rel (0) target = $region29
    $region28: #{tpu_custom_call.1} parent=1 // pred_region
      _
    $region29: #{tpu_custom_call.1} parent=1 // pred_fallthru
      _
    // Predicated region
    $region30: #{tpu_custom_call.1} parent=1 // pred_check
      _
    $region31: #{tpu_custom_call.1} parent=1 // pred_check_branch
      %52 = sbr.rel (0) target = $region33
    $region32: #{tpu_custom_call.1} parent=1 // pred_region
      %s54 = ssub.s32 256, 256
      %55 = vsyncadd [#allocation7], %s54
      %s56 = sshll.u32 [#allocation8], 4
      %s57 = int_to_ptr.vmem [resolvable:$true] %s56
      %62 = dma.hbm_to_vmem [thread:$0]  %s7, 256, %s57, [#allocation7], 64, 64, 4
    $region33: #{tpu_custom_call.1} parent=1 // pred_fallthru
      _
    // Predicated region
    $region34: #{tpu_custom_call.1} parent=1 // pred_check
      _
    $region35: #{tpu_custom_call.1} parent=1 // pred_check_branch
      %64 = sbr.rel (0) target = $region37
    $region36: #{tpu_custom_call.1} parent=1 // pred_region
      _
    $region37: #{tpu_custom_call.1} parent=1 // pred_fallthru
      _
    // Predicated region
    $region38: #{tpu_custom_call.1} parent=1 // pred_check
      _
    $region39: #{tpu_custom_call.1} parent=1 // pred_check_branch
      %66 = sbr.rel (0) target = $region41
    $region40: #{tpu_custom_call.1} parent=1 // pred_region
      %67 = dma.done [#allocation4], 256
    $region41: #{tpu_custom_call.1} parent=1 // pred_fallthru
      _
    // Predicated region
    $region42: #{tpu_custom_call.1} parent=1 // pred_check
      _
    $region43: #{tpu_custom_call.1} parent=1 // pred_check_branch
      %69 = sbr.rel (0) target = $region45
    $region44: #{tpu_custom_call.1} parent=1 // pred_region
      %70 = dma.done [#allocation7], 256
    $region45: #{tpu_custom_call.1} parent=1 // pred_fallthru
      _
    // Predicated region
    $region46: #{tpu_custom_call.1} parent=1 // pred_check
      _
    $region47: #{tpu_custom_call.1} parent=1 // pred_check_branch
      %72 = sbr.rel (0) target = $region49
    $region48: #{tpu_custom_call.1} parent=1 // pred_region
      %73 = dma.done [#allocation7], 256
    $region49: #{tpu_custom_call.1} parent=1 // pred_fallthru
      _
    %v75 = vld [vmem:[#allocation3] sm:$0xff]
    %v76 = vld [vmem:[#allocation3 + $0x8] sm:$0xff]
    %v77 = vld [vmem:[#allocation6] sm:$0xff]
    %v78 = vld [vmem:[#allocation6 + $0x8] sm:$0xff]
    %v79 = vadd.f32 %v75, %v77
    %v80 = vadd.f32 %v76, %v78
    %v81 = vpack.c.bf16 %v80, %v79
    %v82 = vld [vmem:[%s6] sm:$0xff]
    %v83 = vld [vmem:[%s2] sm:$0xf]
    %v84 = vld [vmem:[%s2 + $0x4] sm:$0xf]
    %v85 = vld [vmem:[%s2 + $0x8] sm:$0xf]
    %v86 = vld [vmem:[%s2 + $0xc] sm:$0xf]
    %v87 = vlaneseq
    %v88 = vshrl.u32 %v87, 7
    %v89 = vsub.s32 0, %v88
    %v90 = vrot.slane %v82, %v89
    %v95 = vunpack.c.l.b16 %v83
    %v96 = vunpack.c.l.b16 %v84
    %v97 = vunpack.c.l.b16 %v85
    %v98 = vunpack.c.l.b16 %v86
    %v99 = vpack.c.b16 %v96, %v95
    %v100 = vpack.c.b16 %v98, %v97
    %vm103 = vcmask 261120
    %v105 = vsel %vm103, %v81, 0
    %107 = vmatprep.subr.bf16.mxu0 0
    %108 = vmatpush1.bf16.msra.mxu0 %v99
    %109 = vmatprep.subr.bf16.mxu0 0
    %110 = vmatpush1.bf16.msra.mxu0 %v100
    %111 = vmatprep.subr.bf16.mxu0 0
    %112 = vmatpush1.bf16.msra.mxu0 0
    %113 = vmatprep.subr.bf16.mxu0 0
    %114 = vmatpush1.bf16.msra.mxu0 0
    %115 = vmatprep.subr.bf16.mxu0 0
    %116 = vmatpush1.bf16.msra.mxu0 0
    %117 = vmatprep.subr.bf16.mxu0 0
    %118 = vmatpush1.bf16.msra.mxu0 0
    %119 = vmatprep.subr.bf16.mxu0 0
    %120 = vmatpush1.bf16.msra.mxu0 0
    %121 = vmatprep.subr.bf16.mxu0 0
    %122 = vmatpush1.bf16.msra.mxu0 0
    %123 = vmatprep.subr.bf16.mxu0 0
    %124 = vmatpush1.bf16.msra.mxu0 0
    %125 = vmatprep.subr.bf16.mxu0 0
    %126 = vmatpush1.bf16.msra.mxu0 0
    %127 = vmatprep.subr.bf16.mxu0 0
    %128 = vmatpush1.bf16.msra.mxu0 0
    %129 = vmatprep.subr.bf16.mxu0 0
    %130 = vmatpush1.bf16.msra.mxu0 0
    %131 = vmatprep.subr.bf16.mxu0 0
    %132 = vmatpush1.bf16.msra.mxu0 0
    %133 = vmatprep.subr.bf16.mxu0 0
    %134 = vmatpush1.bf16.msra.mxu0 0
    %135 = vmatprep.subr.bf16.mxu0 0
    %136 = vmatpush1.bf16.msra.mxu0 0
    %137 = vmatprep.subr.bf16.mxu0 0
    %138 = vmatpush1.bf16.msra.mxu0 0
    %139 = vmatprep.mubr.bf16.mxu0 0
    %140 = vmatmul.mubr.bf16.gmra.mrb[0].mxu0 %v105
    %v141 = vpop.f32.mrb[0].mxu0
    %v142 = vadd.f32 %v90, %v141
    %v143 = vpop.f32.mrb[0].mxu0
    %v144 = vpop.f32.mrb[0].mxu0
    %v145 = vadd.f32 %v90, %v144
    %v146 = vpop.f32.mrb[0].mxu0
    %147 = vdwg.mxu0
    %v148 = vpack.c.bf16 %v142, %v142
    %v149 = vpack.c.bf16 %v145, %v145
    %151 = vrot.lane.b32.xlu0 %v148, 96
    %v152 = vpop.permute.xlu0 %151
    %vm153 = vcmask 64512
    %v155 = vsel %vm153, %v148, 0
    %v158 = vsel %vm153, %v152, 0
    %160 = vmatprep.subr.bf16.mxu0 0
    %161 = vmatpush1.bf16.xpose.msra.mxu0 %v158
    %162 = vmatprep.subr.bf16.mxu0 0
    %163 = vmatpush1.bf16.xpose.msra.mxu0 0
    %164 = vmatprep.subr.bf16.mxu0 0
    %165 = vmatpush1.bf16.xpose.msra.mxu0 0
    %166 = vmatprep.subr.bf16.mxu0 0
    %167 = vmatpush1.bf16.xpose.msra.mxu0 0
    %168 = vmatprep.subr.bf16.mxu0 0
    %169 = vmatpush1.bf16.xpose.msra.mxu0 0
    %170 = vmatprep.subr.bf16.mxu0 0
    %171 = vmatpush1.bf16.xpose.msra.mxu0 0
    %172 = vmatprep.subr.bf16.mxu0 0
    %173 = vmatpush1.bf16.xpose.msra.mxu0 0
    %174 = vmatprep.subr.bf16.mxu0 0
    %175 = vmatpush1.bf16.xpose.msra.mxu0 0
    %176 = vmatprep.subr.bf16.mxu0 0
    %177 = vmatpush1.bf16.xpose.msra.mxu0 0
    %178 = vmatprep.subr.bf16.mxu0 0
    %179 = vmatpush1.bf16.xpose.msra.mxu0 0
    %180 = vmatprep.subr.bf16.mxu0 0
    %181 = vmatpush1.bf16.xpose.msra.mxu0 0
    %182 = vmatprep.subr.bf16.mxu0 0
    %183 = vmatpush1.bf16.xpose.msra.mxu0 0
    %184 = vmatprep.subr.bf16.mxu0 0
    %185 = vmatpush1.bf16.xpose.msra.mxu0 0
    %186 = vmatprep.subr.bf16.mxu0 0
    %187 = vmatpush1.bf16.xpose.msra.mxu0 0
    %188 = vmatprep.subr.bf16.mxu0 0
    %189 = vmatpush1.bf16.xpose.msra.mxu0 0
    %190 = vmatprep.subr.bf16.mxu0 0
    %191 = vmatpush1.bf16.xpose.msra.mxu0 0
    %192 = vmatprep.mubr.bf16.mxu0 0
    %193 = vmatmul.mubr.bf16.gmra.mrb[0].mxu0 %v155
    %v194 = vpop.f32.mrb[0].mxu0
    %v195 = vadd.f32 0.0, %v194
    %v196 = vpop.f32.mrb[0].mxu0
    %v197 = vpop.f32.mrb[0].mxu0
    %v198 = vpop.f32.mrb[0].mxu0
    %199 = vdwg.mxu0
    %201 = vrot.lane.b32.xlu0 %v149, 96
    %v202 = vpop.permute.xlu0 %201
    %v204 = vsel %vm153, %v149, 0
    %v207 = vsel %vm153, %v202, 0
    %209 = vmatprep.subr.bf16.mxu0 0
    %210 = vmatpush1.bf16.xpose.msra.mxu0 %v207
    %211 = vmatprep.subr.bf16.mxu0 0
    %212 = vmatpush1.bf16.xpose.msra.mxu0 0
    %213 = vmatprep.subr.bf16.mxu0 0
    %214 = vmatpush1.bf16.xpose.msra.mxu0 0
    %215 = vmatprep.subr.bf16.mxu0 0
    %216 = vmatpush1.bf16.xpose.msra.mxu0 0
    %217 = vmatprep.subr.bf16.mxu0 0
    %218 = vmatpush1.bf16.xpose.msra.mxu0 0
    %219 = vmatprep.subr.bf16.mxu0 0
    %220 = vmatpush1.bf16.xpose.msra.mxu0 0
    %221 = vmatprep.subr.bf16.mxu0 0
    %222 = vmatpush1.bf16.xpose.msra.mxu0 0
    %223 = vmatprep.subr.bf16.mxu0 0
    %224 = vmatpush1.bf16.xpose.msra.mxu0 0
    %225 = vmatprep.subr.bf16.mxu0 0
    %226 = vmatpush1.bf16.xpose.msra.mxu0 0
    %227 = vmatprep.subr.bf16.mxu0 0
    %228 = vmatpush1.bf16.xpose.msra.mxu0 0
    %229 = vmatprep.subr.bf16.mxu0 0
    %230 = vmatpush1.bf16.xpose.msra.mxu0 0
    %231 = vmatprep.subr.bf16.mxu0 0
    %232 = vmatpush1.bf16.xpose.msra.mxu0 0
    %233 = vmatprep.subr.bf16.mxu0 0
    %234 = vmatpush1.bf16.xpose.msra.mxu0 0
    %235 = vmatprep.subr.bf16.mxu0 0
    %236 = vmatpush1.bf16.xpose.msra.mxu0 0
    %237 = vmatprep.subr.bf16.mxu0 0
    %238 = vmatpush1.bf16.xpose.msra.mxu0 0
    %239 = vmatprep.subr.bf16.mxu0 0
    %240 = vmatpush1.bf16.xpose.msra.mxu0 0
    %241 = vmatprep.mubr.bf16.mxu0 0
    %242 = vmatmul.mubr.bf16.gmra.mrb[0].mxu0 %v204
    %v243 = vpop.f32.mrb[0].mxu0
    %v244 = vadd.f32 0.0, %v243
    %v245 = vpop.f32.mrb[0].mxu0
    %v246 = vpop.f32.mrb[0].mxu0
    %v247 = vpop.f32.mrb[0].mxu0
    %248 = vdwg.mxu0
    %v249 = vsel %vm153, %v195, -inf
    %250 = vmax.xlane.f32.xlu0 %v249
    %v251 = vpop.xlane.xlu0 %250
    %v252 = vsel %vm153, %v244, -inf
    %253 = vmax.xlane.f32.xlu0 %v252
    %v254 = vpop.xlane.xlu0 %253
    %v255 = vsub.f32 %v195, %v251
    %v256 = vsub.f32 %v244, %v254
    %v257 = vmul.f32 %v255, 1.442695
    %v258 = vpow.pop %v257
    %v259 = vmul.f32 %v256, 1.442695
    %v260 = vpow.pop %v259
    %v261 = vsel %vm153, %v258, 0.0
    %262 = vadd.xlane.f32.xlu0 %v261
    %v263 = vpop.xlane.xlu0 %262
    %v264 = vsel %vm153, %v260, 0.0
    %265 = vadd.xlane.f32.xlu0 %v264
    %v266 = vpop.xlane.xlu0 %265
    %v267 = vrcp.pop %v263
    %v268 = vrcp.pop %v266
    %v269 = vmul.f32 %v258, %v267
    %v270 = vmul.f32 %v260, %v268
    %v271 = vpack.c.bf16 %v269, %v269
    %v272 = vpack.c.bf16 %v270, %v270
    %273 = vrot.lane.b32.xlu0 %v148, 64
    %v274 = vpop.permute.xlu0 %273
    %v276 = vsel %vm153, %v271, 0
    %vm278 = vcmask 1043456
    %v280 = vsel %vm278, %v274, 0
    %282 = vmatprep.subr.bf16.mxu0 0
    %283 = vmatpush1.bf16.msra.mxu0 %v280
    %284 = vmatprep.subr.bf16.mxu0 0
    %285 = vmatpush1.bf16.msra.mxu0 0
    %286 = vmatprep.subr.bf16.mxu0 0
    %287 = vmatpush1.bf16.msra.mxu0 0
    %288 = vmatprep.subr.bf16.mxu0 0
    %289 = vmatpush1.bf16.msra.mxu0 0
    %290 = vmatprep.subr.bf16.mxu0 0
    %291 = vmatpush1.bf16.msra.mxu0 0
    %292 = vmatprep.subr.bf16.mxu0 0
    %293 = vmatpush1.bf16.msra.mxu0 0
    %294 = vmatprep.subr.bf16.mxu0 0
    %295 = vmatpush1.bf16.msra.mxu0 0
    %296 = vmatprep.subr.bf16.mxu0 0
    %297 = vmatpush1.bf16.msra.mxu0 0
    %298 = vmatprep.subr.bf16.mxu0 0
    %299 = vmatpush1.bf16.msra.mxu0 0
    %300 = vmatprep.subr.bf16.mxu0 0
    %301 = vmatpush1.bf16.msra.mxu0 0
    %302 = vmatprep.subr.bf16.mxu0 0
    %303 = vmatpush1.bf16.msra.mxu0 0
    %304 = vmatprep.subr.bf16.mxu0 0
    %305 = vmatpush1.bf16.msra.mxu0 0
    %306 = vmatprep.subr.bf16.mxu0 0
    %307 = vmatpush1.bf16.msra.mxu0 0
    %308 = vmatprep.subr.bf16.mxu0 0
    %309 = vmatpush1.bf16.msra.mxu0 0
    %310 = vmatprep.subr.bf16.mxu0 0
    %311 = vmatpush1.bf16.msra.mxu0 0
    %312 = vmatprep.subr.bf16.mxu0 0
    %313 = vmatpush1.bf16.msra.mxu0 0
    %314 = vmatprep.mubr.bf16.mxu0 0
    %315 = vmatmul.mubr.bf16.gmra.mrb[0].mxu0 %v276
    %v316 = vpop.f32.mrb[0].mxu0
    %v317 = vadd.f32 0.0, %v316
    %v318 = vpop.f32.mrb[0].mxu0
    %v319 = vpop.f32.mrb[0].mxu0
    %v320 = vpop.f32.mrb[0].mxu0
    %321 = vdwg.mxu0
    %322 = vrot.lane.b32.xlu0 %v149, 64
    %v323 = vpop.permute.xlu0 %322
    %v325 = vsel %vm153, %v272, 0
    %v328 = vsel %vm278, %v323, 0
    %330 = vmatprep.subr.bf16.mxu0 0
    %331 = vmatpush1.bf16.msra.mxu0 %v328
    %332 = vmatprep.subr.bf16.mxu0 0
    %333 = vmatpush1.bf16.msra.mxu0 0
    %334 = vmatprep.subr.bf16.mxu0 0
    %335 = vmatpush1.bf16.msra.mxu0 0
    %336 = vmatprep.subr.bf16.mxu0 0
    %337 = vmatpush1.bf16.msra.mxu0 0
    %338 = vmatprep.subr.bf16.mxu0 0
    %339 = vmatpush1.bf16.msra.mxu0 0
    %340 = vmatprep.subr.bf16.mxu0 0
    %341 = vmatpush1.bf16.msra.mxu0 0
    %342 = vmatprep.subr.bf16.mxu0 0
    %343 = vmatpush1.bf16.msra.mxu0 0
    %344 = vmatprep.subr.bf16.mxu0 0
    %345 = vmatpush1.bf16.msra.mxu0 0
    %346 = vmatprep.subr.bf16.mxu0 0
    %347 = vmatpush1.bf16.msra.mxu0 0
    %348 = vmatprep.subr.bf16.mxu0 0
    %349 = vmatpush1.bf16.msra.mxu0 0
    %350 = vmatprep.subr.bf16.mxu0 0
    %351 = vmatpush1.bf16.msra.mxu0 0
    %352 = vmatprep.subr.bf16.mxu0 0
    %353 = vmatpush1.bf16.msra.mxu0 0
    %354 = vmatprep.subr.bf16.mxu0 0
    %355 = vmatpush1.bf16.msra.mxu0 0
    %356 = vmatprep.subr.bf16.mxu0 0
    %357 = vmatpush1.bf16.msra.mxu0 0
    %358 = vmatprep.subr.bf16.mxu0 0
    %359 = vmatpush1.bf16.msra.mxu0 0
    %360 = vmatprep.subr.bf16.mxu0 0
    %361 = vmatpush1.bf16.msra.mxu0 0
    %362 = vmatprep.mubr.bf16.mxu0 0
    %363 = vmatmul.mubr.bf16.gmra.mrb[0].mxu0 %v325
    %v364 = vpop.f32.mrb[0].mxu0
    %v365 = vadd.f32 0.0, %v364
    %v366 = vpop.f32.mrb[0].mxu0
    %v367 = vpop.f32.mrb[0].mxu0
    %v368 = vpop.f32.mrb[0].mxu0
    %369 = vdwg.mxu0
    %v370 = vpack.c.bf16 %v365, %v317
    %v371 = vld [vmem:[%s3] sm:$0xf]
    %372 = vrot.lane.b32.xlu0 %v148, 120
    %v373 = vpop.permute.xlu0 %372
    %374 = vrot.lane.b32.xlu0 %v148, 88
    %v375 = vpop.permute.xlu0 %374
    %v377 = vsel %vm153, %v373, 0
    %v380 = vsel %vm153, %v375, 0
    %382 = vmatprep.subr.bf16.mxu0 0
    %383 = vmatpush1.bf16.xpose.msra.mxu0 %v380
    %384 = vmatprep.subr.bf16.mxu0 0
    %385 = vmatpush1.bf16.xpose.msra.mxu0 0
    %386 = vmatprep.subr.bf16.mxu0 0
    %387 = vmatpush1.bf16.xpose.msra.mxu0 0
    %388 = vmatprep.subr.bf16.mxu0 0
    %389 = vmatpush1.bf16.xpose.msra.mxu0 0
    %390 = vmatprep.subr.bf16.mxu0 0
    %391 = vmatpush1.bf16.xpose.msra.mxu0 0
    %392 = vmatprep.subr.bf16.mxu0 0
    %393 = vmatpush1.bf16.xpose.msra.mxu0 0
    %394 = vmatprep.subr.bf16.mxu0 0
    %395 = vmatpush1.bf16.xpose.msra.mxu0 0
    %396 = vmatprep.subr.bf16.mxu0 0
    %397 = vmatpush1.bf16.xpose.msra.mxu0 0
    %398 = vmatprep.subr.bf16.mxu0 0
    %399 = vmatpush1.bf16.xpose.msra.mxu0 0
    %400 = vmatprep.subr.bf16.mxu0 0
    %401 = vmatpush1.bf16.xpose.msra.mxu0 0
    %402 = vmatprep.subr.bf16.mxu0 0
    %403 = vmatpush1.bf16.xpose.msra.mxu0 0
    %404 = vmatprep.subr.bf16.mxu0 0
    %405 = vmatpush1.bf16.xpose.msra.mxu0 0
    %406 = vmatprep.subr.bf16.mxu0 0
    %407 = vmatpush1.bf16.xpose.msra.mxu0 0
    %408 = vmatprep.subr.bf16.mxu0 0
    %409 = vmatpush1.bf16.xpose.msra.mxu0 0
    %410 = vmatprep.subr.bf16.mxu0 0
    %411 = vmatpush1.bf16.xpose.msra.mxu0 0
    %412 = vmatprep.subr.bf16.mxu0 0
    %413 = vmatpush1.bf16.xpose.msra.mxu0 0
    %414 = vmatprep.mubr.bf16.mxu0 0
    %415 = vmatmul.mubr.bf16.gmra.mrb[0].mxu0 %v377
    %v416 = vpop.f32.mrb[0].mxu0
    %v417 = vadd.f32 0.0, %v416
    %v418 = vpop.f32.mrb[0].mxu0
    %v419 = vpop.f32.mrb[0].mxu0
    %v420 = vpop.f32.mrb[0].mxu0
    %421 = vdwg.mxu0
    %422 = vrot.lane.b32.xlu0 %v149, 120
    %v423 = vpop.permute.xlu0 %422
    %424 = vrot.lane.b32.xlu0 %v149, 88
    %v425 = vpop.permute.xlu0 %424
    %v427 = vsel %vm153, %v423, 0
    %v430 = vsel %vm153, %v425, 0
    %432 = vmatprep.subr.bf16.mxu0 0
    %433 = vmatpush1.bf16.xpose.msra.mxu0 %v430
    %434 = vmatprep.subr.bf16.mxu0 0
    %435 = vmatpush1.bf16.xpose.msra.mxu0 0
    %436 = vmatprep.subr.bf16.mxu0 0
    %437 = vmatpush1.bf16.xpose.msra.mxu0 0
    %438 = vmatprep.subr.bf16.mxu0 0
    %439 = vmatpush1.bf16.xpose.msra.mxu0 0
    %440 = vmatprep.subr.bf16.mxu0 0
    %441 = vmatpush1.bf16.xpose.msra.mxu0 0
    %442 = vmatprep.subr.bf16.mxu0 0
    %443 = vmatpush1.bf16.xpose.msra.mxu0 0
    %444 = vmatprep.subr.bf16.mxu0 0
    %445 = vmatpush1.bf16.xpose.msra.mxu0 0
    %446 = vmatprep.subr.bf16.mxu0 0
    %447 = vmatpush1.bf16.xpose.msra.mxu0 0
    %448 = vmatprep.subr.bf16.mxu0 0
    %449 = vmatpush1.bf16.xpose.msra.mxu0 0
    %450 = vmatprep.subr.bf16.mxu0 0
    %451 = vmatpush1.bf16.xpose.msra.mxu0 0
    %452 = vmatprep.subr.bf16.mxu0 0
    %453 = vmatpush1.bf16.xpose.msra.mxu0 0
    %454 = vmatprep.subr.bf16.mxu0 0
    %455 = vmatpush1.bf16.xpose.msra.mxu0 0
    %456 = vmatprep.subr.bf16.mxu0 0
    %457 = vmatpush1.bf16.xpose.msra.mxu0 0
    %458 = vmatprep.subr.bf16.mxu0 0
    %459 = vmatpush1.bf16.xpose.msra.mxu0 0
    %460 = vmatprep.subr.bf16.mxu0 0
    %461 = vmatpush1.bf16.xpose.msra.mxu0 0
    %462 = vmatprep.subr.bf16.mxu0 0
    %463 = vmatpush1.bf16.xpose.msra.mxu0 0
    %464 = vmatprep.mubr.bf16.mxu0 0
    %465 = vmatmul.mubr.bf16.gmra.mrb[0].mxu0 %v427
    %v466 = vpop.f32.mrb[0].mxu0
    %v467 = vadd.f32 0.0, %v466
    %v468 = vpop.f32.mrb[0].mxu0
    %v469 = vpop.f32.mrb[0].mxu0
    %v470 = vpop.f32.mrb[0].mxu0
    %471 = vdwg.mxu0
    %v472 = vsel %vm153, %v417, -inf
    %473 = vmax.xlane.f32.xlu0 %v472
    %v474 = vpop.xlane.xlu0 %473
    %v475 = vsel %vm153, %v467, -inf
    %476 = vmax.xlane.f32.xlu0 %v475
    %v477 = vpop.xlane.xlu0 %476
    %v478 = vsub.f32 %v417, %v474
    %v479 = vsub.f32 %v467, %v477
    %v480 = vmul.f32 %v478, 1.442695
    %v481 = vpow.pop %v480
    %v482 = vmul.f32 %v479, 1.442695
    %v483 = vpow.pop %v482
    %v484 = vsel %vm153, %v481, 0.0
    %485 = vadd.xlane.f32.xlu0 %v484
    %v486 = vpop.xlane.xlu0 %485
    %v487 = vsel %vm153, %v483, 0.0
    %488 = vadd.xlane.f32.xlu0 %v487
    %v489 = vpop.xlane.xlu0 %488
    %v490 = vrcp.pop %v486
    %v491 = vrcp.pop %v489
    %v492 = vmul.f32 %v481, %v490
    %v493 = vmul.f32 %v483, %v491
    %v494 = vpack.c.bf16 %v492, %v492
    %v495 = vpack.c.bf16 %v493, %v493
    %496 = vrot.lane.b32.xlu0 %v148, 56
    %v497 = vpop.permute.xlu0 %496
    %v499 = vsel %vm153, %v494, 0
    %v502 = vsel %vm278, %v497, 0
    %504 = vmatprep.subr.bf16.mxu0 0
    %505 = vmatpush1.bf16.msra.mxu0 %v502
    %506 = vmatprep.subr.bf16.mxu0 0
    %507 = vmatpush1.bf16.msra.mxu0 0
    %508 = vmatprep.subr.bf16.mxu0 0
    %509 = vmatpush1.bf16.msra.mxu0 0
    %510 = vmatprep.subr.bf16.mxu0 0
    %511 = vmatpush1.bf16.msra.mxu0 0
    %512 = vmatprep.subr.bf16.mxu0 0
    %513 = vmatpush1.bf16.msra.mxu0 0
    %514 = vmatprep.subr.bf16.mxu0 0
    %515 = vmatpush1.bf16.msra.mxu0 0
    %516 = vmatprep.subr.bf16.mxu0 0
    %517 = vmatpush1.bf16.msra.mxu0 0
    %518 = vmatprep.subr.bf16.mxu0 0
    %519 = vmatpush1.bf16.msra.mxu0 0
    %520 = vmatprep.subr.bf16.mxu0 0
    %521 = vmatpush1.bf16.msra.mxu0 0
    %522 = vmatprep.subr.bf16.mxu0 0
    %523 = vmatpush1.bf16.msra.mxu0 0
    %524 = vmatprep.subr.bf16.mxu0 0
    %525 = vmatpush1.bf16.msra.mxu0 0
    %526 = vmatprep.subr.bf16.mxu0 0
    %527 = vmatpush1.bf16.msra.mxu0 0
    %528 = vmatprep.subr.bf16.mxu0 0
    %529 = vmatpush1.bf16.msra.mxu0 0
    %530 = vmatprep.subr.bf16.mxu0 0
    %531 = vmatpush1.bf16.msra.mxu0 0
    %532 = vmatprep.subr.bf16.mxu0 0
    %533 = vmatpush1.bf16.msra.mxu0 0
    %534 = vmatprep.subr.bf16.mxu0 0
    %535 = vmatpush1.bf16.msra.mxu0 0
    %536 = vmatprep.mubr.bf16.mxu0 0
    %537 = vmatmul.mubr.bf16.gmra.mrb[0].mxu0 %v499
    %v538 = vpop.f32.mrb[0].mxu0
    %v539 = vadd.f32 0.0, %v538
    %v540 = vpop.f32.mrb[0].mxu0
    %v541 = vpop.f32.mrb[0].mxu0
    %v542 = vpop.f32.mrb[0].mxu0
    %543 = vdwg.mxu0
    %544 = vrot.lane.b32.xlu0 %v149, 56
    %v545 = vpop.permute.xlu0 %544
    %v547 = vsel %vm153, %v495, 0
    %v550 = vsel %vm278, %v545, 0
    %552 = vmatprep.subr.bf16.mxu0 0
    %553 = vmatpush1.bf16.msra.mxu0 %v550
    %554 = vmatprep.subr.bf16.mxu0 0
    %555 = vmatpush1.bf16.msra.mxu0 0
    %556 = vmatprep.subr.bf16.mxu0 0
    %557 = vmatpush1.bf16.msra.mxu0 0
    %558 = vmatprep.subr.bf16.mxu0 0
    %559 = vmatpush1.bf16.msra.mxu0 0
    %560 = vmatprep.subr.bf16.mxu0 0
    %561 = vmatpush1.bf16.msra.mxu0 0
    %562 = vmatprep.subr.bf16.mxu0 0
    %563 = vmatpush1.bf16.msra.mxu0 0
    %564 = vmatprep.subr.bf16.mxu0 0
    %565 = vmatpush1.bf16.msra.mxu0 0
    %566 = vmatprep.subr.bf16.mxu0 0
    %567 = vmatpush1.bf16.msra.mxu0 0
    %568 = vmatprep.subr.bf16.mxu0 0
    %569 = vmatpush1.bf16.msra.mxu0 0
    %570 = vmatprep.subr.bf16.mxu0 0
    %571 = vmatpush1.bf16.msra.mxu0 0
    %572 = vmatprep.subr.bf16.mxu0 0
    %573 = vmatpush1.bf16.msra.mxu0 0
    %574 = vmatprep.subr.bf16.mxu0 0
    %575 = vmatpush1.bf16.msra.mxu0 0
    %576 = vmatprep.subr.bf16.mxu0 0
    %577 = vmatpush1.bf16.msra.mxu0 0
    %578 = vmatprep.subr.bf16.mxu0 0
    %579 = vmatpush1.bf16.msra.mxu0 0
    %580 = vmatprep.subr.bf16.mxu0 0
    %581 = vmatpush1.bf16.msra.mxu0 0
    %582 = vmatprep.subr.bf16.mxu0 0
    %583 = vmatpush1.bf16.msra.mxu0 0
    %584 = vmatprep.mubr.bf16.mxu0 0
    %585 = vmatmul.mubr.bf16.gmra.mrb[0].mxu0 %v547
    %v586 = vpop.f32.mrb[0].mxu0
    %v587 = vadd.f32 0.0, %v586
    %v588 = vpop.f32.mrb[0].mxu0
    %v589 = vpop.f32.mrb[0].mxu0
    %v590 = vpop.f32.mrb[0].mxu0
    %591 = vdwg.mxu0
    %v592 = vpack.c.bf16 %v587, %v539
    %s593 = scalar_lea.vmem %s3, 4
    %v594 = vld [vmem:[%s593] sm:$0xf]
    %v596 = vsel %vm153, %v592, 0
    %v599 = vsel %vm278, %v594, 0
    %601 = vmatprep.subr.bf16.mxu0 0
    %602 = vmatpush1.bf16.msra.mxu0 %v599
    %603 = vmatprep.subr.bf16.mxu0 0
    %604 = vmatpush1.bf16.msra.mxu0 0
    %605 = vmatprep.subr.bf16.mxu0 0
    %606 = vmatpush1.bf16.msra.mxu0 0
    %607 = vmatprep.subr.bf16.mxu0 0
    %608 = vmatpush1.bf16.msra.mxu0 0
    %609 = vmatprep.subr.bf16.mxu0 0
    %610 = vmatpush1.bf16.msra.mxu0 0
    %611 = vmatprep.subr.bf16.mxu0 0
    %612 = vmatpush1.bf16.msra.mxu0 0
    %613 = vmatprep.subr.bf16.mxu0 0
    %614 = vmatpush1.bf16.msra.mxu0 0
    %615 = vmatprep.subr.bf16.mxu0 0
    %616 = vmatpush1.bf16.msra.mxu0 0
    %617 = vmatprep.subr.bf16.mxu0 0
    %618 = vmatpush1.bf16.msra.mxu0 0
    %619 = vmatprep.subr.bf16.mxu0 0
    %620 = vmatpush1.bf16.msra.mxu0 0
    %621 = vmatprep.subr.bf16.mxu0 0
    %622 = vmatpush1.bf16.msra.mxu0 0
    %623 = vmatprep.subr.bf16.mxu0 0
    %624 = vmatpush1.bf16.msra.mxu0 0
    %625 = vmatprep.subr.bf16.mxu0 0
    %626 = vmatpush1.bf16.msra.mxu0 0
    %627 = vmatprep.subr.bf16.mxu0 0
    %628 = vmatpush1.bf16.msra.mxu0 0
    %629 = vmatprep.subr.bf16.mxu0 0
    %630 = vmatpush1.bf16.msra.mxu0 0
    %631 = vmatprep.subr.bf16.mxu0 0
    %632 = vmatpush1.bf16.msra.mxu0 0
    %633 = vmatprep.mubr.bf16.mxu0 0
    %634 = vmatmul.mubr.bf16.gmra.mrb[0].mxu0 %v596
    %v635 = vpop.f32.mrb[0].mxu0
    %v636 = vadd.f32 0.0, %v635
    %v637 = vpop.f32.mrb[0].mxu0
    %v638 = vpop.f32.mrb[0].mxu0
    %v639 = vadd.f32 0.0, %v638
    %v640 = vpop.f32.mrb[0].mxu0
    %641 = vdwg.mxu0
    %v643 = vsel %vm153, %v370, 0
    %v646 = vsel %vm278, %v371, 0
    %648 = vmatprep.subr.bf16.mxu0 0
    %649 = vmatpush1.bf16.msra.mxu0 %v646
    %650 = vmatprep.subr.bf16.mxu0 0
    %651 = vmatpush1.bf16.msra.mxu0 0
    %652 = vmatprep.subr.bf16.mxu0 0
    %653 = vmatpush1.bf16.msra.mxu0 0
    %654 = vmatprep.subr.bf16.mxu0 0
    %655 = vmatpush1.bf16.msra.mxu0 0
    %656 = vmatprep.subr.bf16.mxu0 0
    %657 = vmatpush1.bf16.msra.mxu0 0
    %658 = vmatprep.subr.bf16.mxu0 0
    %659 = vmatpush1.bf16.msra.mxu0 0
    %660 = vmatprep.subr.bf16.mxu0 0
    %661 = vmatpush1.bf16.msra.mxu0 0
    %662 = vmatprep.subr.bf16.mxu0 0
    %663 = vmatpush1.bf16.msra.mxu0 0
    %664 = vmatprep.subr.bf16.mxu0 0
    %665 = vmatpush1.bf16.msra.mxu0 0
    %666 = vmatprep.subr.bf16.mxu0 0
    %667 = vmatpush1.bf16.msra.mxu0 0
    %668 = vmatprep.subr.bf16.mxu0 0
    %669 = vmatpush1.bf16.msra.mxu0 0
    %670 = vmatprep.subr.bf16.mxu0 0
    %671 = vmatpush1.bf16.msra.mxu0 0
    %672 = vmatprep.subr.bf16.mxu0 0
    %673 = vmatpush1.bf16.msra.mxu0 0
    %674 = vmatprep.subr.bf16.mxu0 0
    %675 = vmatpush1.bf16.msra.mxu0 0
    %676 = vmatprep.subr.bf16.mxu0 0
    %677 = vmatpush1.bf16.msra.mxu0 0
    %678 = vmatprep.subr.bf16.mxu0 0
    %679 = vmatpush1.bf16.msra.mxu0 0
    %680 = vmatprep.mubr.bf16.mxu0 0
    %681 = vmatmul.mubr.bf16.gmra.mrb[0].mxu0 %v643
    %v682 = vpop.f32.mrb[0].mxu0
    %v683 = vadd.f32 %v636, %v682
    %v684 = vpop.f32.mrb[0].mxu0
    %v685 = vpop.f32.mrb[0].mxu0
    %v686 = vadd.f32 %v639, %v685
    %v687 = vpop.f32.mrb[0].mxu0
    %688 = vdwg.mxu0
    %689 = vrot.lane.b32.xlu0 %v148, 112
    %v690 = vpop.permute.xlu0 %689
    %691 = vrot.lane.b32.xlu0 %v148, 80
    %v692 = vpop.permute.xlu0 %691
    %v694 = vsel %vm153, %v690, 0
    %v697 = vsel %vm153, %v692, 0
    %699 = vmatprep.subr.bf16.mxu0 0
    %700 = vmatpush1.bf16.xpose.msra.mxu0 %v697
    %701 = vmatprep.subr.bf16.mxu0 0
    %702 = vmatpush1.bf16.xpose.msra.mxu0 0
    %703 = vmatprep.subr.bf16.mxu0 0
    %704 = vmatpush1.bf16.xpose.msra.mxu0 0
    %705 = vmatprep.subr.bf16.mxu0 0
    %706 = vmatpush1.bf16.xpose.msra.mxu0 0
    %707 = vmatprep.subr.bf16.mxu0 0
    %708 = vmatpush1.bf16.xpose.msra.mxu0 0
    %709 = vmatprep.subr.bf16.mxu0 0
    %710 = vmatpush1.bf16.xpose.msra.mxu0 0
    %711 = vmatprep.subr.bf16.mxu0 0
    %712 = vmatpush1.bf16.xpose.msra.mxu0 0
    %713 = vmatprep.subr.bf16.mxu0 0
    %714 = vmatpush1.bf16.xpose.msra.mxu0 0
    %715 = vmatprep.subr.bf16.mxu0 0
    %716 = vmatpush1.bf16.xpose.msra.mxu0 0
    %717 = vmatprep.subr.bf16.mxu0 0
    %718 = vmatpush1.bf16.xpose.msra.mxu0 0
    %719 = vmatprep.subr.bf16.mxu0 0
    %720 = vmatpush1.bf16.xpose.msra.mxu0 0
    %721 = vmatprep.subr.bf16.mxu0 0
    %722 = vmatpush1.bf16.xpose.msra.mxu0 0
    %723 = vmatprep.subr.bf16.mxu0 0
    %724 = vmatpush1.bf16.xpose.msra.mxu0 0
    %725 = vmatprep.subr.bf16.mxu0 0
    %726 = vmatpush1.bf16.xpose.msra.mxu0 0
    %727 = vmatprep.subr.bf16.mxu0 0
    %728 = vmatpush1.bf16.xpose.msra.mxu0 0
    %729 = vmatprep.subr.bf16.mxu0 0
    %730 = vmatpush1.bf16.xpose.msra.mxu0 0
    %731 = vmatprep.mubr.bf16.mxu0 0
    %732 = vmatmul.mubr.bf16.gmra.mrb[0].mxu0 %v694
    %v733 = vpop.f32.mrb[0].mxu0
    %v734 = vadd.f32 0.0, %v733
    %v735 = vpop.f32.mrb[0].mxu0
    %v736 = vpop.f32.mrb[0].mxu0
    %v737 = vpop.f32.mrb[0].mxu0
    %738 = vdwg.mxu0
    %739 = vrot.lane.b32.xlu0 %v149, 112
    %v740 = vpop.permute.xlu0 %739
    %741 = vrot.lane.b32.xlu0 %v149, 80
    %v742 = vpop.permute.xlu0 %741
    %v744 = vsel %vm153, %v740, 0
    %v747 = vsel %vm153, %v742, 0
    %749 = vmatprep.subr.bf16.mxu0 0
    %750 = vmatpush1.bf16.xpose.msra.mxu0 %v747
    %751 = vmatprep.subr.bf16.mxu0 0
    %752 = vmatpush1.bf16.xpose.msra.mxu0 0
    %753 = vmatprep.subr.bf16.mxu0 0
    %754 = vmatpush1.bf16.xpose.msra.mxu0 0
    %755 = vmatprep.subr.bf16.mxu0 0
    %756 = vmatpush1.bf16.xpose.msra.mxu0 0
    %757 = vmatprep.subr.bf16.mxu0 0
    %758 = vmatpush1.bf16.xpose.msra.mxu0 0
    %759 = vmatprep.subr.bf16.mxu0 0
    %760 = vmatpush1.bf16.xpose.msra.mxu0 0
    %761 = vmatprep.subr.bf16.mxu0 0
    %762 = vmatpush1.bf16.xpose.msra.mxu0 0
    %763 = vmatprep.subr.bf16.mxu0 0
    %764 = vmatpush1.bf16.xpose.msra.mxu0 0
    %765 = vmatprep.subr.bf16.mxu0 0
    %766 = vmatpush1.bf16.xpose.msra.mxu0 0
    %767 = vmatprep.subr.bf16.mxu0 0
    %768 = vmatpush1.bf16.xpose.msra.mxu0 0
    %769 = vmatprep.subr.bf16.mxu0 0
    %770 = vmatpush1.bf16.xpose.msra.mxu0 0
    %771 = vmatprep.subr.bf16.mxu0 0
    %772 = vmatpush1.bf16.xpose.msra.mxu0 0
    %773 = vmatprep.subr.bf16.mxu0 0
    %774 = vmatpush1.bf16.xpose.msra.mxu0 0
    %775 = vmatprep.subr.bf16.mxu0 0
    %776 = vmatpush1.bf16.xpose.msra.mxu0 0
    %777 = vmatprep.subr.bf16.mxu0 0
    %778 = vmatpush1.bf16.xpose.msra.mxu0 0
    %779 = vmatprep.subr.bf16.mxu0 0
    %780 = vmatpush1.bf16.xpose.msra.mxu0 0
    %781 = vmatprep.mubr.bf16.mxu0 0
    %782 = vmatmul.mubr.bf16.gmra.mrb[0].mxu0 %v744
    %v783 = vpop.f32.mrb[0].mxu0
    %v784 = vadd.f32 0.0, %v783
    %v785 = vpop.f32.mrb[0].mxu0
    %v786 = vpop.f32.mrb[0].mxu0
    %v787 = vpop.f32.mrb[0].mxu0
    %788 = vdwg.mxu0
    %v789 = vsel %vm153, %v734, -inf
    %790 = vmax.xlane.f32.xlu0 %v789
    %v791 = vpop.xlane.xlu0 %790
    %v792 = vsel %vm153, %v784, -inf
    %793 = vmax.xlane.f32.xlu0 %v792
    %v794 = vpop.xlane.xlu0 %793
    %v795 = vsub.f32 %v734, %v791
    %v796 = vsub.f32 %v784, %v794
    %v797 = vmul.f32 %v795, 1.442695
    %v798 = vpow.pop %v797
    %v799 = vmul.f32 %v796, 1.442695
    %v800 = vpow.pop %v799
    %v801 = vsel %vm153, %v798, 0.0
    %802 = vadd.xlane.f32.xlu0 %v801
    %v803 = vpop.xlane.xlu0 %802
    %v804 = vsel %vm153, %v800, 0.0
    %805 = vadd.xlane.f32.xlu0 %v804
    %v806 = vpop.xlane.xlu0 %805
    %v807 = vrcp.pop %v803
    %v808 = vrcp.pop %v806
    %v809 = vmul.f32 %v798, %v807
    %v810 = vmul.f32 %v800, %v808
    %v811 = vpack.c.bf16 %v809, %v809
    %v812 = vpack.c.bf16 %v810, %v810
    %813 = vrot.lane.b32.xlu0 %v148, 48
    %v814 = vpop.permute.xlu0 %813
    %v816 = vsel %vm153, %v811, 0
    %v819 = vsel %vm278, %v814, 0
    %821 = vmatprep.subr.bf16.mxu0 0
    %822 = vmatpush1.bf16.msra.mxu0 %v819
    %823 = vmatprep.subr.bf16.mxu0 0
    %824 = vmatpush1.bf16.msra.mxu0 0
    %825 = vmatprep.subr.bf16.mxu0 0
    %826 = vmatpush1.bf16.msra.mxu0 0
    %827 = vmatprep.subr.bf16.mxu0 0
    %828 = vmatpush1.bf16.msra.mxu0 0
    %829 = vmatprep.subr.bf16.mxu0 0
    %830 = vmatpush1.bf16.msra.mxu0 0
    %831 = vmatprep.subr.bf16.mxu0 0
    %832 = vmatpush1.bf16.msra.mxu0 0
    %833 = vmatprep.subr.bf16.mxu0 0
    %834 = vmatpush1.bf16.msra.mxu0 0
    %835 = vmatprep.subr.bf16.mxu0 0
    %836 = vmatpush1.bf16.msra.mxu0 0
    %837 = vmatprep.subr.bf16.mxu0 0
    %838 = vmatpush1.bf16.msra.mxu0 0
    %839 = vmatprep.subr.bf16.mxu0 0
    %840 = vmatpush1.bf16.msra.mxu0 0
    %841 = vmatprep.subr.bf16.mxu0 0
    %842 = vmatpush1.bf16.msra.mxu0 0
    %843 = vmatprep.subr.bf16.mxu0 0
    %844 = vmatpush1.bf16.msra.mxu0 0
    %845 = vmatprep.subr.bf16.mxu0 0
    %846 = vmatpush1.bf16.msra.mxu0 0
    %847 = vmatprep.subr.bf16.mxu0 0
    %848 = vmatpush1.bf16.msra.mxu0 0
    %849 = vmatprep.subr.bf16.mxu0 0
    %850 = vmatpush1.bf16.msra.mxu0 0
    %851 = vmatprep.subr.bf16.mxu0 0
    %852 = vmatpush1.bf16.msra.mxu0 0
    %853 = vmatprep.mubr.bf16.mxu0 0
    %854 = vmatmul.mubr.bf16.gmra.mrb[0].mxu0 %v816
    %v855 = vpop.f32.mrb[0].mxu0
    %v856 = vadd.f32 0.0, %v855
    %v857 = vpop.f32.mrb[0].mxu0
    %v858 = vpop.f32.mrb[0].mxu0
    %v859 = vpop.f32.mrb[0].mxu0
    %860 = vdwg.mxu0
    %861 = vrot.lane.b32.xlu0 %v149, 48
    %v862 = vpop.permute.xlu0 %861
    %v864 = vsel %vm153, %v812, 0
    %v867 = vsel %vm278, %v862, 0
    %869 = vmatprep.subr.bf16.mxu0 0
    %870 = vmatpush1.bf16.msra.mxu0 %v867
    %871 = vmatprep.subr.bf16.mxu0 0
    %872 = vmatpush1.bf16.msra.mxu0 0
    %873 = vmatprep.subr.bf16.mxu0 0
    %874 = vmatpush1.bf16.msra.mxu0 0
    %875 = vmatprep.subr.bf16.mxu0 0
    %876 = vmatpush1.bf16.msra.mxu0 0
    %877 = vmatprep.subr.bf16.mxu0 0
    %878 = vmatpush1.bf16.msra.mxu0 0
    %879 = vmatprep.subr.bf16.mxu0 0
    %880 = vmatpush1.bf16.msra.mxu0 0
    %881 = vmatprep.subr.bf16.mxu0 0
    %882 = vmatpush1.bf16.msra.mxu0 0
    %883 = vmatprep.subr.bf16.mxu0 0
    %884 = vmatpush1.bf16.msra.mxu0 0
    %885 = vmatprep.subr.bf16.mxu0 0
    %886 = vmatpush1.bf16.msra.mxu0 0
    %887 = vmatprep.subr.bf16.mxu0 0
    %888 = vmatpush1.bf16.msra.mxu0 0
    %889 = vmatprep.subr.bf16.mxu0 0
    %890 = vmatpush1.bf16.msra.mxu0 0
    %891 = vmatprep.subr.bf16.mxu0 0
    %892 = vmatpush1.bf16.msra.mxu0 0
    %893 = vmatprep.subr.bf16.mxu0 0
    %894 = vmatpush1.bf16.msra.mxu0 0
    %895 = vmatprep.subr.bf16.mxu0 0
    %896 = vmatpush1.bf16.msra.mxu0 0
    %897 = vmatprep.subr.bf16.mxu0 0
    %898 = vmatpush1.bf16.msra.mxu0 0
    %899 = vmatprep.subr.bf16.mxu0 0
    %900 = vmatpush1.bf16.msra.mxu0 0
    %901 = vmatprep.mubr.bf16.mxu0 0
    %902 = vmatmul.mubr.bf16.gmra.mrb[0].mxu0 %v864
    %v903 = vpop.f32.mrb[0].mxu0
    %v904 = vadd.f32 0.0, %v903
    %v905 = vpop.f32.mrb[0].mxu0
    %v906 = vpop.f32.mrb[0].mxu0
    %v907 = vpop.f32.mrb[0].mxu0
    %908 = vdwg.mxu0
    %v909 = vpack.c.bf16 %v904, %v856
    %s910 = scalar_lea.vmem %s3, 8
    %v911 = vld [vmem:[%s910] sm:$0xf]
    %v913 = vsel %vm153, %v909, 0
    %v916 = vsel %vm278, %v911, 0
    %918 = vmatprep.subr.bf16.mxu0 0
    %919 = vmatpush1.bf16.msra.mxu0 %v916
    %920 = vmatprep.subr.bf16.mxu0 0
    %921 = vmatpush1.bf16.msra.mxu0 0
    %922 = vmatprep.subr.bf16.mxu0 0
    %923 = vmatpush1.bf16.msra.mxu0 0
    %924 = vmatprep.subr.bf16.mxu0 0
    %925 = vmatpush1.bf16.msra.mxu0 0
    %926 = vmatprep.subr.bf16.mxu0 0
    %927 = vmatpush1.bf16.msra.mxu0 0
    %928 = vmatprep.subr.bf16.mxu0 0
    %929 = vmatpush1.bf16.msra.mxu0 0
    %930 = vmatprep.subr.bf16.mxu0 0
    %931 = vmatpush1.bf16.msra.mxu0 0
    %932 = vmatprep.subr.bf16.mxu0 0
    %933 = vmatpush1.bf16.msra.mxu0 0
    %934 = vmatprep.subr.bf16.mxu0 0
    %935 = vmatpush1.bf16.msra.mxu0 0
    %936 = vmatprep.subr.bf16.mxu0 0
    %937 = vmatpush1.bf16.msra.mxu0 0
    %938 = vmatprep.subr.bf16.mxu0 0
    %939 = vmatpush1.bf16.msra.mxu0 0
    %940 = vmatprep.subr.bf16.mxu0 0
    %941 = vmatpush1.bf16.msra.mxu0 0
    %942 = vmatprep.subr.bf16.mxu0 0
    %943 = vmatpush1.bf16.msra.mxu0 0
    %944 = vmatprep.subr.bf16.mxu0 0
    %945 = vmatpush1.bf16.msra.mxu0 0
    %946 = vmatprep.subr.bf16.mxu0 0
    %947 = vmatpush1.bf16.msra.mxu0 0
    %948 = vmatprep.subr.bf16.mxu0 0
    %949 = vmatpush1.bf16.msra.mxu0 0
    %950 = vmatprep.mubr.bf16.mxu0 0
    %951 = vmatmul.mubr.bf16.gmra.mrb[0].mxu0 %v913
    %v952 = vpop.f32.mrb[0].mxu0
    %v953 = vadd.f32 0.0, %v952
    %v954 = vpop.f32.mrb[0].mxu0
    %v955 = vpop.f32.mrb[0].mxu0
    %v956 = vadd.f32 0.0, %v955
    %v957 = vpop.f32.mrb[0].mxu0
    %958 = vdwg.mxu0
    %v959 = vadd.f32 %v683, %v953
    %v960 = vadd.f32 %v686, %v956
    %961 = vrot.lane.b32.xlu0 %v148, 104
    %v962 = vpop.permute.xlu0 %961
    %963 = vrot.lane.b32.xlu0 %v148, 72
    %v964 = vpop.permute.xlu0 %963
    %v966 = vsel %vm153, %v962, 0
    %v969 = vsel %vm153, %v964, 0
    %971 = vmatprep.subr.bf16.mxu0 0
    %972 = vmatpush1.bf16.xpose.msra.mxu0 %v969
    %973 = vmatprep.subr.bf16.mxu0 0
    %974 = vmatpush1.bf16.xpose.msra.mxu0 0
    %975 = vmatprep.subr.bf16.mxu0 0
    %976 = vmatpush1.bf16.xpose.msra.mxu0 0
    %977 = vmatprep.subr.bf16.mxu0 0
    %978 = vmatpush1.bf16.xpose.msra.mxu0 0
    %979 = vmatprep.subr.bf16.mxu0 0
    %980 = vmatpush1.bf16.xpose.msra.mxu0 0
    %981 = vmatprep.subr.bf16.mxu0 0
    %982 = vmatpush1.bf16.xpose.msra.mxu0 0
    %983 = vmatprep.subr.bf16.mxu0 0
    %984 = vmatpush1.bf16.xpose.msra.mxu0 0
    %985 = vmatprep.subr.bf16.mxu0 0
    %986 = vmatpush1.bf16.xpose.msra.mxu0 0
    %987 = vmatprep.subr.bf16.mxu0 0
    %988 = vmatpush1.bf16.xpose.msra.mxu0 0
    %989 = vmatprep.subr.bf16.mxu0 0
    %990 = vmatpush1.bf16.xpose.msra.mxu0 0
    %991 = vmatprep.subr.bf16.mxu0 0
    %992 = vmatpush1.bf16.xpose.msra.mxu0 0
    %993 = vmatprep.subr.bf16.mxu0 0
    %994 = vmatpush1.bf16.xpose.msra.mxu0 0
    %995 = vmatprep.subr.bf16.mxu0 0
    %996 = vmatpush1.bf16.xpose.msra.mxu0 0
    %997 = vmatprep.subr.bf16.mxu0 0
    %998 = vmatpush1.bf16.xpose.msra.mxu0 0
    %999 = vmatprep.subr.bf16.mxu0 0
    %1000 = vmatpush1.bf16.xpose.msra.mxu0 0
    %1001 = vmatprep.subr.bf16.mxu0 0
    %1002 = vmatpush1.bf16.xpose.msra.mxu0 0
    %1003 = vmatprep.mubr.bf16.mxu0 0
    %1004 = vmatmul.mubr.bf16.gmra.mrb[0].mxu0 %v966
    %v1005 = vpop.f32.mrb[0].mxu0
    %v1006 = vadd.f32 0.0, %v1005
    %v1007 = vpop.f32.mrb[0].mxu0
    %v1008 = vpop.f32.mrb[0].mxu0
    %v1009 = vpop.f32.mrb[0].mxu0
    %1010 = vdwg.mxu0
    %1011 = vrot.lane.b32.xlu0 %v149, 104
    %v1012 = vpop.permute.xlu0 %1011
    %1013 = vrot.lane.b32.xlu0 %v149, 72
    %v1014 = vpop.permute.xlu0 %1013
    %v1016 = vsel %vm153, %v1012, 0
    %v1019 = vsel %vm153, %v1014, 0
    %1021 = vmatprep.subr.bf16.mxu0 0
    %1022 = vmatpush1.bf16.xpose.msra.mxu0 %v1019
    %1023 = vmatprep.subr.bf16.mxu0 0
    %1024 = vmatpush1.bf16.xpose.msra.mxu0 0
    %1025 = vmatprep.subr.bf16.mxu0 0
    %1026 = vmatpush1.bf16.xpose.msra.mxu0 0
    %1027 = vmatprep.subr.bf16.mxu0 0
    %1028 = vmatpush1.bf16.xpose.msra.mxu0 0
    %1029 = vmatprep.subr.bf16.mxu0 0
    %1030 = vmatpush1.bf16.xpose.msra.mxu0 0
    %1031 = vmatprep.subr.bf16.mxu0 0
    %1032 = vmatpush1.bf16.xpose.msra.mxu0 0
    %1033 = vmatprep.subr.bf16.mxu0 0
    %1034 = vmatpush1.bf16.xpose.msra.mxu0 0
    %1035 = vmatprep.subr.bf16.mxu0 0
    %1036 = vmatpush1.bf16.xpose.msra.mxu0 0
    %1037 = vmatprep.subr.bf16.mxu0 0
    %1038 = vmatpush1.bf16.xpose.msra.mxu0 0
    %1039 = vmatprep.subr.bf16.mxu0 0
    %1040 = vmatpush1.bf16.xpose.msra.mxu0 0
    %1041 = vmatprep.subr.bf16.mxu0 0
    %1042 = vmatpush1.bf16.xpose.msra.mxu0 0
    %1043 = vmatprep.subr.bf16.mxu0 0
    %1044 = vmatpush1.bf16.xpose.msra.mxu0 0
    %1045 = vmatprep.subr.bf16.mxu0 0
    %1046 = vmatpush1.bf16.xpose.msra.mxu0 0
    %1047 = vmatprep.subr.bf16.mxu0 0
    %1048 = vmatpush1.bf16.xpose.msra.mxu0 0
    %1049 = vmatprep.subr.bf16.mxu0 0
    %1050 = vmatpush1.bf16.xpose.msra.mxu0 0
    %1051 = vmatprep.subr.bf16.mxu0 0
    %1052 = vmatpush1.bf16.xpose.msra.mxu0 0
    %1053 = vmatprep.mubr.bf16.mxu0 0
    %1054 = vmatmul.mubr.bf16.gmra.mrb[0].mxu0 %v1016
    %v1055 = vpop.f32.mrb[0].mxu0
    %v1056 = vadd.f32 0.0, %v1055
    %v1057 = vpop.f32.mrb[0].mxu0
    %v1058 = vpop.f32.mrb[0].mxu0
    %v1059 = vpop.f32.mrb[0].mxu0
    %1060 = vdwg.mxu0
    %v1061 = vsel %vm153, %v1006, -inf
    %1062 = vmax.xlane.f32.xlu0 %v1061
    %v1063 = vpop.xlane.xlu0 %1062
    %v1064 = vsel %vm153, %v1056, -inf
    %1065 = vmax.xlane.f32.xlu0 %v1064
    %v1066 = vpop.xlane.xlu0 %1065
    %v1067 = vsub.f32 %v1006, %v1063
    %v1068 = vsub.f32 %v1056, %v1066
    %v1069 = vmul.f32 %v1067, 1.442695
    %v1070 = vpow.pop %v1069
    %v1071 = vmul.f32 %v1068, 1.442695
    %v1072 = vpow.pop %v1071
    %v1073 = vsel %vm153, %v1070, 0.0
    %1074 = vadd.xlane.f32.xlu0 %v1073
    %v1075 = vpop.xlane.xlu0 %1074
    %v1076 = vsel %vm153, %v1072, 0.0
    %1077 = vadd.xlane.f32.xlu0 %v1076
    %v1078 = vpop.xlane.xlu0 %1077
    %v1079 = vrcp.pop %v1075
    %v1080 = vrcp.pop %v1078
    %v1081 = vmul.f32 %v1070, %v1079
    %v1082 = vmul.f32 %v1072, %v1080
    %v1083 = vpack.c.bf16 %v1081, %v1081
    %v1084 = vpack.c.bf16 %v1082, %v1082
    %1085 = vrot.lane.b32.xlu0 %v148, 40
    %v1086 = vpop.permute.xlu0 %1085
    %v1088 = vsel %vm153, %v1083, 0
    %v1091 = vsel %vm278, %v1086, 0
    %1093 = vmatprep.subr.bf16.mxu0 0
    %1094 = vmatpush1.bf16.msra.mxu0 %v1091
    %1095 = vmatprep.subr.bf16.mxu0 0
    %1096 = vmatpush1.bf16.msra.mxu0 0
    %1097 = vmatprep.subr.bf16.mxu0 0
    %1098 = vmatpush1.bf16.msra.mxu0 0
    %1099 = vmatprep.subr.bf16.mxu0 0
    %1100 = vmatpush1.bf16.msra.mxu0 0
    %1101 = vmatprep.subr.bf16.mxu0 0
    %1102 = vmatpush1.bf16.msra.mxu0 0
    %1103 = vmatprep.subr.bf16.mxu0 0
    %1104 = vmatpush1.bf16.msra.mxu0 0
    %1105 = vmatprep.subr.bf16.mxu0 0
    %1106 = vmatpush1.bf16.msra.mxu0 0
    %1107 = vmatprep.subr.bf16.mxu0 0
    %1108 = vmatpush1.bf16.msra.mxu0 0
    %1109 = vmatprep.subr.bf16.mxu0 0
    %1110 = vmatpush1.bf16.msra.mxu0 0
    %1111 = vmatprep.subr.bf16.mxu0 0
    %1112 = vmatpush1.bf16.msra.mxu0 0
    %1113 = vmatprep.subr.bf16.mxu0 0
    %1114 = vmatpush1.bf16.msra.mxu0 0
    %1115 = vmatprep.subr.bf16.mxu0 0
    %1116 = vmatpush1.bf16.msra.mxu0 0
    %1117 = vmatprep.subr.bf16.mxu0 0
    %1118 = vmatpush1.bf16.msra.mxu0 0
    %1119 = vmatprep.subr.bf16.mxu0 0
    %1120 = vmatpush1.bf16.msra.mxu0 0
    %1121 = vmatprep.subr.bf16.mxu0 0
    %1122 = vmatpush1.bf16.msra.mxu0 0
    %1123 = vmatprep.subr.bf16.mxu0 0
    %1124 = vmatpush1.bf16.msra.mxu0 0
    %1125 = vmatprep.mubr.bf16.mxu0 0
    %1126 = vmatmul.mubr.bf16.gmra.mrb[0].mxu0 %v1088
    %v1127 = vpop.f32.mrb[0].mxu0
    %v1128 = vadd.f32 0.0, %v1127
    %v1129 = vpop.f32.mrb[0].mxu0
    %v1130 = vpop.f32.mrb[0].mxu0
    %v1131 = vpop.f32.mrb[0].mxu0
    %1132 = vdwg.mxu0
    %1133 = vrot.lane.b32.xlu0 %v149, 40
    %v1134 = vpop.permute.xlu0 %1133
    %v1136 = vsel %vm153, %v1084, 0
    %v1139 = vsel %vm278, %v1134, 0
    %1141 = vmatprep.subr.bf16.mxu0 0
    %1142 = vmatpush1.bf16.msra.mxu0 %v1139
    %1143 = vmatprep.subr.bf16.mxu0 0
    %1144 = vmatpush1.bf16.msra.mxu0 0
    %1145 = vmatprep.subr.bf16.mxu0 0
    %1146 = vmatpush1.bf16.msra.mxu0 0
    %1147 = vmatprep.subr.bf16.mxu0 0
    %1148 = vmatpush1.bf16.msra.mxu0 0
    %1149 = vmatprep.subr.bf16.mxu0 0
    %1150 = vmatpush1.bf16.msra.mxu0 0
    %1151 = vmatprep.subr.bf16.mxu0 0
    %1152 = vmatpush1.bf16.msra.mxu0 0
    %1153 = vmatprep.subr.bf16.mxu0 0
    %1154 = vmatpush1.bf16.msra.mxu0 0
    %1155 = vmatprep.subr.bf16.mxu0 0
    %1156 = vmatpush1.bf16.msra.mxu0 0
    %1157 = vmatprep.subr.bf16.mxu0 0
    %1158 = vmatpush1.bf16.msra.mxu0 0
    %1159 = vmatprep.subr.bf16.mxu0 0
    %1160 = vmatpush1.bf16.msra.mxu0 0
    %1161 = vmatprep.subr.bf16.mxu0 0
    %1162 = vmatpush1.bf16.msra.mxu0 0
    %1163 = vmatprep.subr.bf16.mxu0 0
    %1164 = vmatpush1.bf16.msra.mxu0 0
    %1165 = vmatprep.subr.bf16.mxu0 0
    %1166 = vmatpush1.bf16.msra.mxu0 0
    %1167 = vmatprep.subr.bf16.mxu0 0
    %1168 = vmatpush1.bf16.msra.mxu0 0
    %1169 = vmatprep.subr.bf16.mxu0 0
    %1170 = vmatpush1.bf16.msra.mxu0 0
    %1171 = vmatprep.subr.bf16.mxu0 0
    %1172 = vmatpush1.bf16.msra.mxu0 0
    %1173 = vmatprep.mubr.bf16.mxu0 0
    %1174 = vmatmul.mubr.bf16.gmra.mrb[0].mxu0 %v1136
    %v1175 = vpop.f32.mrb[0].mxu0
    %v1176 = vadd.f32 0.0, %v1175
    %v1177 = vpop.f32.mrb[0].mxu0
    %v1178 = vpop.f32.mrb[0].mxu0
    %v1179 = vpop.f32.mrb[0].mxu0
    %1180 = vdwg.mxu0
    %v1181 = vpack.c.bf16 %v1176, %v1128
    %s1182 = scalar_lea.vmem %s3, 12
    %v1183 = vld [vmem:[%s1182] sm:$0xf]
    %v1185 = vsel %vm153, %v1181, 0
    %v1188 = vsel %vm278, %v1183, 0
    %1190 = vmatprep.subr.bf16.mxu0 0
    %1191 = vmatpush1.bf16.msra.mxu0 %v1188
    %1192 = vmatprep.subr.bf16.mxu0 0
    %1193 = vmatpush1.bf16.msra.mxu0 0
    %1194 = vmatprep.subr.bf16.mxu0 0
    %1195 = vmatpush1.bf16.msra.mxu0 0
    %1196 = vmatprep.subr.bf16.mxu0 0
    %1197 = vmatpush1.bf16.msra.mxu0 0
    %1198 = vmatprep.subr.bf16.mxu0 0
    %1199 = vmatpush1.bf16.msra.mxu0 0
    %1200 = vmatprep.subr.bf16.mxu0 0
    %1201 = vmatpush1.bf16.msra.mxu0 0
    %1202 = vmatprep.subr.bf16.mxu0 0
    %1203 = vmatpush1.bf16.msra.mxu0 0
    %1204 = vmatprep.subr.bf16.mxu0 0
    %1205 = vmatpush1.bf16.msra.mxu0 0
    %1206 = vmatprep.subr.bf16.mxu0 0
    %1207 = vmatpush1.bf16.msra.mxu0 0
    %1208 = vmatprep.subr.bf16.mxu0 0
    %1209 = vmatpush1.bf16.msra.mxu0 0
    %1210 = vmatprep.subr.bf16.mxu0 0
    %1211 = vmatpush1.bf16.msra.mxu0 0
    %1212 = vmatprep.subr.bf16.mxu0 0
    %1213 = vmatpush1.bf16.msra.mxu0 0
    %1214 = vmatprep.subr.bf16.mxu0 0
    %1215 = vmatpush1.bf16.msra.mxu0 0
    %1216 = vmatprep.subr.bf16.mxu0 0
    %1217 = vmatpush1.bf16.msra.mxu0 0
    %1218 = vmatprep.subr.bf16.mxu0 0
    %1219 = vmatpush1.bf16.msra.mxu0 0
    %1220 = vmatprep.subr.bf16.mxu0 0
    %1221 = vmatpush1.bf16.msra.mxu0 0
    %1222 = vmatprep.mubr.bf16.mxu0 0
    %1223 = vmatmul.mubr.bf16.gmra.mrb[0].mxu0 %v1185
    %v1224 = vpop.f32.mrb[0].mxu0
    %v1225 = vadd.f32 0.0, %v1224
    %v1226 = vpop.f32.mrb[0].mxu0
    %v1227 = vpop.f32.mrb[0].mxu0
    %v1228 = vadd.f32 0.0, %v1227
    %v1229 = vpop.f32.mrb[0].mxu0
    %1230 = vdwg.mxu0
    %v1231 = vadd.f32 %v959, %v1225
    %v1232 = vadd.f32 %v960, %v1228
    %v1233 = vlaneseq
    %v1234 = vshrl.u32 %v1233, 7
    %v1235 = vsub.s32 1, %v1234
    %v1236 = vrot.slane %v82, %v1235
    %v1237 = vadd.f32 %v1231, %v1236
    %v1238 = vadd.f32 %v1232, %v1236
    %v1239 = vadd.f32 %v79, %v1237
    %v1240 = vadd.f32 %v80, %v1238
    %v1241 = vsel %vm103, %v1239, 0.0
    %1242 = vadd.xlane.f32.xlu0 %v1241
    %v1243 = vpop.xlane.xlu0 %1242
    %v1244 = vsel %vm103, %v1240, 0.0
    %1245 = vadd.xlane.f32.xlu0 %v1244
    %v1246 = vpop.xlane.xlu0 %1245
    %v1247 = vrcp.pop 32.0
    %v1248 = vmul.f32 %v1243, %v1247
    %v1249 = vmul.f32 %v1246, %v1247
    %v1250 = vsub.f32 %v1239, %v1248
    %v1251 = vsub.f32 %v1240, %v1249
    %v1252 = vmul.f32 %v1250, %v1250
    %v1253 = vmul.f32 %v1251, %v1251
    %v1254 = vsel %vm103, %v1252, 0.0
    %1255 = vadd.xlane.f32.xlu0 %v1254
    %v1256 = vpop.xlane.xlu0 %1255
    %v1257 = vsel %vm103, %v1253, 0.0
    %1258 = vadd.xlane.f32.xlu0 %v1257
    %v1259 = vpop.xlane.xlu0 %1258
    %v1260 = vmul.f32 %v1256, %v1247
    %v1261 = vmul.f32 %v1259, %v1247
    %v1262 = vadd.f32 %v1260, 1e-05
    %v1263 = vadd.f32 %v1261, 1e-05
    %v1264 = vrsqrt.pop %v1262
    %v1265 = vrsqrt.pop %v1263
    %v1266 = vmul.f32 %v1250, %v1264
    %v1267 = vmul.f32 %v1251, %v1265
    %v1268 = vlaneseq
    %v1269 = vshrl.u32 %v1268, 7
    %v1270 = vsub.s32 4, %v1269
    %v1271 = vrot.slane %v82, %v1270
    %v1272 = vmul.f32 %v1266, %v1271
    %v1273 = vmul.f32 %v1267, %v1271
    %v1274 = vlaneseq
    %v1275 = vshrl.u32 %v1274, 7
    %v1276 = vsub.s32 5, %v1275
    %v1277 = vrot.slane %v82, %v1276
    %v1278 = vadd.f32 %v1272, %v1277
    %v1279 = vadd.f32 %v1273, %v1277
    %v1280 = vpack.c.bf16 %v1279, %v1278
    %v1281 = vld [vmem:[%s4] sm:$0xf]
    %v1282 = vld [vmem:[%s4 + $0x4] sm:$0xf]
    %v1283 = vld [vmem:[%s4 + $0x8] sm:$0xf]
    %v1284 = vld [vmem:[%s4 + $0xc] sm:$0xf]
    %v1285 = vlaneseq
    %v1286 = vshrl.u32 %v1285, 7
    %v1287 = vsub.s32 2, %v1286
    %v1288 = vrot.slane %v82, %v1287
    %v1293 = vunpack.c.l.b16 %v1281
    %v1294 = vunpack.c.l.b16 %v1282
    %v1295 = vunpack.c.l.b16 %v1283
    %v1296 = vunpack.c.l.b16 %v1284
    %v1297 = vpack.c.b16 %v1294, %v1293
    %v1298 = vpack.c.b16 %v1296, %v1295
    %v1302 = vsel %vm103, %v1280, 0
    %1304 = vmatprep.subr.bf16.mxu0 0
    %1305 = vmatpush1.bf16.msra.mxu0 %v1297
    %1306 = vmatprep.subr.bf16.mxu0 0
    %1307 = vmatpush1.bf16.msra.mxu0 %v1298
    %1308 = vmatprep.subr.bf16.mxu0 0
    %1309 = vmatpush1.bf16.msra.mxu0 0
    %1310 = vmatprep.subr.bf16.mxu0 0
    %1311 = vmatpush1.bf16.msra.mxu0 0
    %1312 = vmatprep.subr.bf16.mxu0 0
    %1313 = vmatpush1.bf16.msra.mxu0 0
    %1314 = vmatprep.subr.bf16.mxu0 0
    %1315 = vmatpush1.bf16.msra.mxu0 0
    %1316 = vmatprep.subr.bf16.mxu0 0
    %1317 = vmatpush1.bf16.msra.mxu0 0
    %1318 = vmatprep.subr.bf16.mxu0 0
    %1319 = vmatpush1.bf16.msra.mxu0 0
    %1320 = vmatprep.subr.bf16.mxu0 0
    %1321 = vmatpush1.bf16.msra.mxu0 0
    %1322 = vmatprep.subr.bf16.mxu0 0
    %1323 = vmatpush1.bf16.msra.mxu0 0
    %1324 = vmatprep.subr.bf16.mxu0 0
    %1325 = vmatpush1.bf16.msra.mxu0 0
    %1326 = vmatprep.subr.bf16.mxu0 0
    %1327 = vmatpush1.bf16.msra.mxu0 0
    %1328 = vmatprep.subr.bf16.mxu0 0
    %1329 = vmatpush1.bf16.msra.mxu0 0
    %1330 = vmatprep.subr.bf16.mxu0 0
    %1331 = vmatpush1.bf16.msra.mxu0 0
    %1332 = vmatprep.subr.bf16.mxu0 0
    %1333 = vmatpush1.bf16.msra.mxu0 0
    %1334 = vmatprep.subr.bf16.mxu0 0
    %1335 = vmatpush1.bf16.msra.mxu0 0
    %1336 = vmatprep.mubr.bf16.mxu0 0
    %1337 = vmatmul.mubr.bf16.gmra.mrb[0].mxu0 %v1302
    %v1338 = vpop.f32.mrb[0].mxu0
    %v1339 = vadd.f32 %v1288, %v1338
    %v1340 = vpop.f32.mrb[0].mxu0
    %v1341 = vpop.f32.mrb[0].mxu0
    %v1342 = vadd.f32 %v1288, %v1341
    %v1343 = vpop.f32.mrb[0].mxu0
    %1344 = vdwg.mxu0
    %v1345 = vmax.f32 %v1339, 0.0
    %v1346 = vmax.f32 %v1342, 0.0
    %v1347 = vpack.c.bf16 %v1346, %v1345
    %v1348 = vld [vmem:[%s5] sm:$0xf]
    %v1349 = vld [vmem:[%s5 + $0x4] sm:$0xf]
    %v1350 = vld [vmem:[%s5 + $0x8] sm:$0xf]
    %v1351 = vld [vmem:[%s5 + $0xc] sm:$0xf]
    %v1352 = vld [vmem:[%s5 + $0x10] sm:$0xf]
    %v1353 = vld [vmem:[%s5 + $0x14] sm:$0xf]
    %v1354 = vld [vmem:[%s5 + $0x18] sm:$0xf]
    %v1355 = vld [vmem:[%s5 + $0x1c] sm:$0xf]
    %v1356 = vlaneseq
    %v1357 = vshrl.u32 %v1356, 7
    %v1358 = vsub.s32 3, %v1357
    %v1359 = vrot.slane %v82, %v1358
    %v1368 = vunpack.c.l.b16 %v1348
    %v1369 = vunpack.c.l.b16 %v1349
    %v1370 = vunpack.c.l.b16 %v1350
    %v1371 = vunpack.c.l.b16 %v1351
    %v1372 = vunpack.c.l.b16 %v1352
    %v1373 = vunpack.c.l.b16 %v1353
    %v1374 = vunpack.c.l.b16 %v1354
    %v1375 = vunpack.c.l.b16 %v1355
    %v1376 = vpack.c.b16 %v1369, %v1368
    %v1377 = vpack.c.b16 %v1371, %v1370
    %v1378 = vpack.c.b16 %v1373, %v1372
    %v1379 = vpack.c.b16 %v1375, %v1374
    %vm1384 = vcmask 523264
    %v1386 = vsel %vm1384, %v1347, 0
    %1388 = vmatprep.subr.bf16.mxu0 0
    %1389 = vmatpush1.bf16.msra.mxu0 %v1376
    %1390 = vmatprep.subr.bf16.mxu0 0
    %1391 = vmatpush1.bf16.msra.mxu0 %v1377
    %1392 = vmatprep.subr.bf16.mxu0 0
    %1393 = vmatpush1.bf16.msra.mxu0 %v1378
    %1394 = vmatprep.subr.bf16.mxu0 0
    %1395 = vmatpush1.bf16.msra.mxu0 %v1379
    %1396 = vmatprep.subr.bf16.mxu0 0
    %1397 = vmatpush1.bf16.msra.mxu0 0
    %1398 = vmatprep.subr.bf16.mxu0 0
    %1399 = vmatpush1.bf16.msra.mxu0 0
    %1400 = vmatprep.subr.bf16.mxu0 0
    %1401 = vmatpush1.bf16.msra.mxu0 0
    %1402 = vmatprep.subr.bf16.mxu0 0
    %1403 = vmatpush1.bf16.msra.mxu0 0
    %1404 = vmatprep.subr.bf16.mxu0 0
    %1405 = vmatpush1.bf16.msra.mxu0 0
    %1406 = vmatprep.subr.bf16.mxu0 0
    %1407 = vmatpush1.bf16.msra.mxu0 0
    %1408 = vmatprep.subr.bf16.mxu0 0
    %1409 = vmatpush1.bf16.msra.mxu0 0
    %1410 = vmatprep.subr.bf16.mxu0 0
    %1411 = vmatpush1.bf16.msra.mxu0 0
    %1412 = vmatprep.subr.bf16.mxu0 0
    %1413 = vmatpush1.bf16.msra.mxu0 0
    %1414 = vmatprep.subr.bf16.mxu0 0
    %1415 = vmatpush1.bf16.msra.mxu0 0
    %1416 = vmatprep.subr.bf16.mxu0 0
    %1417 = vmatpush1.bf16.msra.mxu0 0
    %1418 = vmatprep.subr.bf16.mxu0 0
    %1419 = vmatpush1.bf16.msra.mxu0 0
    %1420 = vmatprep.mubr.bf16.mxu0 0
    %1421 = vmatmul.mubr.bf16.gmra.mrb[0].mxu0 %v1386
    %v1422 = vpop.f32.mrb[0].mxu0
    %v1423 = vadd.f32 %v1359, %v1422
    %v1424 = vpop.f32.mrb[0].mxu0
    %v1425 = vpop.f32.mrb[0].mxu0
    %v1426 = vadd.f32 %v1359, %v1425
    %v1427 = vpop.f32.mrb[0].mxu0
    %1428 = vdwg.mxu0
    %v1429 = vadd.f32 %v1278, %v1423
    %v1430 = vadd.f32 %v1279, %v1426
    %v1431 = vsel %vm103, %v1429, 0.0
    %1432 = vadd.xlane.f32.xlu0 %v1431
    %v1433 = vpop.xlane.xlu0 %1432
    %v1434 = vsel %vm103, %v1430, 0.0
    %1435 = vadd.xlane.f32.xlu0 %v1434
    %v1436 = vpop.xlane.xlu0 %1435
    %v1437 = vmul.f32 %v1433, %v1247
    %v1438 = vmul.f32 %v1436, %v1247
    %v1439 = vsub.f32 %v1429, %v1437
    %v1440 = vsub.f32 %v1430, %v1438
    %v1441 = vmul.f32 %v1439, %v1439
    %v1442 = vmul.f32 %v1440, %v1440
    %v1443 = vsel %vm103, %v1441, 0.0
    %1444 = vadd.xlane.f32.xlu0 %v1443
    %v1445 = vpop.xlane.xlu0 %1444
    %v1446 = vsel %vm103, %v1442, 0.0
    %1447 = vadd.xlane.f32.xlu0 %v1446
    %v1448 = vpop.xlane.xlu0 %1447
    %v1449 = vmul.f32 %v1445, %v1247
    %v1450 = vmul.f32 %v1448, %v1247
    %v1451 = vadd.f32 %v1449, 1e-05
    %v1452 = vadd.f32 %v1450, 1e-05
    %v1453 = vrsqrt.pop %v1451
    %v1454 = vrsqrt.pop %v1452
    %v1455 = vmul.f32 %v1439, %v1453
    %v1456 = vmul.f32 %v1440, %v1454
    %v1457 = vlaneseq
    %v1458 = vshrl.u32 %v1457, 7
    %v1459 = vsub.s32 6, %v1458
    %v1460 = vrot.slane %v82, %v1459
    %v1461 = vmul.f32 %v1455, %v1460
    %v1462 = vmul.f32 %v1456, %v1460
    %v1463 = vlaneseq
    %v1464 = vshrl.u32 %v1463, 7
    %v1465 = vsub.s32 7, %v1464
    %v1466 = vrot.slane %v82, %v1465
    %v1467 = vadd.f32 %v1461, %v1466
    %v1468 = vadd.f32 %v1462, %v1466
    %v1469 = vpack.c.bf16 %v1468, %v1467
    %s1470 = scalar_lea.vmem %s6, 8
    %v1471 = vld [vmem:[%s1470] sm:$0xff]
    %s1472 = scalar_lea.vmem %s2, 16
    %v1473 = vld [vmem:[%s1472] sm:$0xf]
    %v1474 = vld [vmem:[%s1472 + $0x4] sm:$0xf]
    %v1475 = vld [vmem:[%s1472 + $0x8] sm:$0xf]
    %v1476 = vld [vmem:[%s1472 + $0xc] sm:$0xf]
    %v1477 = vlaneseq
    %v1478 = vshrl.u32 %v1477, 7
    %v1479 = vsub.s32 0, %v1478
    %v1480 = vrot.slane %v1471, %v1479
    %v1485 = vunpack.c.l.b16 %v1473
    %v1486 = vunpack.c.l.b16 %v1474
    %v1487 = vunpack.c.l.b16 %v1475
    %v1488 = vunpack.c.l.b16 %v1476
    %v1489 = vpack.c.b16 %v1486, %v1485
    %v1490 = vpack.c.b16 %v1488, %v1487
    %v1494 = vsel %vm103, %v1469, 0
    %1496 = vmatprep.subr.bf16.mxu0 0
    %1497 = vmatpush1.bf16.msra.mxu0 %v1489
    %1498 = vmatprep.subr.bf16.mxu0 0
    %1499 = vmatpush1.bf16.msra.mxu0 %v1490
    %1500 = vmatprep.subr.bf16.mxu0 0
    %1501 = vmatpush1.bf16.msra.mxu0 0
    %1502 = vmatprep.subr.bf16.mxu0 0
    %1503 = vmatpush1.bf16.msra.mxu0 0
    %1504 = vmatprep.subr.bf16.mxu0 0
    %1505 = vmatpush1.bf16.msra.mxu0 0
    %1506 = vmatprep.subr.bf16.mxu0 0
    %1507 = vmatpush1.bf16.msra.mxu0 0
    %1508 = vmatprep.subr.bf16.mxu0 0
    %1509 = vmatpush1.bf16.msra.mxu0 0
    %1510 = vmatprep.subr.bf16.mxu0 0
    %1511 = vmatpush1.bf16.msra.mxu0 0
    %1512 = vmatprep.subr.bf16.mxu0 0
    %1513 = vmatpush1.bf16.msra.mxu0 0
    %1514 = vmatprep.subr.bf16.mxu0 0
    %1515 = vmatpush1.bf16.msra.mxu0 0
    %1516 = vmatprep.subr.bf16.mxu0 0
    %1517 = vmatpush1.bf16.msra.mxu0 0
    %1518 = vmatprep.subr.bf16.mxu0 0
    %1519 = vmatpush1.bf16.msra.mxu0 0
    %1520 = vmatprep.subr.bf16.mxu0 0
    %1521 = vmatpush1.bf16.msra.mxu0 0
    %1522 = vmatprep.subr.bf16.mxu0 0
    %1523 = vmatpush1.bf16.msra.mxu0 0
    %1524 = vmatprep.subr.bf16.mxu0 0
    %1525 = vmatpush1.bf16.msra.mxu0 0
    %1526 = vmatprep.subr.bf16.mxu0 0
    %1527 = vmatpush1.bf16.msra.mxu0 0
    %1528 = vmatprep.mubr.bf16.mxu0 0
    %1529 = vmatmul.mubr.bf16.gmra.mrb[0].mxu0 %v1494
    %v1530 = vpop.f32.mrb[0].mxu0
    %v1531 = vadd.f32 %v1480, %v1530
    %v1532 = vpop.f32.mrb[0].mxu0
    %v1533 = vpop.f32.mrb[0].mxu0
    %v1534 = vadd.f32 %v1480, %v1533
    %v1535 = vpop.f32.mrb[0].mxu0
    %1536 = vdwg.mxu0
    %v1537 = vpack.c.bf16 %v1531, %v1531
    %v1538 = vpack.c.bf16 %v1534, %v1534
    %1540 = vrot.lane.b32.xlu0 %v1537, 96
    %v1541 = vpop.permute.xlu0 %1540
    %v1543 = vsel %vm153, %v1537, 0
    %v1546 = vsel %vm153, %v1541, 0
    %1548 = vmatprep.subr.bf16.mxu0 0
    %1549 = vmatpush1.bf16.xpose.msra.mxu0 %v1546
    %1550 = vmatprep.subr.bf16.mxu0 0
    %1551 = vmatpush1.bf16.xpose.msra.mxu0 0
    %1552 = vmatprep.subr.bf16.mxu0 0
    %1553 = vmatpush1.bf16.xpose.msra.mxu0 0
    %1554 = vmatprep.subr.bf16.mxu0 0
    %1555 = vmatpush1.bf16.xpose.msra.mxu0 0
    %1556 = vmatprep.subr.bf16.mxu0 0
    %1557 = vmatpush1.bf16.xpose.msra.mxu0 0
    %1558 = vmatprep.subr.bf16.mxu0 0
    %1559 = vmatpush1.bf16.xpose.msra.mxu0 0
    %1560 = vmatprep.subr.bf16.mxu0 0
    %1561 = vmatpush1.bf16.xpose.msra.mxu0 0
    %1562 = vmatprep.subr.bf16.mxu0 0
    %1563 = vmatpush1.bf16.xpose.msra.mxu0 0
    %1564 = vmatprep.subr.bf16.mxu0 0
    %1565 = vmatpush1.bf16.xpose.msra.mxu0 0
    %1566 = vmatprep.subr.bf16.mxu0 0
    %1567 = vmatpush1.bf16.xpose.msra.mxu0 0
    %1568 = vmatprep.subr.bf16.mxu0 0
    %1569 = vmatpush1.bf16.xpose.msra.mxu0 0
    %1570 = vmatprep.subr.bf16.mxu0 0
    %1571 = vmatpush1.bf16.xpose.msra.mxu0 0
    %1572 = vmatprep.subr.bf16.mxu0 0
    %1573 = vmatpush1.bf16.xpose.msra.mxu0 0
    %1574 = vmatprep.subr.bf16.mxu0 0
    %1575 = vmatpush1.bf16.xpose.msra.mxu0 0
    %1576 = vmatprep.subr.bf16.mxu0 0
    %1577 = vmatpush1.bf16.xpose.msra.mxu0 0
    %1578 = vmatprep.subr.bf16.mxu0 0
    %1579 = vmatpush1.bf16.xpose.msra.mxu0 0
    %1580 = vmatprep.mubr.bf16.mxu0 0
    %1581 = vmatmul.mubr.bf16.gmra.mrb[0].mxu0 %v1543
    %v1582 = vpop.f32.mrb[0].mxu0
    %v1583 = vadd.f32 0.0, %v1582
    %v1584 = vpop.f32.mrb[0].mxu0
    %v1585 = vpop.f32.mrb[0].mxu0
    %v1586 = vpop.f32.mrb[0].mxu0
    %1587 = vdwg.mxu0
    %1589 = vrot.lane.b32.xlu0 %v1538, 96
    %v1590 = vpop.permute.xlu0 %1589
    %v1592 = vsel %vm153, %v1538, 0
    %v1595 = vsel %vm153, %v1590, 0
    %1597 = vmatprep.subr.bf16.mxu0 0
    %1598 = vmatpush1.bf16.xpose.msra.mxu0 %v1595
    %1599 = vmatprep.subr.bf16.mxu0 0
    %1600 = vmatpush1.bf16.xpose.msra.mxu0 0
    %1601 = vmatprep.subr.bf16.mxu0 0
    %1602 = vmatpush1.bf16.xpose.msra.mxu0 0
    %1603 = vmatprep.subr.bf16.mxu0 0
    %1604 = vmatpush1.bf16.xpose.msra.mxu0 0
    %1605 = vmatprep.subr.bf16.mxu0 0
    %1606 = vmatpush1.bf16.xpose.msra.mxu0 0
    %1607 = vmatprep.subr.bf16.mxu0 0
    %1608 = vmatpush1.bf16.xpose.msra.mxu0 0
    %1609 = vmatprep.subr.bf16.mxu0 0
    %1610 = vmatpush1.bf16.xpose.msra.mxu0 0
    %1611 = vmatprep.subr.bf16.mxu0 0
    %1612 = vmatpush1.bf16.xpose.msra.mxu0 0
    %1613 = vmatprep.subr.bf16.mxu0 0
    %1614 = vmatpush1.bf16.xpose.msra.mxu0 0
    %1615 = vmatprep.subr.bf16.mxu0 0
    %1616 = vmatpush1.bf16.xpose.msra.mxu0 0
    %1617 = vmatprep.subr.bf16.mxu0 0
    %1618 = vmatpush1.bf16.xpose.msra.mxu0 0
    %1619 = vmatprep.subr.bf16.mxu0 0
    %1620 = vmatpush1.bf16.xpose.msra.mxu0 0
    %1621 = vmatprep.subr.bf16.mxu0 0
    %1622 = vmatpush1.bf16.xpose.msra.mxu0 0
    %1623 = vmatprep.subr.bf16.mxu0 0
    %1624 = vmatpush1.bf16.xpose.msra.mxu0 0
    %1625 = vmatprep.subr.bf16.mxu0 0
    %1626 = vmatpush1.bf16.xpose.msra.mxu0 0
    %1627 = vmatprep.subr.bf16.mxu0 0
    %1628 = vmatpush1.bf16.xpose.msra.mxu0 0
    %1629 = vmatprep.mubr.bf16.mxu0 0
    %1630 = vmatmul.mubr.bf16.gmra.mrb[0].mxu0 %v1592
    %v1631 = vpop.f32.mrb[0].mxu0
    %v1632 = vadd.f32 0.0, %v1631
    %v1633 = vpop.f32.mrb[0].mxu0
    %v1634 = vpop.f32.mrb[0].mxu0
    %v1635 = vpop.f32.mrb[0].mxu0
    %1636 = vdwg.mxu0
    %v1637 = vsel %vm153, %v1583, -inf
    %1638 = vmax.xlane.f32.xlu0 %v1637
    %v1639 = vpop.xlane.xlu0 %1638
    %v1640 = vsel %vm153, %v1632, -inf
    %1641 = vmax.xlane.f32.xlu0 %v1640
    %v1642 = vpop.xlane.xlu0 %1641
    %v1643 = vsub.f32 %v1583, %v1639
    %v1644 = vsub.f32 %v1632, %v1642
    %v1645 = vmul.f32 %v1643, 1.442695
    %v1646 = vpow.pop %v1645
    %v1647 = vmul.f32 %v1644, 1.442695
    %v1648 = vpow.pop %v1647
    %v1649 = vsel %vm153, %v1646, 0.0
    %1650 = vadd.xlane.f32.xlu0 %v1649
    %v1651 = vpop.xlane.xlu0 %1650
    %v1652 = vsel %vm153, %v1648, 0.0
    %1653 = vadd.xlane.f32.xlu0 %v1652
    %v1654 = vpop.xlane.xlu0 %1653
    %v1655 = vrcp.pop %v1651
    %v1656 = vrcp.pop %v1654
    %v1657 = vmul.f32 %v1646, %v1655
    %v1658 = vmul.f32 %v1648, %v1656
    %v1659 = vpack.c.bf16 %v1657, %v1657
    %v1660 = vpack.c.bf16 %v1658, %v1658
    %1661 = vrot.lane.b32.xlu0 %v1537, 64
    %v1662 = vpop.permute.xlu0 %1661
    %v1664 = vsel %vm153, %v1659, 0
    %v1667 = vsel %vm278, %v1662, 0
    %1669 = vmatprep.subr.bf16.mxu0 0
    %1670 = vmatpush1.bf16.msra.mxu0 %v1667
    %1671 = vmatprep.subr.bf16.mxu0 0
    %1672 = vmatpush1.bf16.msra.mxu0 0
    %1673 = vmatprep.subr.bf16.mxu0 0
    %1674 = vmatpush1.bf16.msra.mxu0 0
    %1675 = vmatprep.subr.bf16.mxu0 0
    %1676 = vmatpush1.bf16.msra.mxu0 0
    %1677 = vmatprep.subr.bf16.mxu0 0
    %1678 = vmatpush1.bf16.msra.mxu0 0
    %1679 = vmatprep.subr.bf16.mxu0 0
    %1680 = vmatpush1.bf16.msra.mxu0 0
    %1681 = vmatprep.subr.bf16.mxu0 0
    %1682 = vmatpush1.bf16.msra.mxu0 0
    %1683 = vmatprep.subr.bf16.mxu0 0
    %1684 = vmatpush1.bf16.msra.mxu0 0
    %1685 = vmatprep.subr.bf16.mxu0 0
    %1686 = vmatpush1.bf16.msra.mxu0 0
    %1687 = vmatprep.subr.bf16.mxu0 0
    %1688 = vmatpush1.bf16.msra.mxu0 0
    %1689 = vmatprep.subr.bf16.mxu0 0
    %1690 = vmatpush1.bf16.msra.mxu0 0
    %1691 = vmatprep.subr.bf16.mxu0 0
    %1692 = vmatpush1.bf16.msra.mxu0 0
    %1693 = vmatprep.subr.bf16.mxu0 0
    %1694 = vmatpush1.bf16.msra.mxu0 0
    %1695 = vmatprep.subr.bf16.mxu0 0
    %1696 = vmatpush1.bf16.msra.mxu0 0
    %1697 = vmatprep.subr.bf16.mxu0 0
    %1698 = vmatpush1.bf16.msra.mxu0 0
    %1699 = vmatprep.subr.bf16.mxu0 0
    %1700 = vmatpush1.bf16.msra.mxu0 0
    %1701 = vmatprep.mubr.bf16.mxu0 0
    %1702 = vmatmul.mubr.bf16.gmra.mrb[0].mxu0 %v1664
    %v1703 = vpop.f32.mrb[0].mxu0
    %v1704 = vadd.f32 0.0, %v1703
    %v1705 = vpop.f32.mrb[0].mxu0
    %v1706 = vpop.f32.mrb[0].mxu0
    %v1707 = vpop.f32.mrb[0].mxu0
    %1708 = vdwg.mxu0
    %1709 = vrot.lane.b32.xlu0 %v1538, 64
    %v1710 = vpop.permute.xlu0 %1709
    %v1712 = vsel %vm153, %v1660, 0
    %v1715 = vsel %vm278, %v1710, 0
    %1717 = vmatprep.subr.bf16.mxu0 0
    %1718 = vmatpush1.bf16.msra.mxu0 %v1715
    %1719 = vmatprep.subr.bf16.mxu0 0
    %1720 = vmatpush1.bf16.msra.mxu0 0
    %1721 = vmatprep.subr.bf16.mxu0 0
    %1722 = vmatpush1.bf16.msra.mxu0 0
    %1723 = vmatprep.subr.bf16.mxu0 0
    %1724 = vmatpush1.bf16.msra.mxu0 0
    %1725 = vmatprep.subr.bf16.mxu0 0
    %1726 = vmatpush1.bf16.msra.mxu0 0
    %1727 = vmatprep.subr.bf16.mxu0 0
    %1728 = vmatpush1.bf16.msra.mxu0 0
    %1729 = vmatprep.subr.bf16.mxu0 0
    %1730 = vmatpush1.bf16.msra.mxu0 0
    %1731 = vmatprep.subr.bf16.mxu0 0
    %1732 = vmatpush1.bf16.msra.mxu0 0
    %1733 = vmatprep.subr.bf16.mxu0 0
    %1734 = vmatpush1.bf16.msra.mxu0 0
    %1735 = vmatprep.subr.bf16.mxu0 0
    %1736 = vmatpush1.bf16.msra.mxu0 0
    %1737 = vmatprep.subr.bf16.mxu0 0
    %1738 = vmatpush1.bf16.msra.mxu0 0
    %1739 = vmatprep.subr.bf16.mxu0 0
    %1740 = vmatpush1.bf16.msra.mxu0 0
    %1741 = vmatprep.subr.bf16.mxu0 0
    %1742 = vmatpush1.bf16.msra.mxu0 0
    %1743 = vmatprep.subr.bf16.mxu0 0
    %1744 = vmatpush1.bf16.msra.mxu0 0
    %1745 = vmatprep.subr.bf16.mxu0 0
    %1746 = vmatpush1.bf16.msra.mxu0 0
    %1747 = vmatprep.subr.bf16.mxu0 0
    %1748 = vmatpush1.bf16.msra.mxu0 0
    %1749 = vmatprep.mubr.bf16.mxu0 0
    %1750 = vmatmul.mubr.bf16.gmra.mrb[0].mxu0 %v1712
    %v1751 = vpop.f32.mrb[0].mxu0
    %v1752 = vadd.f32 0.0, %v1751
    %v1753 = vpop.f32.mrb[0].mxu0
    %v1754 = vpop.f32.mrb[0].mxu0
    %v1755 = vpop.f32.mrb[0].mxu0
    %1756 = vdwg.mxu0
    %v1757 = vpack.c.bf16 %v1752, %v1704
    %s1758 = scalar_lea.vmem %s3, 16
    %v1759 = vld [vmem:[%s1758] sm:$0xf]
    %1760 = vrot.lane.b32.xlu0 %v1537, 120
    %v1761 = vpop.permute.xlu0 %1760
    %1762 = vrot.lane.b32.xlu0 %v1537, 88
    %v1763 = vpop.permute.xlu0 %1762
    %v1765 = vsel %vm153, %v1761, 0
    %v1768 = vsel %vm153, %v1763, 0
    %1770 = vmatprep.subr.bf16.mxu0 0
    %1771 = vmatpush1.bf16.xpose.msra.mxu0 %v1768
    %1772 = vmatprep.subr.bf16.mxu0 0
    %1773 = vmatpush1.bf16.xpose.msra.mxu0 0
    %1774 = vmatprep.subr.bf16.mxu0 0
    %1775 = vmatpush1.bf16.xpose.msra.mxu0 0
    %1776 = vmatprep.subr.bf16.mxu0 0
    %1777 = vmatpush1.bf16.xpose.msra.mxu0 0
    %1778 = vmatprep.subr.bf16.mxu0 0
    %1779 = vmatpush1.bf16.xpose.msra.mxu0 0
    %1780 = vmatprep.subr.bf16.mxu0 0
    %1781 = vmatpush1.bf16.xpose.msra.mxu0 0
    %1782 = vmatprep.subr.bf16.mxu0 0
    %1783 = vmatpush1.bf16.xpose.msra.mxu0 0
    %1784 = vmatprep.subr.bf16.mxu0 0
    %1785 = vmatpush1.bf16.xpose.msra.mxu0 0
    %1786 = vmatprep.subr.bf16.mxu0 0
    %1787 = vmatpush1.bf16.xpose.msra.mxu0 0
    %1788 = vmatprep.subr.bf16.mxu0 0
    %1789 = vmatpush1.bf16.xpose.msra.mxu0 0
    %1790 = vmatprep.subr.bf16.mxu0 0
    %1791 = vmatpush1.bf16.xpose.msra.mxu0 0
    %1792 = vmatprep.subr.bf16.mxu0 0
    %1793 = vmatpush1.bf16.xpose.msra.mxu0 0
    %1794 = vmatprep.subr.bf16.mxu0 0
    %1795 = vmatpush1.bf16.xpose.msra.mxu0 0
    %1796 = vmatprep.subr.bf16.mxu0 0
    %1797 = vmatpush1.bf16.xpose.msra.mxu0 0
    %1798 = vmatprep.subr.bf16.mxu0 0
    %1799 = vmatpush1.bf16.xpose.msra.mxu0 0
    %1800 = vmatprep.subr.bf16.mxu0 0
    %1801 = vmatpush1.bf16.xpose.msra.mxu0 0
    %1802 = vmatprep.mubr.bf16.mxu0 0
    %1803 = vmatmul.mubr.bf16.gmra.mrb[0].mxu0 %v1765
    %v1804 = vpop.f32.mrb[0].mxu0
    %v1805 = vadd.f32 0.0, %v1804
    %v1806 = vpop.f32.mrb[0].mxu0
    %v1807 = vpop.f32.mrb[0].mxu0
    %v1808 = vpop.f32.mrb[0].mxu0
    %1809 = vdwg.mxu0
    %1810 = vrot.lane.b32.xlu0 %v1538, 120
    %v1811 = vpop.permute.xlu0 %1810
    %1812 = vrot.lane.b32.xlu0 %v1538, 88
    %v1813 = vpop.permute.xlu0 %1812
    %v1815 = vsel %vm153, %v1811, 0
    %v1818 = vsel %vm153, %v1813, 0
    %1820 = vmatprep.subr.bf16.mxu0 0
    %1821 = vmatpush1.bf16.xpose.msra.mxu0 %v1818
    %1822 = vmatprep.subr.bf16.mxu0 0
    %1823 = vmatpush1.bf16.xpose.msra.mxu0 0
    %1824 = vmatprep.subr.bf16.mxu0 0
    %1825 = vmatpush1.bf16.xpose.msra.mxu0 0
    %1826 = vmatprep.subr.bf16.mxu0 0
    %1827 = vmatpush1.bf16.xpose.msra.mxu0 0
    %1828 = vmatprep.subr.bf16.mxu0 0
    %1829 = vmatpush1.bf16.xpose.msra.mxu0 0
    %1830 = vmatprep.subr.bf16.mxu0 0
    %1831 = vmatpush1.bf16.xpose.msra.mxu0 0
    %1832 = vmatprep.subr.bf16.mxu0 0
    %1833 = vmatpush1.bf16.xpose.msra.mxu0 0
    %1834 = vmatprep.subr.bf16.mxu0 0
    %1835 = vmatpush1.bf16.xpose.msra.mxu0 0
    %1836 = vmatprep.subr.bf16.mxu0 0
    %1837 = vmatpush1.bf16.xpose.msra.mxu0 0
    %1838 = vmatprep.subr.bf16.mxu0 0
    %1839 = vmatpush1.bf16.xpose.msra.mxu0 0
    %1840 = vmatprep.subr.bf16.mxu0 0
    %1841 = vmatpush1.bf16.xpose.msra.mxu0 0
    %1842 = vmatprep.subr.bf16.mxu0 0
    %1843 = vmatpush1.bf16.xpose.msra.mxu0 0
    %1844 = vmatprep.subr.bf16.mxu0 0
    %1845 = vmatpush1.bf16.xpose.msra.mxu0 0
    %1846 = vmatprep.subr.bf16.mxu0 0
    %1847 = vmatpush1.bf16.xpose.msra.mxu0 0
    %1848 = vmatprep.subr.bf16.mxu0 0
    %1849 = vmatpush1.bf16.xpose.msra.mxu0 0
    %1850 = vmatprep.subr.bf16.mxu0 0
    %1851 = vmatpush1.bf16.xpose.msra.mxu0 0
    %1852 = vmatprep.mubr.bf16.mxu0 0
    %1853 = vmatmul.mubr.bf16.gmra.mrb[0].mxu0 %v1815
    %v1854 = vpop.f32.mrb[0].mxu0
    %v1855 = vadd.f32 0.0, %v1854
    %v1856 = vpop.f32.mrb[0].mxu0
    %v1857 = vpop.f32.mrb[0].mxu0
    %v1858 = vpop.f32.mrb[0].mxu0
    %1859 = vdwg.mxu0
    %v1860 = vsel %vm153, %v1805, -inf
    %1861 = vmax.xlane.f32.xlu0 %v1860
    %v1862 = vpop.xlane.xlu0 %1861
    %v1863 = vsel %vm153, %v1855, -inf
    %1864 = vmax.xlane.f32.xlu0 %v1863
    %v1865 = vpop.xlane.xlu0 %1864
    %v1866 = vsub.f32 %v1805, %v1862
    %v1867 = vsub.f32 %v1855, %v1865
    %v1868 = vmul.f32 %v1866, 1.442695
    %v1869 = vpow.pop %v1868
    %v1870 = vmul.f32 %v1867, 1.442695
    %v1871 = vpow.pop %v1870
    %v1872 = vsel %vm153, %v1869, 0.0
    %1873 = vadd.xlane.f32.xlu0 %v1872
    %v1874 = vpop.xlane.xlu0 %1873
    %v1875 = vsel %vm153, %v1871, 0.0
    %1876 = vadd.xlane.f32.xlu0 %v1875
    %v1877 = vpop.xlane.xlu0 %1876
    %v1878 = vrcp.pop %v1874
    %v1879 = vrcp.pop %v1877
    %v1880 = vmul.f32 %v1869, %v1878
    %v1881 = vmul.f32 %v1871, %v1879
    %v1882 = vpack.c.bf16 %v1880, %v1880
    %v1883 = vpack.c.bf16 %v1881, %v1881
    %1884 = vrot.lane.b32.xlu0 %v1537, 56
    %v1885 = vpop.permute.xlu0 %1884
    %v1887 = vsel %vm153, %v1882, 0
    %v1890 = vsel %vm278, %v1885, 0
    %1892 = vmatprep.subr.bf16.mxu0 0
    %1893 = vmatpush1.bf16.msra.mxu0 %v1890
    %1894 = vmatprep.subr.bf16.mxu0 0
    %1895 = vmatpush1.bf16.msra.mxu0 0
    %1896 = vmatprep.subr.bf16.mxu0 0
    %1897 = vmatpush1.bf16.msra.mxu0 0
    %1898 = vmatprep.subr.bf16.mxu0 0
    %1899 = vmatpush1.bf16.msra.mxu0 0
    %1900 = vmatprep.subr.bf16.mxu0 0
    %1901 = vmatpush1.bf16.msra.mxu0 0
    %1902 = vmatprep.subr.bf16.mxu0 0
    %1903 = vmatpush1.bf16.msra.mxu0 0
    %1904 = vmatprep.subr.bf16.mxu0 0
    %1905 = vmatpush1.bf16.msra.mxu0 0
    %1906 = vmatprep.subr.bf16.mxu0 0
    %1907 = vmatpush1.bf16.msra.mxu0 0
    %1908 = vmatprep.subr.bf16.mxu0 0
    %1909 = vmatpush1.bf16.msra.mxu0 0
    %1910 = vmatprep.subr.bf16.mxu0 0
    %1911 = vmatpush1.bf16.msra.mxu0 0
    %1912 = vmatprep.subr.bf16.mxu0 0
    %1913 = vmatpush1.bf16.msra.mxu0 0
    %1914 = vmatprep.subr.bf16.mxu0 0
    %1915 = vmatpush1.bf16.msra.mxu0 0
    %1916 = vmatprep.subr.bf16.mxu0 0
    %1917 = vmatpush1.bf16.msra.mxu0 0
    %1918 = vmatprep.subr.bf16.mxu0 0
    %1919 = vmatpush1.bf16.msra.mxu0 0
    %1920 = vmatprep.subr.bf16.mxu0 0
    %1921 = vmatpush1.bf16.msra.mxu0 0
    %1922 = vmatprep.subr.bf16.mxu0 0
    %1923 = vmatpush1.bf16.msra.mxu0 0
    %1924 = vmatprep.mubr.bf16.mxu0 0
    %1925 = vmatmul.mubr.bf16.gmra.mrb[0].mxu0 %v1887
    %v1926 = vpop.f32.mrb[0].mxu0
    %v1927 = vadd.f32 0.0, %v1926
    %v1928 = vpop.f32.mrb[0].mxu0
    %v1929 = vpop.f32.mrb[0].mxu0
    %v1930 = vpop.f32.mrb[0].mxu0
    %1931 = vdwg.mxu0
    %1932 = vrot.lane.b32.xlu0 %v1538, 56
    %v1933 = vpop.permute.xlu0 %1932
    %v1935 = vsel %vm153, %v1883, 0
    %v1938 = vsel %vm278, %v1933, 0
    %1940 = vmatprep.subr.bf16.mxu0 0
    %1941 = vmatpush1.bf16.msra.mxu0 %v1938
    %1942 = vmatprep.subr.bf16.mxu0 0
    %1943 = vmatpush1.bf16.msra.mxu0 0
    %1944 = vmatprep.subr.bf16.mxu0 0
    %1945 = vmatpush1.bf16.msra.mxu0 0
    %1946 = vmatprep.subr.bf16.mxu0 0
    %1947 = vmatpush1.bf16.msra.mxu0 0
    %1948 = vmatprep.subr.bf16.mxu0 0
    %1949 = vmatpush1.bf16.msra.mxu0 0
    %1950 = vmatprep.subr.bf16.mxu0 0
    %1951 = vmatpush1.bf16.msra.mxu0 0
    %1952 = vmatprep.subr.bf16.mxu0 0
    %1953 = vmatpush1.bf16.msra.mxu0 0
    %1954 = vmatprep.subr.bf16.mxu0 0
    %1955 = vmatpush1.bf16.msra.mxu0 0
    %1956 = vmatprep.subr.bf16.mxu0 0
    %1957 = vmatpush1.bf16.msra.mxu0 0
    %1958 = vmatprep.subr.bf16.mxu0 0
    %1959 = vmatpush1.bf16.msra.mxu0 0
    %1960 = vmatprep.subr.bf16.mxu0 0
    %1961 = vmatpush1.bf16.msra.mxu0 0
    %1962 = vmatprep.subr.bf16.mxu0 0
    %1963 = vmatpush1.bf16.msra.mxu0 0
    %1964 = vmatprep.subr.bf16.mxu0 0
    %1965 = vmatpush1.bf16.msra.mxu0 0
    %1966 = vmatprep.subr.bf16.mxu0 0
    %1967 = vmatpush1.bf16.msra.mxu0 0
    %1968 = vmatprep.subr.bf16.mxu0 0
    %1969 = vmatpush1.bf16.msra.mxu0 0
    %1970 = vmatprep.subr.bf16.mxu0 0
    %1971 = vmatpush1.bf16.msra.mxu0 0
    %1972 = vmatprep.mubr.bf16.mxu0 0
    %1973 = vmatmul.mubr.bf16.gmra.mrb[0].mxu0 %v1935
    %v1974 = vpop.f32.mrb[0].mxu0
    %v1975 = vadd.f32 0.0, %v1974
    %v1976 = vpop.f32.mrb[0].mxu0
    %v1977 = vpop.f32.mrb[0].mxu0
    %v1978 = vpop.f32.mrb[0].mxu0
    %1979 = vdwg.mxu0
    %v1980 = vpack.c.bf16 %v1975, %v1927
    %s1981 = scalar_lea.vmem %s3, 20
    %v1982 = vld [vmem:[%s1981] sm:$0xf]
    %v1984 = vsel %vm153, %v1980, 0
    %v1987 = vsel %vm278, %v1982, 0
    %1989 = vmatprep.subr.bf16.mxu0 0
    %1990 = vmatpush1.bf16.msra.mxu0 %v1987
    %1991 = vmatprep.subr.bf16.mxu0 0
    %1992 = vmatpush1.bf16.msra.mxu0 0
    %1993 = vmatprep.subr.bf16.mxu0 0
    %1994 = vmatpush1.bf16.msra.mxu0 0
    %1995 = vmatprep.subr.bf16.mxu0 0
    %1996 = vmatpush1.bf16.msra.mxu0 0
    %1997 = vmatprep.subr.bf16.mxu0 0
    %1998 = vmatpush1.bf16.msra.mxu0 0
    %1999 = vmatprep.subr.bf16.mxu0 0
    %2000 = vmatpush1.bf16.msra.mxu0 0
    %2001 = vmatprep.subr.bf16.mxu0 0
    %2002 = vmatpush1.bf16.msra.mxu0 0
    %2003 = vmatprep.subr.bf16.mxu0 0
    %2004 = vmatpush1.bf16.msra.mxu0 0
    %2005 = vmatprep.subr.bf16.mxu0 0
    %2006 = vmatpush1.bf16.msra.mxu0 0
    %2007 = vmatprep.subr.bf16.mxu0 0
    %2008 = vmatpush1.bf16.msra.mxu0 0
    %2009 = vmatprep.subr.bf16.mxu0 0
    %2010 = vmatpush1.bf16.msra.mxu0 0
    %2011 = vmatprep.subr.bf16.mxu0 0
    %2012 = vmatpush1.bf16.msra.mxu0 0
    %2013 = vmatprep.subr.bf16.mxu0 0
    %2014 = vmatpush1.bf16.msra.mxu0 0
    %2015 = vmatprep.subr.bf16.mxu0 0
    %2016 = vmatpush1.bf16.msra.mxu0 0
    %2017 = vmatprep.subr.bf16.mxu0 0
    %2018 = vmatpush1.bf16.msra.mxu0 0
    %2019 = vmatprep.subr.bf16.mxu0 0
    %2020 = vmatpush1.bf16.msra.mxu0 0
    %2021 = vmatprep.mubr.bf16.mxu0 0
    %2022 = vmatmul.mubr.bf16.gmra.mrb[0].mxu0 %v1984
    %v2023 = vpop.f32.mrb[0].mxu0
    %v2024 = vadd.f32 0.0, %v2023
    %v2025 = vpop.f32.mrb[0].mxu0
    %v2026 = vpop.f32.mrb[0].mxu0
    %v2027 = vadd.f32 0.0, %v2026
    %v2028 = vpop.f32.mrb[0].mxu0
    %2029 = vdwg.mxu0
    %v2031 = vsel %vm153, %v1757, 0
    %v2034 = vsel %vm278, %v1759, 0
    %2036 = vmatprep.subr.bf16.mxu0 0
    %2037 = vmatpush1.bf16.msra.mxu0 %v2034
    %2038 = vmatprep.subr.bf16.mxu0 0
    %2039 = vmatpush1.bf16.msra.mxu0 0
    %2040 = vmatprep.subr.bf16.mxu0 0
    %2041 = vmatpush1.bf16.msra.mxu0 0
    %2042 = vmatprep.subr.bf16.mxu0 0
    %2043 = vmatpush1.bf16.msra.mxu0 0
    %2044 = vmatprep.subr.bf16.mxu0 0
    %2045 = vmatpush1.bf16.msra.mxu0 0
    %2046 = vmatprep.subr.bf16.mxu0 0
    %2047 = vmatpush1.bf16.msra.mxu0 0
    %2048 = vmatprep.subr.bf16.mxu0 0
    %2049 = vmatpush1.bf16.msra.mxu0 0
    %2050 = vmatprep.subr.bf16.mxu0 0
    %2051 = vmatpush1.bf16.msra.mxu0 0
    %2052 = vmatprep.subr.bf16.mxu0 0
    %2053 = vmatpush1.bf16.msra.mxu0 0
    %2054 = vmatprep.subr.bf16.mxu0 0
    %2055 = vmatpush1.bf16.msra.mxu0 0
    %2056 = vmatprep.subr.bf16.mxu0 0
    %2057 = vmatpush1.bf16.msra.mxu0 0
    %2058 = vmatprep.subr.bf16.mxu0 0
    %2059 = vmatpush1.bf16.msra.mxu0 0
    %2060 = vmatprep.subr.bf16.mxu0 0
    %2061 = vmatpush1.bf16.msra.mxu0 0
    %2062 = vmatprep.subr.bf16.mxu0 0
    %2063 = vmatpush1.bf16.msra.mxu0 0
    %2064 = vmatprep.subr.bf16.mxu0 0
    %2065 = vmatpush1.bf16.msra.mxu0 0
    %2066 = vmatprep.subr.bf16.mxu0 0
    %2067 = vmatpush1.bf16.msra.mxu0 0
    %2068 = vmatprep.mubr.bf16.mxu0 0
    %2069 = vmatmul.mubr.bf16.gmra.mrb[0].mxu0 %v2031
    %v2070 = vpop.f32.mrb[0].mxu0
    %v2071 = vadd.f32 %v2024, %v2070
    %v2072 = vpop.f32.mrb[0].mxu0
    %v2073 = vpop.f32.mrb[0].mxu0
    %v2074 = vadd.f32 %v2027, %v2073
    %v2075 = vpop.f32.mrb[0].mxu0
    %2076 = vdwg.mxu0
    %2077 = vrot.lane.b32.xlu0 %v1537, 112
    %v2078 = vpop.permute.xlu0 %2077
    %2079 = vrot.lane.b32.xlu0 %v1537, 80
    %v2080 = vpop.permute.xlu0 %2079
    %v2082 = vsel %vm153, %v2078, 0
    %v2085 = vsel %vm153, %v2080, 0
    %2087 = vmatprep.subr.bf16.mxu0 0
    %2088 = vmatpush1.bf16.xpose.msra.mxu0 %v2085
    %2089 = vmatprep.subr.bf16.mxu0 0
    %2090 = vmatpush1.bf16.xpose.msra.mxu0 0
    %2091 = vmatprep.subr.bf16.mxu0 0
    %2092 = vmatpush1.bf16.xpose.msra.mxu0 0
    %2093 = vmatprep.subr.bf16.mxu0 0
    %2094 = vmatpush1.bf16.xpose.msra.mxu0 0
    %2095 = vmatprep.subr.bf16.mxu0 0
    %2096 = vmatpush1.bf16.xpose.msra.mxu0 0
    %2097 = vmatprep.subr.bf16.mxu0 0
    %2098 = vmatpush1.bf16.xpose.msra.mxu0 0
    %2099 = vmatprep.subr.bf16.mxu0 0
    %2100 = vmatpush1.bf16.xpose.msra.mxu0 0
    %2101 = vmatprep.subr.bf16.mxu0 0
    %2102 = vmatpush1.bf16.xpose.msra.mxu0 0
    %2103 = vmatprep.subr.bf16.mxu0 0
    %2104 = vmatpush1.bf16.xpose.msra.mxu0 0
    %2105 = vmatprep.subr.bf16.mxu0 0
    %2106 = vmatpush1.bf16.xpose.msra.mxu0 0
    %2107 = vmatprep.subr.bf16.mxu0 0
    %2108 = vmatpush1.bf16.xpose.msra.mxu0 0
    %2109 = vmatprep.subr.bf16.mxu0 0
    %2110 = vmatpush1.bf16.xpose.msra.mxu0 0
    %2111 = vmatprep.subr.bf16.mxu0 0
    %2112 = vmatpush1.bf16.xpose.msra.mxu0 0
    %2113 = vmatprep.subr.bf16.mxu0 0
    %2114 = vmatpush1.bf16.xpose.msra.mxu0 0
    %2115 = vmatprep.subr.bf16.mxu0 0
    %2116 = vmatpush1.bf16.xpose.msra.mxu0 0
    %2117 = vmatprep.subr.bf16.mxu0 0
    %2118 = vmatpush1.bf16.xpose.msra.mxu0 0
    %2119 = vmatprep.mubr.bf16.mxu0 0
    %2120 = vmatmul.mubr.bf16.gmra.mrb[0].mxu0 %v2082
    %v2121 = vpop.f32.mrb[0].mxu0
    %v2122 = vadd.f32 0.0, %v2121
    %v2123 = vpop.f32.mrb[0].mxu0
    %v2124 = vpop.f32.mrb[0].mxu0
    %v2125 = vpop.f32.mrb[0].mxu0
    %2126 = vdwg.mxu0
    %2127 = vrot.lane.b32.xlu0 %v1538, 112
    %v2128 = vpop.permute.xlu0 %2127
    %2129 = vrot.lane.b32.xlu0 %v1538, 80
    %v2130 = vpop.permute.xlu0 %2129
    %v2132 = vsel %vm153, %v2128, 0
    %v2135 = vsel %vm153, %v2130, 0
    %2137 = vmatprep.subr.bf16.mxu0 0
    %2138 = vmatpush1.bf16.xpose.msra.mxu0 %v2135
    %2139 = vmatprep.subr.bf16.mxu0 0
    %2140 = vmatpush1.bf16.xpose.msra.mxu0 0
    %2141 = vmatprep.subr.bf16.mxu0 0
    %2142 = vmatpush1.bf16.xpose.msra.mxu0 0
    %2143 = vmatprep.subr.bf16.mxu0 0
    %2144 = vmatpush1.bf16.xpose.msra.mxu0 0
    %2145 = vmatprep.subr.bf16.mxu0 0
    %2146 = vmatpush1.bf16.xpose.msra.mxu0 0
    %2147 = vmatprep.subr.bf16.mxu0 0
    %2148 = vmatpush1.bf16.xpose.msra.mxu0 0
    %2149 = vmatprep.subr.bf16.mxu0 0
    %2150 = vmatpush1.bf16.xpose.msra.mxu0 0
    %2151 = vmatprep.subr.bf16.mxu0 0
    %2152 = vmatpush1.bf16.xpose.msra.mxu0 0
    %2153 = vmatprep.subr.bf16.mxu0 0
    %2154 = vmatpush1.bf16.xpose.msra.mxu0 0
    %2155 = vmatprep.subr.bf16.mxu0 0
    %2156 = vmatpush1.bf16.xpose.msra.mxu0 0
    %2157 = vmatprep.subr.bf16.mxu0 0
    %2158 = vmatpush1.bf16.xpose.msra.mxu0 0
    %2159 = vmatprep.subr.bf16.mxu0 0
    %2160 = vmatpush1.bf16.xpose.msra.mxu0 0
    %2161 = vmatprep.subr.bf16.mxu0 0
    %2162 = vmatpush1.bf16.xpose.msra.mxu0 0
    %2163 = vmatprep.subr.bf16.mxu0 0
    %2164 = vmatpush1.bf16.xpose.msra.mxu0 0
    %2165 = vmatprep.subr.bf16.mxu0 0
    %2166 = vmatpush1.bf16.xpose.msra.mxu0 0
    %2167 = vmatprep.subr.bf16.mxu0 0
    %2168 = vmatpush1.bf16.xpose.msra.mxu0 0
    %2169 = vmatprep.mubr.bf16.mxu0 0
    %2170 = vmatmul.mubr.bf16.gmra.mrb[0].mxu0 %v2132
    %v2171 = vpop.f32.mrb[0].mxu0
    %v2172 = vadd.f32 0.0, %v2171
    %v2173 = vpop.f32.mrb[0].mxu0
    %v2174 = vpop.f32.mrb[0].mxu0
    %v2175 = vpop.f32.mrb[0].mxu0
    %2176 = vdwg.mxu0
    %v2177 = vsel %vm153, %v2122, -inf
    %2178 = vmax.xlane.f32.xlu0 %v2177
    %v2179 = vpop.xlane.xlu0 %2178
    %v2180 = vsel %vm153, %v2172, -inf
    %2181 = vmax.xlane.f32.xlu0 %v2180
    %v2182 = vpop.xlane.xlu0 %2181
    %v2183 = vsub.f32 %v2122, %v2179
    %v2184 = vsub.f32 %v2172, %v2182
    %v2185 = vmul.f32 %v2183, 1.442695
    %v2186 = vpow.pop %v2185
    %v2187 = vmul.f32 %v2184, 1.442695
    %v2188 = vpow.pop %v2187
    %v2189 = vsel %vm153, %v2186, 0.0
    %2190 = vadd.xlane.f32.xlu0 %v2189
    %v2191 = vpop.xlane.xlu0 %2190
    %v2192 = vsel %vm153, %v2188, 0.0
    %2193 = vadd.xlane.f32.xlu0 %v2192
    %v2194 = vpop.xlane.xlu0 %2193
    %v2195 = vrcp.pop %v2191
    %v2196 = vrcp.pop %v2194
    %v2197 = vmul.f32 %v2186, %v2195
    %v2198 = vmul.f32 %v2188, %v2196
    %v2199 = vpack.c.bf16 %v2197, %v2197
    %v2200 = vpack.c.bf16 %v2198, %v2198
    %2201 = vrot.lane.b32.xlu0 %v1537, 48
    %v2202 = vpop.permute.xlu0 %2201
    %v2204 = vsel %vm153, %v2199, 0
    %v2207 = vsel %vm278, %v2202, 0
    %2209 = vmatprep.subr.bf16.mxu0 0
    %2210 = vmatpush1.bf16.msra.mxu0 %v2207
    %2211 = vmatprep.subr.bf16.mxu0 0
    %2212 = vmatpush1.bf16.msra.mxu0 0
    %2213 = vmatprep.subr.bf16.mxu0 0
    %2214 = vmatpush1.bf16.msra.mxu0 0
    %2215 = vmatprep.subr.bf16.mxu0 0
    %2216 = vmatpush1.bf16.msra.mxu0 0
    %2217 = vmatprep.subr.bf16.mxu0 0
    %2218 = vmatpush1.bf16.msra.mxu0 0
    %2219 = vmatprep.subr.bf16.mxu0 0
    %2220 = vmatpush1.bf16.msra.mxu0 0
    %2221 = vmatprep.subr.bf16.mxu0 0
    %2222 = vmatpush1.bf16.msra.mxu0 0
    %2223 = vmatprep.subr.bf16.mxu0 0
    %2224 = vmatpush1.bf16.msra.mxu0 0
    %2225 = vmatprep.subr.bf16.mxu0 0
    %2226 = vmatpush1.bf16.msra.mxu0 0
    %2227 = vmatprep.subr.bf16.mxu0 0
    %2228 = vmatpush1.bf16.msra.mxu0 0
    %2229 = vmatprep.subr.bf16.mxu0 0
    %2230 = vmatpush1.bf16.msra.mxu0 0
    %2231 = vmatprep.subr.bf16.mxu0 0
    %2232 = vmatpush1.bf16.msra.mxu0 0
    %2233 = vmatprep.subr.bf16.mxu0 0
    %2234 = vmatpush1.bf16.msra.mxu0 0
    %2235 = vmatprep.subr.bf16.mxu0 0
    %2236 = vmatpush1.bf16.msra.mxu0 0
    %2237 = vmatprep.subr.bf16.mxu0 0
    %2238 = vmatpush1.bf16.msra.mxu0 0
    %2239 = vmatprep.subr.bf16.mxu0 0
    %2240 = vmatpush1.bf16.msra.mxu0 0
    %2241 = vmatprep.mubr.bf16.mxu0 0
    %2242 = vmatmul.mubr.bf16.gmra.mrb[0].mxu0 %v2204
    %v2243 = vpop.f32.mrb[0].mxu0
    %v2244 = vadd.f32 0.0, %v2243
    %v2245 = vpop.f32.mrb[0].mxu0
    %v2246 = vpop.f32.mrb[0].mxu0
    %v2247 = vpop.f32.mrb[0].mxu0
    %2248 = vdwg.mxu0
    %2249 = vrot.lane.b32.xlu0 %v1538, 48
    %v2250 = vpop.permute.xlu0 %2249
    %v2252 = vsel %vm153, %v2200, 0
    %v2255 = vsel %vm278, %v2250, 0
    %2257 = vmatprep.subr.bf16.mxu0 0
    %2258 = vmatpush1.bf16.msra.mxu0 %v2255
    %2259 = vmatprep.subr.bf16.mxu0 0
    %2260 = vmatpush1.bf16.msra.mxu0 0
    %2261 = vmatprep.subr.bf16.mxu0 0
    %2262 = vmatpush1.bf16.msra.mxu0 0
    %2263 = vmatprep.subr.bf16.mxu0 0
    %2264 = vmatpush1.bf16.msra.mxu0 0
    %2265 = vmatprep.subr.bf16.mxu0 0
    %2266 = vmatpush1.bf16.msra.mxu0 0
    %2267 = vmatprep.subr.bf16.mxu0 0
    %2268 = vmatpush1.bf16.msra.mxu0 0
    %2269 = vmatprep.subr.bf16.mxu0 0
    %2270 = vmatpush1.bf16.msra.mxu0 0
    %2271 = vmatprep.subr.bf16.mxu0 0
    %2272 = vmatpush1.bf16.msra.mxu0 0
    %2273 = vmatprep.subr.bf16.mxu0 0
    %2274 = vmatpush1.bf16.msra.mxu0 0
    %2275 = vmatprep.subr.bf16.mxu0 0
    %2276 = vmatpush1.bf16.msra.mxu0 0
    %2277 = vmatprep.subr.bf16.mxu0 0
    %2278 = vmatpush1.bf16.msra.mxu0 0
    %2279 = vmatprep.subr.bf16.mxu0 0
    %2280 = vmatpush1.bf16.msra.mxu0 0
    %2281 = vmatprep.subr.bf16.mxu0 0
    %2282 = vmatpush1.bf16.msra.mxu0 0
    %2283 = vmatprep.subr.bf16.mxu0 0
    %2284 = vmatpush1.bf16.msra.mxu0 0
    %2285 = vmatprep.subr.bf16.mxu0 0
    %2286 = vmatpush1.bf16.msra.mxu0 0
    %2287 = vmatprep.subr.bf16.mxu0 0
    %2288 = vmatpush1.bf16.msra.mxu0 0
    %2289 = vmatprep.mubr.bf16.mxu0 0
    %2290 = vmatmul.mubr.bf16.gmra.mrb[0].mxu0 %v2252
    %v2291 = vpop.f32.mrb[0].mxu0
    %v2292 = vadd.f32 0.0, %v2291
    %v2293 = vpop.f32.mrb[0].mxu0
    %v2294 = vpop.f32.mrb[0].mxu0
    %v2295 = vpop.f32.mrb[0].mxu0
    %2296 = vdwg.mxu0
    %v2297 = vpack.c.bf16 %v2292, %v2244
    %s2298 = scalar_lea.vmem %s3, 24
    %v2299 = vld [vmem:[%s2298] sm:$0xf]
    %v2301 = vsel %vm153, %v2297, 0
    %v2304 = vsel %vm278, %v2299, 0
    %2306 = vmatprep.subr.bf16.mxu0 0
    %2307 = vmatpush1.bf16.msra.mxu0 %v2304
    %2308 = vmatprep.subr.bf16.mxu0 0
    %2309 = vmatpush1.bf16.msra.mxu0 0
    %2310 = vmatprep.subr.bf16.mxu0 0
    %2311 = vmatpush1.bf16.msra.mxu0 0
    %2312 = vmatprep.subr.bf16.mxu0 0
    %2313 = vmatpush1.bf16.msra.mxu0 0
    %2314 = vmatprep.subr.bf16.mxu0 0
    %2315 = vmatpush1.bf16.msra.mxu0 0
    %2316 = vmatprep.subr.bf16.mxu0 0
    %2317 = vmatpush1.bf16.msra.mxu0 0
    %2318 = vmatprep.subr.bf16.mxu0 0
    %2319 = vmatpush1.bf16.msra.mxu0 0
    %2320 = vmatprep.subr.bf16.mxu0 0
    %2321 = vmatpush1.bf16.msra.mxu0 0
    %2322 = vmatprep.subr.bf16.mxu0 0
    %2323 = vmatpush1.bf16.msra.mxu0 0
    %2324 = vmatprep.subr.bf16.mxu0 0
    %2325 = vmatpush1.bf16.msra.mxu0 0
    %2326 = vmatprep.subr.bf16.mxu0 0
    %2327 = vmatpush1.bf16.msra.mxu0 0
    %2328 = vmatprep.subr.bf16.mxu0 0
    %2329 = vmatpush1.bf16.msra.mxu0 0
    %2330 = vmatprep.subr.bf16.mxu0 0
    %2331 = vmatpush1.bf16.msra.mxu0 0
    %2332 = vmatprep.subr.bf16.mxu0 0
    %2333 = vmatpush1.bf16.msra.mxu0 0
    %2334 = vmatprep.subr.bf16.mxu0 0
    %2335 = vmatpush1.bf16.msra.mxu0 0
    %2336 = vmatprep.subr.bf16.mxu0 0
    %2337 = vmatpush1.bf16.msra.mxu0 0
    %2338 = vmatprep.mubr.bf16.mxu0 0
    %2339 = vmatmul.mubr.bf16.gmra.mrb[0].mxu0 %v2301
    %v2340 = vpop.f32.mrb[0].mxu0
    %v2341 = vadd.f32 0.0, %v2340
    %v2342 = vpop.f32.mrb[0].mxu0
    %v2343 = vpop.f32.mrb[0].mxu0
    %v2344 = vadd.f32 0.0, %v2343
    %v2345 = vpop.f32.mrb[0].mxu0
    %2346 = vdwg.mxu0
    %v2347 = vadd.f32 %v2071, %v2341
    %v2348 = vadd.f32 %v2074, %v2344
    %2349 = vrot.lane.b32.xlu0 %v1537, 104
    %v2350 = vpop.permute.xlu0 %2349
    %2351 = vrot.lane.b32.xlu0 %v1537, 72
    %v2352 = vpop.permute.xlu0 %2351
    %v2354 = vsel %vm153, %v2350, 0
    %v2357 = vsel %vm153, %v2352, 0
    %2359 = vmatprep.subr.bf16.mxu0 0
    %2360 = vmatpush1.bf16.xpose.msra.mxu0 %v2357
    %2361 = vmatprep.subr.bf16.mxu0 0
    %2362 = vmatpush1.bf16.xpose.msra.mxu0 0
    %2363 = vmatprep.subr.bf16.mxu0 0
    %2364 = vmatpush1.bf16.xpose.msra.mxu0 0
    %2365 = vmatprep.subr.bf16.mxu0 0
    %2366 = vmatpush1.bf16.xpose.msra.mxu0 0
    %2367 = vmatprep.subr.bf16.mxu0 0
    %2368 = vmatpush1.bf16.xpose.msra.mxu0 0
    %2369 = vmatprep.subr.bf16.mxu0 0
    %2370 = vmatpush1.bf16.xpose.msra.mxu0 0
    %2371 = vmatprep.subr.bf16.mxu0 0
    %2372 = vmatpush1.bf16.xpose.msra.mxu0 0
    %2373 = vmatprep.subr.bf16.mxu0 0
    %2374 = vmatpush1.bf16.xpose.msra.mxu0 0
    %2375 = vmatprep.subr.bf16.mxu0 0
    %2376 = vmatpush1.bf16.xpose.msra.mxu0 0
    %2377 = vmatprep.subr.bf16.mxu0 0
    %2378 = vmatpush1.bf16.xpose.msra.mxu0 0
    %2379 = vmatprep.subr.bf16.mxu0 0
    %2380 = vmatpush1.bf16.xpose.msra.mxu0 0
    %2381 = vmatprep.subr.bf16.mxu0 0
    %2382 = vmatpush1.bf16.xpose.msra.mxu0 0
    %2383 = vmatprep.subr.bf16.mxu0 0
    %2384 = vmatpush1.bf16.xpose.msra.mxu0 0
    %2385 = vmatprep.subr.bf16.mxu0 0
    %2386 = vmatpush1.bf16.xpose.msra.mxu0 0
    %2387 = vmatprep.subr.bf16.mxu0 0
    %2388 = vmatpush1.bf16.xpose.msra.mxu0 0
    %2389 = vmatprep.subr.bf16.mxu0 0
    %2390 = vmatpush1.bf16.xpose.msra.mxu0 0
    %2391 = vmatprep.mubr.bf16.mxu0 0
    %2392 = vmatmul.mubr.bf16.gmra.mrb[0].mxu0 %v2354
    %v2393 = vpop.f32.mrb[0].mxu0
    %v2394 = vadd.f32 0.0, %v2393
    %v2395 = vpop.f32.mrb[0].mxu0
    %v2396 = vpop.f32.mrb[0].mxu0
    %v2397 = vpop.f32.mrb[0].mxu0
    %2398 = vdwg.mxu0
    %2399 = vrot.lane.b32.xlu0 %v1538, 104
    %v2400 = vpop.permute.xlu0 %2399
    %2401 = vrot.lane.b32.xlu0 %v1538, 72
    %v2402 = vpop.permute.xlu0 %2401
    %v2404 = vsel %vm153, %v2400, 0
    %v2407 = vsel %vm153, %v2402, 0
    %2409 = vmatprep.subr.bf16.mxu0 0
    %2410 = vmatpush1.bf16.xpose.msra.mxu0 %v2407
    %2411 = vmatprep.subr.bf16.mxu0 0
    %2412 = vmatpush1.bf16.xpose.msra.mxu0 0
    %2413 = vmatprep.subr.bf16.mxu0 0
    %2414 = vmatpush1.bf16.xpose.msra.mxu0 0
    %2415 = vmatprep.subr.bf16.mxu0 0
    %2416 = vmatpush1.bf16.xpose.msra.mxu0 0
    %2417 = vmatprep.subr.bf16.mxu0 0
    %2418 = vmatpush1.bf16.xpose.msra.mxu0 0
    %2419 = vmatprep.subr.bf16.mxu0 0
    %2420 = vmatpush1.bf16.xpose.msra.mxu0 0
    %2421 = vmatprep.subr.bf16.mxu0 0
    %2422 = vmatpush1.bf16.xpose.msra.mxu0 0
    %2423 = vmatprep.subr.bf16.mxu0 0
    %2424 = vmatpush1.bf16.xpose.msra.mxu0 0
    %2425 = vmatprep.subr.bf16.mxu0 0
    %2426 = vmatpush1.bf16.xpose.msra.mxu0 0
    %2427 = vmatprep.subr.bf16.mxu0 0
    %2428 = vmatpush1.bf16.xpose.msra.mxu0 0
    %2429 = vmatprep.subr.bf16.mxu0 0
    %2430 = vmatpush1.bf16.xpose.msra.mxu0 0
    %2431 = vmatprep.subr.bf16.mxu0 0
    %2432 = vmatpush1.bf16.xpose.msra.mxu0 0
    %2433 = vmatprep.subr.bf16.mxu0 0
    %2434 = vmatpush1.bf16.xpose.msra.mxu0 0
    %2435 = vmatprep.subr.bf16.mxu0 0
    %2436 = vmatpush1.bf16.xpose.msra.mxu0 0
    %2437 = vmatprep.subr.bf16.mxu0 0
    %2438 = vmatpush1.bf16.xpose.msra.mxu0 0
    %2439 = vmatprep.subr.bf16.mxu0 0
    %2440 = vmatpush1.bf16.xpose.msra.mxu0 0
    %2441 = vmatprep.mubr.bf16.mxu0 0
    %2442 = vmatmul.mubr.bf16.gmra.mrb[0].mxu0 %v2404
    %v2443 = vpop.f32.mrb[0].mxu0
    %v2444 = vadd.f32 0.0, %v2443
    %v2445 = vpop.f32.mrb[0].mxu0
    %v2446 = vpop.f32.mrb[0].mxu0
    %v2447 = vpop.f32.mrb[0].mxu0
    %2448 = vdwg.mxu0
    %v2449 = vsel %vm153, %v2394, -inf
    %2450 = vmax.xlane.f32.xlu0 %v2449
    %v2451 = vpop.xlane.xlu0 %2450
    %v2452 = vsel %vm153, %v2444, -inf
    %2453 = vmax.xlane.f32.xlu0 %v2452
    %v2454 = vpop.xlane.xlu0 %2453
    %v2455 = vsub.f32 %v2394, %v2451
    %v2456 = vsub.f32 %v2444, %v2454
    %v2457 = vmul.f32 %v2455, 1.442695
    %v2458 = vpow.pop %v2457
    %v2459 = vmul.f32 %v2456, 1.442695
    %v2460 = vpow.pop %v2459
    %v2461 = vsel %vm153, %v2458, 0.0
    %2462 = vadd.xlane.f32.xlu0 %v2461
    %v2463 = vpop.xlane.xlu0 %2462
    %v2464 = vsel %vm153, %v2460, 0.0
    %2465 = vadd.xlane.f32.xlu0 %v2464
    %v2466 = vpop.xlane.xlu0 %2465
    %v2467 = vrcp.pop %v2463
    %v2468 = vrcp.pop %v2466
    %v2469 = vmul.f32 %v2458, %v2467
    %v2470 = vmul.f32 %v2460, %v2468
    %v2471 = vpack.c.bf16 %v2469, %v2469
    %v2472 = vpack.c.bf16 %v2470, %v2470
    %2473 = vrot.lane.b32.xlu0 %v1537, 40
    %v2474 = vpop.permute.xlu0 %2473
    %v2476 = vsel %vm153, %v2471, 0
    %v2479 = vsel %vm278, %v2474, 0
    %2481 = vmatprep.subr.bf16.mxu0 0
    %2482 = vmatpush1.bf16.msra.mxu0 %v2479
    %2483 = vmatprep.subr.bf16.mxu0 0
    %2484 = vmatpush1.bf16.msra.mxu0 0
    %2485 = vmatprep.subr.bf16.mxu0 0
    %2486 = vmatpush1.bf16.msra.mxu0 0
    %2487 = vmatprep.subr.bf16.mxu0 0
    %2488 = vmatpush1.bf16.msra.mxu0 0
    %2489 = vmatprep.subr.bf16.mxu0 0
    %2490 = vmatpush1.bf16.msra.mxu0 0
    %2491 = vmatprep.subr.bf16.mxu0 0
    %2492 = vmatpush1.bf16.msra.mxu0 0
    %2493 = vmatprep.subr.bf16.mxu0 0
    %2494 = vmatpush1.bf16.msra.mxu0 0
    %2495 = vmatprep.subr.bf16.mxu0 0
    %2496 = vmatpush1.bf16.msra.mxu0 0
    %2497 = vmatprep.subr.bf16.mxu0 0
    %2498 = vmatpush1.bf16.msra.mxu0 0
    %2499 = vmatprep.subr.bf16.mxu0 0
    %2500 = vmatpush1.bf16.msra.mxu0 0
    %2501 = vmatprep.subr.bf16.mxu0 0
    %2502 = vmatpush1.bf16.msra.mxu0 0
    %2503 = vmatprep.subr.bf16.mxu0 0
    %2504 = vmatpush1.bf16.msra.mxu0 0
    %2505 = vmatprep.subr.bf16.mxu0 0
    %2506 = vmatpush1.bf16.msra.mxu0 0
    %2507 = vmatprep.subr.bf16.mxu0 0
    %2508 = vmatpush1.bf16.msra.mxu0 0
    %2509 = vmatprep.subr.bf16.mxu0 0
    %2510 = vmatpush1.bf16.msra.mxu0 0
    %2511 = vmatprep.subr.bf16.mxu0 0
    %2512 = vmatpush1.bf16.msra.mxu0 0
    %2513 = vmatprep.mubr.bf16.mxu0 0
    %2514 = vmatmul.mubr.bf16.gmra.mrb[0].mxu0 %v2476
    %v2515 = vpop.f32.mrb[0].mxu0
    %v2516 = vadd.f32 0.0, %v2515
    %v2517 = vpop.f32.mrb[0].mxu0
    %v2518 = vpop.f32.mrb[0].mxu0
    %v2519 = vpop.f32.mrb[0].mxu0
    %2520 = vdwg.mxu0
    %2521 = vrot.lane.b32.xlu0 %v1538, 40
    %v2522 = vpop.permute.xlu0 %2521
    %v2524 = vsel %vm153, %v2472, 0
    %v2527 = vsel %vm278, %v2522, 0
    %2529 = vmatprep.subr.bf16.mxu0 0
    %2530 = vmatpush1.bf16.msra.mxu0 %v2527
    %2531 = vmatprep.subr.bf16.mxu0 0
    %2532 = vmatpush1.bf16.msra.mxu0 0
    %2533 = vmatprep.subr.bf16.mxu0 0
    %2534 = vmatpush1.bf16.msra.mxu0 0
    %2535 = vmatprep.subr.bf16.mxu0 0
    %2536 = vmatpush1.bf16.msra.mxu0 0
    %2537 = vmatprep.subr.bf16.mxu0 0
    %2538 = vmatpush1.bf16.msra.mxu0 0
    %2539 = vmatprep.subr.bf16.mxu0 0
    %2540 = vmatpush1.bf16.msra.mxu0 0
    %2541 = vmatprep.subr.bf16.mxu0 0
    %2542 = vmatpush1.bf16.msra.mxu0 0
    %2543 = vmatprep.subr.bf16.mxu0 0
    %2544 = vmatpush1.bf16.msra.mxu0 0
    %2545 = vmatprep.subr.bf16.mxu0 0
    %2546 = vmatpush1.bf16.msra.mxu0 0
    %2547 = vmatprep.subr.bf16.mxu0 0
    %2548 = vmatpush1.bf16.msra.mxu0 0
    %2549 = vmatprep.subr.bf16.mxu0 0
    %2550 = vmatpush1.bf16.msra.mxu0 0
    %2551 = vmatprep.subr.bf16.mxu0 0
    %2552 = vmatpush1.bf16.msra.mxu0 0
    %2553 = vmatprep.subr.bf16.mxu0 0
    %2554 = vmatpush1.bf16.msra.mxu0 0
    %2555 = vmatprep.subr.bf16.mxu0 0
    %2556 = vmatpush1.bf16.msra.mxu0 0
    %2557 = vmatprep.subr.bf16.mxu0 0
    %2558 = vmatpush1.bf16.msra.mxu0 0
    %2559 = vmatprep.subr.bf16.mxu0 0
    %2560 = vmatpush1.bf16.msra.mxu0 0
    %2561 = vmatprep.mubr.bf16.mxu0 0
    %2562 = vmatmul.mubr.bf16.gmra.mrb[0].mxu0 %v2524
    %v2563 = vpop.f32.mrb[0].mxu0
    %v2564 = vadd.f32 0.0, %v2563
    %v2565 = vpop.f32.mrb[0].mxu0
    %v2566 = vpop.f32.mrb[0].mxu0
    %v2567 = vpop.f32.mrb[0].mxu0
    %2568 = vdwg.mxu0
    %v2569 = vpack.c.bf16 %v2564, %v2516
    %s2570 = scalar_lea.vmem %s3, 28
    %v2571 = vld [vmem:[%s2570] sm:$0xf]
    %v2573 = vsel %vm153, %v2569, 0
    %v2576 = vsel %vm278, %v2571, 0
    %2578 = vmatprep.subr.bf16.mxu0 0
    %2579 = vmatpush1.bf16.msra.mxu0 %v2576
    %2580 = vmatprep.subr.bf16.mxu0 0
    %2581 = vmatpush1.bf16.msra.mxu0 0
    %2582 = vmatprep.subr.bf16.mxu0 0
    %2583 = vmatpush1.bf16.msra.mxu0 0
    %2584 = vmatprep.subr.bf16.mxu0 0
    %2585 = vmatpush1.bf16.msra.mxu0 0
    %2586 = vmatprep.subr.bf16.mxu0 0
    %2587 = vmatpush1.bf16.msra.mxu0 0
    %2588 = vmatprep.subr.bf16.mxu0 0
    %2589 = vmatpush1.bf16.msra.mxu0 0
    %2590 = vmatprep.subr.bf16.mxu0 0
    %2591 = vmatpush1.bf16.msra.mxu0 0
    %2592 = vmatprep.subr.bf16.mxu0 0
    %2593 = vmatpush1.bf16.msra.mxu0 0
    %2594 = vmatprep.subr.bf16.mxu0 0
    %2595 = vmatpush1.bf16.msra.mxu0 0
    %2596 = vmatprep.subr.bf16.mxu0 0
    %2597 = vmatpush1.bf16.msra.mxu0 0
    %2598 = vmatprep.subr.bf16.mxu0 0
    %2599 = vmatpush1.bf16.msra.mxu0 0
    %2600 = vmatprep.subr.bf16.mxu0 0
    %2601 = vmatpush1.bf16.msra.mxu0 0
    %2602 = vmatprep.subr.bf16.mxu0 0
    %2603 = vmatpush1.bf16.msra.mxu0 0
    %2604 = vmatprep.subr.bf16.mxu0 0
    %2605 = vmatpush1.bf16.msra.mxu0 0
    %2606 = vmatprep.subr.bf16.mxu0 0
    %2607 = vmatpush1.bf16.msra.mxu0 0
    %2608 = vmatprep.subr.bf16.mxu0 0
    %2609 = vmatpush1.bf16.msra.mxu0 0
    %2610 = vmatprep.mubr.bf16.mxu0 0
    %2611 = vmatmul.mubr.bf16.gmra.mrb[0].mxu0 %v2573
    %v2612 = vpop.f32.mrb[0].mxu0
    %v2613 = vadd.f32 0.0, %v2612
    %v2614 = vpop.f32.mrb[0].mxu0
    %v2615 = vpop.f32.mrb[0].mxu0
    %v2616 = vadd.f32 0.0, %v2615
    %v2617 = vpop.f32.mrb[0].mxu0
    %2618 = vdwg.mxu0
    %v2619 = vadd.f32 %v2347, %v2613
    %v2620 = vadd.f32 %v2348, %v2616
    %v2621 = vlaneseq
    %v2622 = vshrl.u32 %v2621, 7
    %v2623 = vsub.s32 1, %v2622
    %v2624 = vrot.slane %v1471, %v2623
    %v2625 = vadd.f32 %v2619, %v2624
    %v2626 = vadd.f32 %v2620, %v2624
    %v2627 = vadd.f32 %v1467, %v2625
    %v2628 = vadd.f32 %v1468, %v2626
    %v2629 = vsel %vm103, %v2627, 0.0
    %2630 = vadd.xlane.f32.xlu0 %v2629
    %v2631 = vpop.xlane.xlu0 %2630
    %v2632 = vsel %vm103, %v2628, 0.0
    %2633 = vadd.xlane.f32.xlu0 %v2632
    %v2634 = vpop.xlane.xlu0 %2633
    %v2635 = vmul.f32 %v2631, %v1247
    %v2636 = vmul.f32 %v2634, %v1247
    %v2637 = vsub.f32 %v2627, %v2635
    %v2638 = vsub.f32 %v2628, %v2636
    %v2639 = vmul.f32 %v2637, %v2637
    %v2640 = vmul.f32 %v2638, %v2638
    %v2641 = vsel %vm103, %v2639, 0.0
    %2642 = vadd.xlane.f32.xlu0 %v2641
    %v2643 = vpop.xlane.xlu0 %2642
    %v2644 = vsel %vm103, %v2640, 0.0
    %2645 = vadd.xlane.f32.xlu0 %v2644
    %v2646 = vpop.xlane.xlu0 %2645
    %v2647 = vmul.f32 %v2643, %v1247
    %v2648 = vmul.f32 %v2646, %v1247
    %v2649 = vadd.f32 %v2647, 1e-05
    %v2650 = vadd.f32 %v2648, 1e-05
    %v2651 = vrsqrt.pop %v2649
    %v2652 = vrsqrt.pop %v2650
    %v2653 = vmul.f32 %v2637, %v2651
    %v2654 = vmul.f32 %v2638, %v2652
    %v2655 = vlaneseq
    %v2656 = vshrl.u32 %v2655, 7
    %v2657 = vsub.s32 4, %v2656
    %v2658 = vrot.slane %v1471, %v2657
    %v2659 = vmul.f32 %v2653, %v2658
    %v2660 = vmul.f32 %v2654, %v2658
    %v2661 = vlaneseq
    %v2662 = vshrl.u32 %v2661, 7
    %v2663 = vsub.s32 5, %v2662
    %v2664 = vrot.slane %v1471, %v2663
    %v2665 = vadd.f32 %v2659, %v2664
    %v2666 = vadd.f32 %v2660, %v2664
    %v2667 = vpack.c.bf16 %v2666, %v2665
    %s2668 = scalar_lea.vmem %s4, 16
    %v2669 = vld [vmem:[%s2668] sm:$0xf]
    %v2670 = vld [vmem:[%s2668 + $0x4] sm:$0xf]
    %v2671 = vld [vmem:[%s2668 + $0x8] sm:$0xf]
    %v2672 = vld [vmem:[%s2668 + $0xc] sm:$0xf]
    %v2673 = vlaneseq
    %v2674 = vshrl.u32 %v2673, 7
    %v2675 = vsub.s32 2, %v2674
    %v2676 = vrot.slane %v1471, %v2675
    %v2681 = vunpack.c.l.b16 %v2669
    %v2682 = vunpack.c.l.b16 %v2670
    %v2683 = vunpack.c.l.b16 %v2671
    %v2684 = vunpack.c.l.b16 %v2672
    %v2685 = vpack.c.b16 %v2682, %v2681
    %v2686 = vpack.c.b16 %v2684, %v2683
    %v2690 = vsel %vm103, %v2667, 0
    %2692 = vmatprep.subr.bf16.mxu0 0
    %2693 = vmatpush1.bf16.msra.mxu0 %v2685
    %2694 = vmatprep.subr.bf16.mxu0 0
    %2695 = vmatpush1.bf16.msra.mxu0 %v2686
    %2696 = vmatprep.subr.bf16.mxu0 0
    %2697 = vmatpush1.bf16.msra.mxu0 0
    %2698 = vmatprep.subr.bf16.mxu0 0
    %2699 = vmatpush1.bf16.msra.mxu0 0
    %2700 = vmatprep.subr.bf16.mxu0 0
    %2701 = vmatpush1.bf16.msra.mxu0 0
    %2702 = vmatprep.subr.bf16.mxu0 0
    %2703 = vmatpush1.bf16.msra.mxu0 0
    %2704 = vmatprep.subr.bf16.mxu0 0
    %2705 = vmatpush1.bf16.msra.mxu0 0
    %2706 = vmatprep.subr.bf16.mxu0 0
    %2707 = vmatpush1.bf16.msra.mxu0 0
    %2708 = vmatprep.subr.bf16.mxu0 0
    %2709 = vmatpush1.bf16.msra.mxu0 0
    %2710 = vmatprep.subr.bf16.mxu0 0
    %2711 = vmatpush1.bf16.msra.mxu0 0
    %2712 = vmatprep.subr.bf16.mxu0 0
    %2713 = vmatpush1.bf16.msra.mxu0 0
    %2714 = vmatprep.subr.bf16.mxu0 0
    %2715 = vmatpush1.bf16.msra.mxu0 0
    %2716 = vmatprep.subr.bf16.mxu0 0
    %2717 = vmatpush1.bf16.msra.mxu0 0
    %2718 = vmatprep.subr.bf16.mxu0 0
    %2719 = vmatpush1.bf16.msra.mxu0 0
    %2720 = vmatprep.subr.bf16.mxu0 0
    %2721 = vmatpush1.bf16.msra.mxu0 0
    %2722 = vmatprep.subr.bf16.mxu0 0
    %2723 = vmatpush1.bf16.msra.mxu0 0
    %2724 = vmatprep.mubr.bf16.mxu0 0
    %2725 = vmatmul.mubr.bf16.gmra.mrb[0].mxu0 %v2690
    %v2726 = vpop.f32.mrb[0].mxu0
    %v2727 = vadd.f32 %v2676, %v2726
    %v2728 = vpop.f32.mrb[0].mxu0
    %v2729 = vpop.f32.mrb[0].mxu0
    %v2730 = vadd.f32 %v2676, %v2729
    %v2731 = vpop.f32.mrb[0].mxu0
    %2732 = vdwg.mxu0
    %v2733 = vmax.f32 %v2727, 0.0
    %v2734 = vmax.f32 %v2730, 0.0
    %v2735 = vpack.c.bf16 %v2734, %v2733
    %s2736 = scalar_lea.vmem %s5, 32
    %v2737 = vld [vmem:[%s2736] sm:$0xf]
    %v2738 = vld [vmem:[%s2736 + $0x4] sm:$0xf]
    %v2739 = vld [vmem:[%s2736 + $0x8] sm:$0xf]
    %v2740 = vld [vmem:[%s2736 + $0xc] sm:$0xf]
    %v2741 = vld [vmem:[%s2736 + $0x10] sm:$0xf]
    %v2742 = vld [vmem:[%s2736 + $0x14] sm:$0xf]
    %v2743 = vld [vmem:[%s2736 + $0x18] sm:$0xf]
    %v2744 = vld [vmem:[%s2736 + $0x1c] sm:$0xf]
    %v2745 = vlaneseq
    %v2746 = vshrl.u32 %v2745, 7
    %v2747 = vsub.s32 3, %v2746
    %v2748 = vrot.slane %v1471, %v2747
    %v2757 = vunpack.c.l.b16 %v2737
    %v2758 = vunpack.c.l.b16 %v2738
    %v2759 = vunpack.c.l.b16 %v2739
    %v2760 = vunpack.c.l.b16 %v2740
    %v2761 = vunpack.c.l.b16 %v2741
    %v2762 = vunpack.c.l.b16 %v2742
    %v2763 = vunpack.c.l.b16 %v2743
    %v2764 = vunpack.c.l.b16 %v2744
    %v2765 = vpack.c.b16 %v2758, %v2757
    %v2766 = vpack.c.b16 %v2760, %v2759
    %v2767 = vpack.c.b16 %v2762, %v2761
    %v2768 = vpack.c.b16 %v2764, %v2763
    %v2774 = vsel %vm1384, %v2735, 0
    %2776 = vmatprep.subr.bf16.mxu0 0
    %2777 = vmatpush1.bf16.msra.mxu0 %v2765
    %2778 = vmatprep.subr.bf16.mxu0 0
    %2779 = vmatpush1.bf16.msra.mxu0 %v2766
    %2780 = vmatprep.subr.bf16.mxu0 0
    %2781 = vmatpush1.bf16.msra.mxu0 %v2767
    %2782 = vmatprep.subr.bf16.mxu0 0
    %2783 = vmatpush1.bf16.msra.mxu0 %v2768
    %2784 = vmatprep.subr.bf16.mxu0 0
    %2785 = vmatpush1.bf16.msra.mxu0 0
    %2786 = vmatprep.subr.bf16.mxu0 0
    %2787 = vmatpush1.bf16.msra.mxu0 0
    %2788 = vmatprep.subr.bf16.mxu0 0
    %2789 = vmatpush1.bf16.msra.mxu0 0
    %2790 = vmatprep.subr.bf16.mxu0 0
    %2791 = vmatpush1.bf16.msra.mxu0 0
    %2792 = vmatprep.subr.bf16.mxu0 0
    %2793 = vmatpush1.bf16.msra.mxu0 0
    %2794 = vmatprep.subr.bf16.mxu0 0
    %2795 = vmatpush1.bf16.msra.mxu0 0
    %2796 = vmatprep.subr.bf16.mxu0 0
    %2797 = vmatpush1.bf16.msra.mxu0 0
    %2798 = vmatprep.subr.bf16.mxu0 0
    %2799 = vmatpush1.bf16.msra.mxu0 0
    %2800 = vmatprep.subr.bf16.mxu0 0
    %2801 = vmatpush1.bf16.msra.mxu0 0
    %2802 = vmatprep.subr.bf16.mxu0 0
    %2803 = vmatpush1.bf16.msra.mxu0 0
    %2804 = vmatprep.subr.bf16.mxu0 0
    %2805 = vmatpush1.bf16.msra.mxu0 0
    %2806 = vmatprep.subr.bf16.mxu0 0
    %2807 = vmatpush1.bf16.msra.mxu0 0
    %2808 = vmatprep.mubr.bf16.mxu0 0
    %2809 = vmatmul.mubr.bf16.gmra.mrb[0].mxu0 %v2774
    %v2810 = vpop.f32.mrb[0].mxu0
    %v2811 = vadd.f32 %v2748, %v2810
    %v2812 = vpop.f32.mrb[0].mxu0
    %v2813 = vpop.f32.mrb[0].mxu0
    %v2814 = vadd.f32 %v2748, %v2813
    %v2815 = vpop.f32.mrb[0].mxu0
    %2816 = vdwg.mxu0
    %v2817 = vadd.f32 %v2665, %v2811
    %v2818 = vadd.f32 %v2666, %v2814
    %v2819 = vsel %vm103, %v2817, 0.0
    %2820 = vadd.xlane.f32.xlu0 %v2819
    %v2821 = vpop.xlane.xlu0 %2820
    %v2822 = vsel %vm103, %v2818, 0.0
    %2823 = vadd.xlane.f32.xlu0 %v2822
    %v2824 = vpop.xlane.xlu0 %2823
    %v2825 = vmul.f32 %v2821, %v1247
    %v2826 = vmul.f32 %v2824, %v1247
    %v2827 = vsub.f32 %v2817, %v2825
    %v2828 = vsub.f32 %v2818, %v2826
    %v2829 = vmul.f32 %v2827, %v2827
    %v2830 = vmul.f32 %v2828, %v2828
    %v2831 = vsel %vm103, %v2829, 0.0
    %2832 = vadd.xlane.f32.xlu0 %v2831
    %v2833 = vpop.xlane.xlu0 %2832
    %v2834 = vsel %vm103, %v2830, 0.0
    %2835 = vadd.xlane.f32.xlu0 %v2834
    %v2836 = vpop.xlane.xlu0 %2835
    %v2837 = vmul.f32 %v2833, %v1247
    %v2838 = vmul.f32 %v2836, %v1247
    %v2839 = vadd.f32 %v2837, 1e-05
    %v2840 = vadd.f32 %v2838, 1e-05
    %v2841 = vrsqrt.pop %v2839
    %v2842 = vrsqrt.pop %v2840
    %v2843 = vmul.f32 %v2827, %v2841
    %v2844 = vmul.f32 %v2828, %v2842
    %v2845 = vlaneseq
    %v2846 = vshrl.u32 %v2845, 7
    %v2847 = vsub.s32 6, %v2846
    %v2848 = vrot.slane %v1471, %v2847
    %v2849 = vmul.f32 %v2843, %v2848
    %v2850 = vmul.f32 %v2844, %v2848
    %v2851 = vlaneseq
    %v2852 = vshrl.u32 %v2851, 7
    %v2853 = vsub.s32 7, %v2852
    %v2854 = vrot.slane %v1471, %v2853
    %v2855 = vadd.f32 %v2849, %v2854
    %v2856 = vadd.f32 %v2850, %v2854
    %vm2857 = vcmask 261127
    %2858 = vst.msk [vmem:[#allocation2 - $0x7] sm:$0x80] %vm2857, %v2855
    %2859 = vst.msk [vmem:[#allocation2 - $0x6] sm:$0x80] %vm2857, %v2856
    %v2860 = vld [vmem:[#allocation2] sm:$0x3]
    %v2861 = vpack.c.bf16 %v2860, %v2860
    %v2862 = vld [vmem:[#allocation8] sm:$0xf]
    %v2863 = vld [vmem:[#allocation8 + $0x4] sm:$0xf]
    %v2864 = vld [vmem:[#allocation8 + $0x8] sm:$0xf]
    %v2865 = vld [vmem:[#allocation8 + $0xc] sm:$0xf]
    %v2866 = vld [vmem:[%s8] sm:$0x1]
    %v2868 = vlaneseq
    %v2869 = vshrl.u32 %v2868, 7
    %v2870 = vsub.s32 0, %v2869
    %v2871 = vrot.slane %v2866, %v2870
    %v2877 = vunpack.c.l.b16 %v2862
    %v2878 = vunpack.c.l.b16 %v2863
    %v2879 = vunpack.c.l.b16 %v2864
    %v2880 = vunpack.c.l.b16 %v2865
    %v2881 = vpack.c.b16 %v2878, %v2877
    %v2882 = vpack.c.b16 %v2880, %v2879
    %v2886 = vsel %vm103, %v2861, 0
    %2888 = vmatprep.subr.bf16.mxu0 0
    %2889 = vmatpush1.bf16.msra.mxu0 %v2881
    %2890 = vmatprep.subr.bf16.mxu0 0
    %2891 = vmatpush1.bf16.msra.mxu0 %v2882
    %2892 = vmatprep.subr.bf16.mxu0 0
    %2893 = vmatpush1.bf16.msra.mxu0 0
    %2894 = vmatprep.subr.bf16.mxu0 0
    %2895 = vmatpush1.bf16.msra.mxu0 0
    %2896 = vmatprep.subr.bf16.mxu0 0
    %2897 = vmatpush1.bf16.msra.mxu0 0
    %2898 = vmatprep.subr.bf16.mxu0 0
    %2899 = vmatpush1.bf16.msra.mxu0 0
    %2900 = vmatprep.subr.bf16.mxu0 0
    %2901 = vmatpush1.bf16.msra.mxu0 0
    %2902 = vmatprep.subr.bf16.mxu0 0
    %2903 = vmatpush1.bf16.msra.mxu0 0
    %2904 = vmatprep.subr.bf16.mxu0 0
    %2905 = vmatpush1.bf16.msra.mxu0 0
    %2906 = vmatprep.subr.bf16.mxu0 0
    %2907 = vmatpush1.bf16.msra.mxu0 0
    %2908 = vmatprep.subr.bf16.mxu0 0
    %2909 = vmatpush1.bf16.msra.mxu0 0
    %2910 = vmatprep.subr.bf16.mxu0 0
    %2911 = vmatpush1.bf16.msra.mxu0 0
    %2912 = vmatprep.subr.bf16.mxu0 0
    %2913 = vmatpush1.bf16.msra.mxu0 0
    %2914 = vmatprep.subr.bf16.mxu0 0
    %2915 = vmatpush1.bf16.msra.mxu0 0
    %2916 = vmatprep.subr.bf16.mxu0 0
    %2917 = vmatpush1.bf16.msra.mxu0 0
    %2918 = vmatprep.subr.bf16.mxu0 0
    %2919 = vmatpush1.bf16.msra.mxu0 0
    %2920 = vmatprep.mubr.bf16.mxu0 0
    %2921 = vmatmul.mubr.bf16.gmra.mrb[0].mxu0 %v2886
    %v2922 = vpop.f32.mrb[0].mxu0
    %v2923 = vadd.f32 %v2871, %v2922
    %v2924 = vpop.f32.mrb[0].mxu0
    %v2925 = vpop.f32.mrb[0].mxu0
    %v2926 = vpop.f32.mrb[0].mxu0
    %2927 = vdwg.mxu0
    %v2928 = vxor.u32 %v2923, 2147483648
    %v2929 = vmul.f32 %v2928, 1.442695
    %v2930 = vpow.pop %v2929
    %v2931 = vadd.f32 %v2930, 1.0
    %v2932 = vrcp.pop %v2931
    %v2933 = vmul.f32 1.0, %v2932
    %vm2934 = vcmask 254976
    %2935 = vst.msk [vmem:[#allocation9] sm:$0x3] %vm2934, %v2933
    // Predicated region
    $region50: #{tpu_custom_call.1} parent=1 // pred_check
      _
    $region51: #{tpu_custom_call.1} parent=1 // pred_check_branch
      %2937 = sbr.rel (0) target = $region53
    $region52: #{tpu_custom_call.1} parent=1 // pred_region
      %s2939 = ssub.s32 32, 32
      %2940 = vsyncadd [#allocation5], %s2939
      %s2942 = sshll.u32 [#allocation9], 4
      %s2943 = int_to_ptr.vmem [resolvable:$true] %s2942
      %2945 = dma.vmem_to_hbm [thread:$0]  %s2943, 32, %s9, [#allocation5]
    $region53: #{tpu_custom_call.1} parent=1 // pred_fallthru
      _
    // Predicated region
    $region54: #{tpu_custom_call.1} parent=1 // pred_check
      _
    $region55: #{tpu_custom_call.1} parent=1 // pred_check_branch
      %2947 = sbr.rel (0) target = $region57
    $region56: #{tpu_custom_call.1} parent=1 // pred_region
      %2948 = dma.done [#allocation5], 32
    $region57: #{tpu_custom_call.1} parent=1 // pred_fallthru
      _
    %2949 = vsyncpa [#allocation4], 1
    %2950 = vsyncpa [#allocation7], 1
    %2951 = vsyncpa [#allocation5], 1

</llo_original>
